<compile_context>
chip_gen: v6e
topology: v6e:2x2x1
jax: 0.10.0
libtpu: 0.0.40
codegen_flags: <defaults>
</compile_context>

<pallas_src>
import jax
import jax.numpy as jnp
import numpy as np
from jax import lax
from jax.experimental import pallas as pl
from jax.experimental.pallas import tpu as pltpu

# ---- model hyperparameters (small, consistent with the module) --------------
IMG = 16          # image_size
CIN = 3           # input channels
COUT = 8          # backbone conv channels
K, STRIDE, PAD = 3, 2, 1
OH = OW = (IMG + 2 * PAD - K) // STRIDE + 1          # 8
NPOS = OH * OW                                       # 64 spatial positions
NTAPS = K * K * CIN                                  # 27 conv taps
HIDDEN_DIM = COUT * NPOS                             # 512 (flattened hook output)
PROJ_HID = 64     # projection_hidden_size (4096 in the paper; small here)
PROJ = 32         # projection_size       (256 in the paper; small here)

BN_EPS = 1e-5
LEAKY_SLOPE = 0.01        # nn.LeakyReLU default
NORM_EPS = 1e-12          # F.normalize default eps
HI = jax.lax.Precision.HIGHEST


# =============================== Pallas kernel ================================

def _byol_fused_kernel(taps_ref, wexp_ref, bexp_ref,
                       pw1_ref, pb1_ref, pg_ref, pbeta_ref, pw2_ref, pb2_ref,
                       qw1_ref, qb1_ref, qg_ref, qbeta_ref, qw2_ref, qb2_ref,
                       loss_ref):
    """Fused: conv+ReLU (VPU) -> projector MLP -> predictor MLP -> BYOL loss."""
    f32 = jnp.float32
    bf16 = jnp.bfloat16
    two_b = taps_ref.shape[1]
    b = two_b // 2

    # ---- backbone conv + ReLU, written lane-dense as (2B, 512) --------------
    # hidden[i, c*64+m] = relu( sum_t taps[t, i, m] * W[t, c] + bias[c] )
    # taps were pre-tiled 8x along the feature axis and the conv weight was
    # pre-expanded per output channel, so each tap is one broadcast
    # multiply-add on a (2B, 512) slab: zero MXU pushes, no in-kernel reshape,
    # and the output is already in PyTorch (c, h, w) flatten order.
    acc = jnp.zeros((two_b, HIDDEN_DIM), f32)
    for t in range(NTAPS):                             # static, unrolled (27)
        acc = acc + taps_ref[t] * wexp_ref[t]          # (2B,512) * (1,512)
    hidden = jnp.maximum(acc + bexp_ref[...], 0.0)     # (2B, 512)

    # ---- per-view BatchNorm1d (training mode) via a row mask ----------------
    # The torch code runs each view through the MLP in a separate forward call,
    # so batch statistics are computed PER VIEW (B rows each).
    row_is_two = lax.broadcasted_iota(jnp.int32, (two_b, 1), 0) >= b
    inv_b = 1.0 / b

    def bn_leaky(h, g, beta):
        s1 = jnp.sum(jnp.where(row_is_two, 0.0, h), axis=0, keepdims=True) * inv_b
        s2 = jnp.sum(jnp.where(row_is_two, h, 0.0), axis=0, keepdims=True) * inv_b
        mean = jnp.where(row_is_two, s2, s1)
        d = h - mean
        v1 = jnp.sum(jnp.where(row_is_two, 0.0, d * d), axis=0, keepdims=True) * inv_b
        v2 = jnp.sum(jnp.where(row_is_two, d * d, 0.0), axis=0, keepdims=True) * inv_b
        var = jnp.where(row_is_two, v2, v1)            # biased var, BN train mode
        hn = d * (g * lax.rsqrt(var + BN_EPS)) + beta  # exact rsqrt on the EUP
        return jnp.where(hn >= 0.0, hn, LEAKY_SLOPE * hn)

    def dot_bf16(x, w_ref):
        # bf16 MXU operands, f32 accumulation
        return jnp.dot(x.astype(bf16), w_ref[...], preferred_element_type=f32)

    # ---- projector MLP: both views as one (2B, .) slab -> 2 MXU pushes ------
    lin1 = dot_bf16(hidden, pw1_ref) + pb1_ref[...]                      # (2B, 64)
    proj = dot_bf16(bn_leaky(lin1, pg_ref[...], pbeta_ref[...]),
                    pw2_ref) + pb2_ref[...]                              # (2B, 32)

    # ---- online predictor MLP: 2 more MXU pushes (4 total in the head) ------
    h2 = dot_bf16(proj, qw1_ref) + qb1_ref[...]                          # (2B, 64)
    pred = dot_bf16(bn_leaky(h2, qg_ref[...], qbeta_ref[...]),
                    qw2_ref) + qb2_ref[...]                              # (2B, 32)

    # ---- BYOL loss: target == online (deepcopy, no EMA step yet), so the
    # online projections double as the target projections. -------------------
    def cos_rows(x, y):
        ix = lax.rsqrt(jnp.maximum(jnp.sum(x * x, -1, keepdims=True),
                                   NORM_EPS * NORM_EPS))
        iy = lax.rsqrt(jnp.maximum(jnp.sum(y * y, -1, keepdims=True),
                                   NORM_EPS * NORM_EPS))
        return jnp.sum(x * y, -1, keepdims=True) * ix * iy               # (B, 1)

    per_row = (2.0 - 2.0 * cos_rows(pred[0:b], proj[b:two_b])) \
            + (2.0 - 2.0 * cos_rows(pred[b:two_b], proj[0:b]))           # (B, 1)
    loss_ref[...] = jnp.mean(per_row).reshape(1, 1)


# =============================== kernel wrapper ===============================

def byol_fused_pallas(taps, p):
    """Single fused pallas_call; returns the scalar BYOL loss."""
    args = (taps,
            p["conv_wexp"], p["conv_bexp"],
            p["proj_w1_bf"], p["proj_b1"], p["proj_g"], p["proj_beta"],
            p["proj_w2_bf"], p["proj_b2"],
            p["pred_w1_bf"], p["pred_b1"], p["pred_g"], p["pred_beta"],
            p["pred_w2_bf"], p["pred_b2"])

    def full_spec(a):
        zeros = (0,) * a.ndim
        return pl.BlockSpec(a.shape, lambda i, z=zeros: z)

    out = pl.pallas_call(
        _byol_fused_kernel,
        out_shape=jax.ShapeDtypeStruct((1, 1), jnp.float32),
        grid=(1,),
        in_specs=[full_spec(a) for a in args],
        out_specs=pl.BlockSpec((1, 1), lambda i: (0, 0)),
        compiler_params=pltpu.CompilerParams(dimension_semantics=("arbitrary",)),
    )(*args)
    return out[0, 0]


# ================================= JAX glue ===================================

@jax.jit
def byol_forward(image_one, image_two, p):
    bsz = image_one.shape[0]
    # Both views share the conv weights and the conv has no batch statistics,
    # so run them as one concatenated batch through the single fused kernel.
    x = jnp.concatenate([image_one, image_two], axis=0)            # (2B, CIN, H, W)
    xp = jnp.pad(x, ((0, 0), (0, 0), (PAD, PAD), (PAD, PAD)))      # (2B, CIN, 18, 18)
    # TODO(synk): the 27-tap extraction stays as one fused XLA gather of
    # strided slices; a fully in-kernel version would need stride-2 VMEM
    # slicing of the padded image.
    cols = []
    for kh in range(K):
        for kw in range(K):
            for ci in range(CIN):
                cols.append(xp[:, ci,
                               kh:kh + STRIDE * OH:STRIDE,
                               kw:kw + STRIDE * OW:STRIDE])        # (2B, 8, 8)
    taps = jnp.stack(cols, axis=0).reshape(NTAPS, 2 * bsz, NPOS)   # (27, 2B, 64)
    # Tile 8x along the feature axis so the in-kernel conv writes the hidden
    # activation directly lane-dense as (2B, 512) in PyTorch (c,h,w) order,
    # with no in-kernel reshape/transpose and no masked 8-lane stores.
    taps = jnp.tile(taps, (1, 1, COUT))                            # (27, 2B, 512)
    return byol_fused_pallas(taps, p)


# ================================ parameters ==================================

def init_params(key):
    ks = jax.random.split(key, 10)

    def unif(k, shape, fan_in):
        bound = 1.0 / float(fan_in) ** 0.5
        return jax.random.uniform(k, shape, jnp.float32, -bound, bound)

    p = {}
    # backbone: Conv2d(3, 8, 3, stride=2, padding=1)
    p["conv_w"] = unif(ks[0], (COUT, CIN, K, K), CIN * K * K)
    p["conv_b"] = unif(ks[1], (1, COUT), CIN * K * K)
    # TODO(synk): the backbone's final Linear head output is discarded by the
    # forward hook (layer=-2), so its (dead) matmul is not emitted.
    # projector MLP: Linear(512, 64) -> BN -> LeakyReLU -> Linear(64, 32)
    p["proj_w1"] = unif(ks[2], (HIDDEN_DIM, PROJ_HID), HIDDEN_DIM)   # rows in torch (c,h,w) order
    p["proj_b1"] = unif(ks[3], (1, PROJ_HID), HIDDEN_DIM)
    p["proj_g"] = jnp.ones((1, PROJ_HID), jnp.float32)
    p["proj_beta"] = jnp.zeros((1, PROJ_HID), jnp.float32)
    p["proj_w2"] = unif(ks[4], (PROJ_HID, PROJ), PROJ_HID)
    p["proj_b2"] = unif(ks[5], (1, PROJ), PROJ_HID)
    # online predictor MLP: Linear(32, 64) -> BN -> LeakyReLU -> Linear(64, 32)
    p["pred_w1"] = unif(ks[6], (PROJ, PROJ_HID), PROJ)
    p["pred_b1"] = unif(ks[7], (1, PROJ_HID), PROJ)
    p["pred_g"] = jnp.ones((1, PROJ_HID), jnp.float32)
    p["pred_beta"] = jnp.zeros((1, PROJ_HID), jnp.float32)
    p["pred_w2"] = unif(ks[8], (PROJ_HID, PROJ), PROJ_HID)
    p["pred_b2"] = unif(ks[9], (1, PROJ), PROJ_HID)
    return p


def prepare_params(p):
    """One-time layout plumbing (outside jit, zero per-step cost):
      - conv weight expanded to (27, 1, 512): wexp[t, 0, c*64+m] = W[c, ci, kh, kw]
        with t = (kh, kw, ci), matching the wrapper's tap order and the
        lane-dense (c, h, w) hidden layout (so proj_w1 keeps its original
        PyTorch row order — no permutation needed);
      - conv bias expanded to (1, 512);
      - MXU weight operands pre-cast to bf16 (accumulation stays f32)."""
    q = dict(p)
    wt = jnp.transpose(p["conv_w"], (2, 3, 1, 0)).reshape(NTAPS, COUT)   # (27, 8)
    q["conv_wexp"] = jnp.repeat(wt, NPOS, axis=1).reshape(NTAPS, 1, HIDDEN_DIM)
    q["conv_bexp"] = jnp.repeat(p["conv_b"].reshape(COUT), NPOS).reshape(1, HIDDEN_DIM)
    for name in ("proj_w1", "proj_w2", "pred_w1", "pred_w2"):
        q[name + "_bf"] = p[name].astype(jnp.bfloat16)
    return q


# ====================== pure-JAX reference (torch-faithful) ===================

def _reference_loss(image_one, image_two, p):
    def mlp(x, w1, b1, g, beta, w2, b2):
        h = jnp.dot(x, w1, precision=HI) + b1
        mean = h.mean(0, keepdims=True)
        var = ((h - mean) ** 2).mean(0, keepdims=True)       # biased, BN train mode
        hn = (h - mean) / jnp.sqrt(var + BN_EPS) * g + beta
        a = jnp.where(hn >= 0.0, hn, LEAKY_SLOPE * hn)
        return jnp.dot(a, w2, precision=HI) + b2

    def encode(x):
        y = lax.conv_general_dilated(x, p["conv_w"], (STRIDE, STRIDE),
                                     ((PAD, PAD), (PAD, PAD)),
                                     dimension_numbers=("NCHW", "OIHW", "NCHW"),
                                     precision=HI)
        y = jnp.maximum(y + p["conv_b"].reshape(1, COUT, 1, 1), 0.0)
        hidden = y.reshape(y.shape[0], -1)                   # PyTorch flatten (c,h,w)
        return mlp(hidden, p["proj_w1"], p["proj_b1"], p["proj_g"], p["proj_beta"],
                   p["proj_w2"], p["proj_b2"])

    def normalize(v):
        n = jnp.sqrt((v * v).sum(-1, keepdims=True))
        return v / jnp.maximum(n, NORM_EPS)

    proj_one, proj_two = encode(image_one), encode(image_two)
    pred_one = mlp(proj_one, p["pred_w1"], p["pred_b1"], p["pred_g"], p["pred_beta"],
                   p["pred_w2"], p["pred_b2"])
    pred_two = mlp(proj_two, p["pred_w1"], p["pred_b1"], p["pred_g"], p["pred_beta"],
                   p["pred_w2"], p["pred_b2"])
    l1 = 2.0 - 2.0 * (normalize(pred_one) * normalize(proj_two)).sum(-1)
    l2 = 2.0 - 2.0 * (normalize(pred_two) * normalize(proj_one)).sum(-1)
    return (l1 + l2).mean()


# =================================== main =====================================

if __name__ == "__main__":
    key = jax.random.PRNGKey(0)
    k_img1, k_img2, k_params = jax.random.split(key, 3)

    B = 2
    image_one = jax.random.normal(k_img1, (B, CIN, IMG, IMG), jnp.float32)
    image_two = jax.random.normal(k_img2, (B, CIN, IMG, IMG), jnp.float32)
    params = prepare_params(init_params(k_params))

    loss = byol_forward(image_one, image_two, params)
    jax.block_until_ready(loss)

    # sanity check against a pure-JAX, PyTorch-faithful f32 reference (validates
    # the tap/weight expansion, per-view BN masking, bf16 MXU path, loss fusion).
    ref = _reference_loss(image_one, image_two, params)
    np.testing.assert_allclose(np.asarray(loss), np.asarray(ref), rtol=5e-2, atol=5e-2)

    assert loss.shape == () and bool(jnp.isfinite(loss))
    print("KERNEL_OK")
</pallas_src>

<mosaic_0001>
module attributes {stable_mosaic.version = 11 : i64} {
  func.func @_byol_fused_kernel(%arg0: i32, %arg1: memref<27x4x512xf32, #tpu.memory_space<vmem>>, %arg2: memref<27x1x512xf32, #tpu.memory_space<vmem>>, %arg3: memref<1x512xf32, #tpu.memory_space<vmem>>, %arg4: memref<512x64xbf16, #tpu.memory_space<vmem>>, %arg5: memref<1x64xf32, #tpu.memory_space<vmem>>, %arg6: memref<1x64xf32, #tpu.memory_space<vmem>>, %arg7: memref<1x64xf32, #tpu.memory_space<vmem>>, %arg8: memref<64x32xbf16, #tpu.memory_space<vmem>>, %arg9: memref<1x32xf32, #tpu.memory_space<vmem>>, %arg10: memref<32x64xbf16, #tpu.memory_space<vmem>>, %arg11: memref<1x64xf32, #tpu.memory_space<vmem>>, %arg12: memref<1x64xf32, #tpu.memory_space<vmem>>, %arg13: memref<1x64xf32, #tpu.memory_space<vmem>>, %arg14: memref<64x32xbf16, #tpu.memory_space<vmem>>, %arg15: memref<1x32xf32, #tpu.memory_space<vmem>>, %arg16: memref<1x1xf32, #tpu.memory_space<vmem>>) attributes {dimension_semantics = [#tpu.dimension_semantics<arbitrary>], iteration_bounds = array<i64: 1>, scalar_prefetch = 0 : i64, scratch_operands = 0 : i64, tpu.core_type = #tpu.core_type<tc>, window_params = [{pipeline_mode = #tpu.pipeline_mode<synchronous>, transform_indices = @transform_0, window_bounds = array<i64: 27, 4, 512>}, {pipeline_mode = #tpu.pipeline_mode<synchronous>, transform_indices = @transform_1, window_bounds = array<i64: 27, 1, 512>}, {pipeline_mode = #tpu.pipeline_mode<synchronous>, transform_indices = @transform_2, window_bounds = array<i64: 1, 512>}, {pipeline_mode = #tpu.pipeline_mode<synchronous>, transform_indices = @transform_3, window_bounds = array<i64: 512, 64>}, {pipeline_mode = #tpu.pipeline_mode<synchronous>, transform_indices = @transform_4, window_bounds = array<i64: 1, 64>}, {pipeline_mode = #tpu.pipeline_mode<synchronous>, transform_indices = @transform_5, window_bounds = array<i64: 1, 64>}, {pipeline_mode = #tpu.pipeline_mode<synchronous>, transform_indices = @transform_6, window_bounds = array<i64: 1, 64>}, {pipeline_mode = #tpu.pipeline_mode<synchronous>, transform_indices = @transform_7, window_bounds = array<i64: 64, 32>}, {pipeline_mode = #tpu.pipeline_mode<synchronous>, transform_indices = @transform_8, window_bounds = array<i64: 1, 32>}, {pipeline_mode = #tpu.pipeline_mode<synchronous>, transform_indices = @transform_9, window_bounds = array<i64: 32, 64>}, {pipeline_mode = #tpu.pipeline_mode<synchronous>, transform_indices = @transform_10, window_bounds = array<i64: 1, 64>}, {pipeline_mode = #tpu.pipeline_mode<synchronous>, transform_indices = @transform_11, window_bounds = array<i64: 1, 64>}, {pipeline_mode = #tpu.pipeline_mode<synchronous>, transform_indices = @transform_12, window_bounds = array<i64: 1, 64>}, {pipeline_mode = #tpu.pipeline_mode<synchronous>, transform_indices = @transform_13, window_bounds = array<i64: 64, 32>}, {pipeline_mode = #tpu.pipeline_mode<synchronous>, transform_indices = @transform_14, window_bounds = array<i64: 1, 32>}, {pipeline_mode = #tpu.pipeline_mode<synchronous>, transform_indices = @transform_15, window_bounds = array<i64: 1, 1>}]} {
    %cst = arith.constant 0.000000e+00 : f32
    %0 = vector.broadcast %cst : f32 to vector<4x512xf32>
    %c0 = arith.constant 0 : index
    %c0_0 = arith.constant 0 : index
    %c0_1 = arith.constant 0 : index
    %1 = vector.load %arg1[%c0, %c0_0, %c0_1] : memref<27x4x512xf32, #tpu.memory_space<vmem>>, vector<1x4x512xf32>
    %2 = vector.shape_cast %1 : vector<1x4x512xf32> to vector<4x512xf32>
    %c0_2 = arith.constant 0 : index
    %c0_3 = arith.constant 0 : index
    %c0_4 = arith.constant 0 : index
    %3 = vector.load %arg2[%c0_2, %c0_3, %c0_4] : memref<27x1x512xf32, #tpu.memory_space<vmem>>, vector<1x1x512xf32>
    %4 = vector.shape_cast %3 : vector<1x1x512xf32> to vector<1x512xf32>
    %5 = vector.broadcast %4 : vector<1x512xf32> to vector<4x512xf32>
    %6 = arith.mulf %2, %5 : vector<4x512xf32>
    %7 = arith.addf %0, %6 : vector<4x512xf32>
    %c1 = arith.constant 1 : index
    %c0_5 = arith.constant 0 : index
    %c0_6 = arith.constant 0 : index
    %8 = vector.load %arg1[%c1, %c0_5, %c0_6] : memref<27x4x512xf32, #tpu.memory_space<vmem>>, vector<1x4x512xf32>
    %9 = vector.shape_cast %8 : vector<1x4x512xf32> to vector<4x512xf32>
    %c1_7 = arith.constant 1 : index
    %c0_8 = arith.constant 0 : index
    %c0_9 = arith.constant 0 : index
    %10 = vector.load %arg2[%c1_7, %c0_8, %c0_9] : memref<27x1x512xf32, #tpu.memory_space<vmem>>, vector<1x1x512xf32>
    %11 = vector.shape_cast %10 : vector<1x1x512xf32> to vector<1x512xf32>
    %12 = vector.broadcast %11 : vector<1x512xf32> to vector<4x512xf32>
    %13 = arith.mulf %9, %12 : vector<4x512xf32>
    %14 = arith.addf %7, %13 : vector<4x512xf32>
    %c2 = arith.constant 2 : index
    %c0_10 = arith.constant 0 : index
    %c0_11 = arith.constant 0 : index
    %15 = vector.load %arg1[%c2, %c0_10, %c0_11] : memref<27x4x512xf32, #tpu.memory_space<vmem>>, vector<1x4x512xf32>
    %16 = vector.shape_cast %15 : vector<1x4x512xf32> to vector<4x512xf32>
    %c2_12 = arith.constant 2 : index
    %c0_13 = arith.constant 0 : index
    %c0_14 = arith.constant 0 : index
    %17 = vector.load %arg2[%c2_12, %c0_13, %c0_14] : memref<27x1x512xf32, #tpu.memory_space<vmem>>, vector<1x1x512xf32>
    %18 = vector.shape_cast %17 : vector<1x1x512xf32> to vector<1x512xf32>
    %19 = vector.broadcast %18 : vector<1x512xf32> to vector<4x512xf32>
    %20 = arith.mulf %16, %19 : vector<4x512xf32>
    %21 = arith.addf %14, %20 : vector<4x512xf32>
    %c3 = arith.constant 3 : index
    %c0_15 = arith.constant 0 : index
    %c0_16 = arith.constant 0 : index
    %22 = vector.load %arg1[%c3, %c0_15, %c0_16] : memref<27x4x512xf32, #tpu.memory_space<vmem>>, vector<1x4x512xf32>
    %23 = vector.shape_cast %22 : vector<1x4x512xf32> to vector<4x512xf32>
    %c3_17 = arith.constant 3 : index
    %c0_18 = arith.constant 0 : index
    %c0_19 = arith.constant 0 : index
    %24 = vector.load %arg2[%c3_17, %c0_18, %c0_19] : memref<27x1x512xf32, #tpu.memory_space<vmem>>, vector<1x1x512xf32>
    %25 = vector.shape_cast %24 : vector<1x1x512xf32> to vector<1x512xf32>
    %26 = vector.broadcast %25 : vector<1x512xf32> to vector<4x512xf32>
    %27 = arith.mulf %23, %26 : vector<4x512xf32>
    %28 = arith.addf %21, %27 : vector<4x512xf32>
    %c4 = arith.constant 4 : index
    %c0_20 = arith.constant 0 : index
    %c0_21 = arith.constant 0 : index
    %29 = vector.load %arg1[%c4, %c0_20, %c0_21] : memref<27x4x512xf32, #tpu.memory_space<vmem>>, vector<1x4x512xf32>
    %30 = vector.shape_cast %29 : vector<1x4x512xf32> to vector<4x512xf32>
    %c4_22 = arith.constant 4 : index
    %c0_23 = arith.constant 0 : index
    %c0_24 = arith.constant 0 : index
    %31 = vector.load %arg2[%c4_22, %c0_23, %c0_24] : memref<27x1x512xf32, #tpu.memory_space<vmem>>, vector<1x1x512xf32>
    %32 = vector.shape_cast %31 : vector<1x1x512xf32> to vector<1x512xf32>
    %33 = vector.broadcast %32 : vector<1x512xf32> to vector<4x512xf32>
    %34 = arith.mulf %30, %33 : vector<4x512xf32>
    %35 = arith.addf %28, %34 : vector<4x512xf32>
    %c5 = arith.constant 5 : index
    %c0_25 = arith.constant 0 : index
    %c0_26 = arith.constant 0 : index
    %36 = vector.load %arg1[%c5, %c0_25, %c0_26] : memref<27x4x512xf32, #tpu.memory_space<vmem>>, vector<1x4x512xf32>
    %37 = vector.shape_cast %36 : vector<1x4x512xf32> to vector<4x512xf32>
    %c5_27 = arith.constant 5 : index
    %c0_28 = arith.constant 0 : index
    %c0_29 = arith.constant 0 : index
    %38 = vector.load %arg2[%c5_27, %c0_28, %c0_29] : memref<27x1x512xf32, #tpu.memory_space<vmem>>, vector<1x1x512xf32>
    %39 = vector.shape_cast %38 : vector<1x1x512xf32> to vector<1x512xf32>
    %40 = vector.broadcast %39 : vector<1x512xf32> to vector<4x512xf32>
    %41 = arith.mulf %37, %40 : vector<4x512xf32>
    %42 = arith.addf %35, %41 : vector<4x512xf32>
    %c6 = arith.constant 6 : index
    %c0_30 = arith.constant 0 : index
    %c0_31 = arith.constant 0 : index
    %43 = vector.load %arg1[%c6, %c0_30, %c0_31] : memref<27x4x512xf32, #tpu.memory_space<vmem>>, vector<1x4x512xf32>
    %44 = vector.shape_cast %43 : vector<1x4x512xf32> to vector<4x512xf32>
    %c6_32 = arith.constant 6 : index
    %c0_33 = arith.constant 0 : index
    %c0_34 = arith.constant 0 : index
    %45 = vector.load %arg2[%c6_32, %c0_33, %c0_34] : memref<27x1x512xf32, #tpu.memory_space<vmem>>, vector<1x1x512xf32>
    %46 = vector.shape_cast %45 : vector<1x1x512xf32> to vector<1x512xf32>
    %47 = vector.broadcast %46 : vector<1x512xf32> to vector<4x512xf32>
    %48 = arith.mulf %44, %47 : vector<4x512xf32>
    %49 = arith.addf %42, %48 : vector<4x512xf32>
    %c7 = arith.constant 7 : index
    %c0_35 = arith.constant 0 : index
    %c0_36 = arith.constant 0 : index
    %50 = vector.load %arg1[%c7, %c0_35, %c0_36] : memref<27x4x512xf32, #tpu.memory_space<vmem>>, vector<1x4x512xf32>
    %51 = vector.shape_cast %50 : vector<1x4x512xf32> to vector<4x512xf32>
    %c7_37 = arith.constant 7 : index
    %c0_38 = arith.constant 0 : index
    %c0_39 = arith.constant 0 : index
    %52 = vector.load %arg2[%c7_37, %c0_38, %c0_39] : memref<27x1x512xf32, #tpu.memory_space<vmem>>, vector<1x1x512xf32>
    %53 = vector.shape_cast %52 : vector<1x1x512xf32> to vector<1x512xf32>
    %54 = vector.broadcast %53 : vector<1x512xf32> to vector<4x512xf32>
    %55 = arith.mulf %51, %54 : vector<4x512xf32>
    %56 = arith.addf %49, %55 : vector<4x512xf32>
    %c8 = arith.constant 8 : index
    %c0_40 = arith.constant 0 : index
    %c0_41 = arith.constant 0 : index
    %57 = vector.load %arg1[%c8, %c0_40, %c0_41] : memref<27x4x512xf32, #tpu.memory_space<vmem>>, vector<1x4x512xf32>
    %58 = vector.shape_cast %57 : vector<1x4x512xf32> to vector<4x512xf32>
    %c8_42 = arith.constant 8 : index
    %c0_43 = arith.constant 0 : index
    %c0_44 = arith.constant 0 : index
    %59 = vector.load %arg2[%c8_42, %c0_43, %c0_44] : memref<27x1x512xf32, #tpu.memory_space<vmem>>, vector<1x1x512xf32>
    %60 = vector.shape_cast %59 : vector<1x1x512xf32> to vector<1x512xf32>
    %61 = vector.broadcast %60 : vector<1x512xf32> to vector<4x512xf32>
    %62 = arith.mulf %58, %61 : vector<4x512xf32>
    %63 = arith.addf %56, %62 : vector<4x512xf32>
    %c9 = arith.constant 9 : index
    %c0_45 = arith.constant 0 : index
    %c0_46 = arith.constant 0 : index
    %64 = vector.load %arg1[%c9, %c0_45, %c0_46] : memref<27x4x512xf32, #tpu.memory_space<vmem>>, vector<1x4x512xf32>
    %65 = vector.shape_cast %64 : vector<1x4x512xf32> to vector<4x512xf32>
    %c9_47 = arith.constant 9 : index
    %c0_48 = arith.constant 0 : index
    %c0_49 = arith.constant 0 : index
    %66 = vector.load %arg2[%c9_47, %c0_48, %c0_49] : memref<27x1x512xf32, #tpu.memory_space<vmem>>, vector<1x1x512xf32>
    %67 = vector.shape_cast %66 : vector<1x1x512xf32> to vector<1x512xf32>
    %68 = vector.broadcast %67 : vector<1x512xf32> to vector<4x512xf32>
    %69 = arith.mulf %65, %68 : vector<4x512xf32>
    %70 = arith.addf %63, %69 : vector<4x512xf32>
    %c10 = arith.constant 10 : index
    %c0_50 = arith.constant 0 : index
    %c0_51 = arith.constant 0 : index
    %71 = vector.load %arg1[%c10, %c0_50, %c0_51] : memref<27x4x512xf32, #tpu.memory_space<vmem>>, vector<1x4x512xf32>
    %72 = vector.shape_cast %71 : vector<1x4x512xf32> to vector<4x512xf32>
    %c10_52 = arith.constant 10 : index
    %c0_53 = arith.constant 0 : index
    %c0_54 = arith.constant 0 : index
    %73 = vector.load %arg2[%c10_52, %c0_53, %c0_54] : memref<27x1x512xf32, #tpu.memory_space<vmem>>, vector<1x1x512xf32>
    %74 = vector.shape_cast %73 : vector<1x1x512xf32> to vector<1x512xf32>
    %75 = vector.broadcast %74 : vector<1x512xf32> to vector<4x512xf32>
    %76 = arith.mulf %72, %75 : vector<4x512xf32>
    %77 = arith.addf %70, %76 : vector<4x512xf32>
    %c11 = arith.constant 11 : index
    %c0_55 = arith.constant 0 : index
    %c0_56 = arith.constant 0 : index
    %78 = vector.load %arg1[%c11, %c0_55, %c0_56] : memref<27x4x512xf32, #tpu.memory_space<vmem>>, vector<1x4x512xf32>
    %79 = vector.shape_cast %78 : vector<1x4x512xf32> to vector<4x512xf32>
    %c11_57 = arith.constant 11 : index
    %c0_58 = arith.constant 0 : index
    %c0_59 = arith.constant 0 : index
    %80 = vector.load %arg2[%c11_57, %c0_58, %c0_59] : memref<27x1x512xf32, #tpu.memory_space<vmem>>, vector<1x1x512xf32>
    %81 = vector.shape_cast %80 : vector<1x1x512xf32> to vector<1x512xf32>
    %82 = vector.broadcast %81 : vector<1x512xf32> to vector<4x512xf32>
    %83 = arith.mulf %79, %82 : vector<4x512xf32>
    %84 = arith.addf %77, %83 : vector<4x512xf32>
    %c12 = arith.constant 12 : index
    %c0_60 = arith.constant 0 : index
    %c0_61 = arith.constant 0 : index
    %85 = vector.load %arg1[%c12, %c0_60, %c0_61] : memref<27x4x512xf32, #tpu.memory_space<vmem>>, vector<1x4x512xf32>
    %86 = vector.shape_cast %85 : vector<1x4x512xf32> to vector<4x512xf32>
    %c12_62 = arith.constant 12 : index
    %c0_63 = arith.constant 0 : index
    %c0_64 = arith.constant 0 : index
    %87 = vector.load %arg2[%c12_62, %c0_63, %c0_64] : memref<27x1x512xf32, #tpu.memory_space<vmem>>, vector<1x1x512xf32>
    %88 = vector.shape_cast %87 : vector<1x1x512xf32> to vector<1x512xf32>
    %89 = vector.broadcast %88 : vector<1x512xf32> to vector<4x512xf32>
    %90 = arith.mulf %86, %89 : vector<4x512xf32>
    %91 = arith.addf %84, %90 : vector<4x512xf32>
    %c13 = arith.constant 13 : index
    %c0_65 = arith.constant 0 : index
    %c0_66 = arith.constant 0 : index
    %92 = vector.load %arg1[%c13, %c0_65, %c0_66] : memref<27x4x512xf32, #tpu.memory_space<vmem>>, vector<1x4x512xf32>
    %93 = vector.shape_cast %92 : vector<1x4x512xf32> to vector<4x512xf32>
    %c13_67 = arith.constant 13 : index
    %c0_68 = arith.constant 0 : index
    %c0_69 = arith.constant 0 : index
    %94 = vector.load %arg2[%c13_67, %c0_68, %c0_69] : memref<27x1x512xf32, #tpu.memory_space<vmem>>, vector<1x1x512xf32>
    %95 = vector.shape_cast %94 : vector<1x1x512xf32> to vector<1x512xf32>
    %96 = vector.broadcast %95 : vector<1x512xf32> to vector<4x512xf32>
    %97 = arith.mulf %93, %96 : vector<4x512xf32>
    %98 = arith.addf %91, %97 : vector<4x512xf32>
    %c14 = arith.constant 14 : index
    %c0_70 = arith.constant 0 : index
    %c0_71 = arith.constant 0 : index
    %99 = vector.load %arg1[%c14, %c0_70, %c0_71] : memref<27x4x512xf32, #tpu.memory_space<vmem>>, vector<1x4x512xf32>
    %100 = vector.shape_cast %99 : vector<1x4x512xf32> to vector<4x512xf32>
    %c14_72 = arith.constant 14 : index
    %c0_73 = arith.constant 0 : index
    %c0_74 = arith.constant 0 : index
    %101 = vector.load %arg2[%c14_72, %c0_73, %c0_74] : memref<27x1x512xf32, #tpu.memory_space<vmem>>, vector<1x1x512xf32>
    %102 = vector.shape_cast %101 : vector<1x1x512xf32> to vector<1x512xf32>
    %103 = vector.broadcast %102 : vector<1x512xf32> to vector<4x512xf32>
    %104 = arith.mulf %100, %103 : vector<4x512xf32>
    %105 = arith.addf %98, %104 : vector<4x512xf32>
    %c15 = arith.constant 15 : index
    %c0_75 = arith.constant 0 : index
    %c0_76 = arith.constant 0 : index
    %106 = vector.load %arg1[%c15, %c0_75, %c0_76] : memref<27x4x512xf32, #tpu.memory_space<vmem>>, vector<1x4x512xf32>
    %107 = vector.shape_cast %106 : vector<1x4x512xf32> to vector<4x512xf32>
    %c15_77 = arith.constant 15 : index
    %c0_78 = arith.constant 0 : index
    %c0_79 = arith.constant 0 : index
    %108 = vector.load %arg2[%c15_77, %c0_78, %c0_79] : memref<27x1x512xf32, #tpu.memory_space<vmem>>, vector<1x1x512xf32>
    %109 = vector.shape_cast %108 : vector<1x1x512xf32> to vector<1x512xf32>
    %110 = vector.broadcast %109 : vector<1x512xf32> to vector<4x512xf32>
    %111 = arith.mulf %107, %110 : vector<4x512xf32>
    %112 = arith.addf %105, %111 : vector<4x512xf32>
    %c16 = arith.constant 16 : index
    %c0_80 = arith.constant 0 : index
    %c0_81 = arith.constant 0 : index
    %113 = vector.load %arg1[%c16, %c0_80, %c0_81] : memref<27x4x512xf32, #tpu.memory_space<vmem>>, vector<1x4x512xf32>
    %114 = vector.shape_cast %113 : vector<1x4x512xf32> to vector<4x512xf32>
    %c16_82 = arith.constant 16 : index
    %c0_83 = arith.constant 0 : index
    %c0_84 = arith.constant 0 : index
    %115 = vector.load %arg2[%c16_82, %c0_83, %c0_84] : memref<27x1x512xf32, #tpu.memory_space<vmem>>, vector<1x1x512xf32>
    %116 = vector.shape_cast %115 : vector<1x1x512xf32> to vector<1x512xf32>
    %117 = vector.broadcast %116 : vector<1x512xf32> to vector<4x512xf32>
    %118 = arith.mulf %114, %117 : vector<4x512xf32>
    %119 = arith.addf %112, %118 : vector<4x512xf32>
    %c17 = arith.constant 17 : index
    %c0_85 = arith.constant 0 : index
    %c0_86 = arith.constant 0 : index
    %120 = vector.load %arg1[%c17, %c0_85, %c0_86] : memref<27x4x512xf32, #tpu.memory_space<vmem>>, vector<1x4x512xf32>
    %121 = vector.shape_cast %120 : vector<1x4x512xf32> to vector<4x512xf32>
    %c17_87 = arith.constant 17 : index
    %c0_88 = arith.constant 0 : index
    %c0_89 = arith.constant 0 : index
    %122 = vector.load %arg2[%c17_87, %c0_88, %c0_89] : memref<27x1x512xf32, #tpu.memory_space<vmem>>, vector<1x1x512xf32>
    %123 = vector.shape_cast %122 : vector<1x1x512xf32> to vector<1x512xf32>
    %124 = vector.broadcast %123 : vector<1x512xf32> to vector<4x512xf32>
    %125 = arith.mulf %121, %124 : vector<4x512xf32>
    %126 = arith.addf %119, %125 : vector<4x512xf32>
    %c18 = arith.constant 18 : index
    %c0_90 = arith.constant 0 : index
    %c0_91 = arith.constant 0 : index
    %127 = vector.load %arg1[%c18, %c0_90, %c0_91] : memref<27x4x512xf32, #tpu.memory_space<vmem>>, vector<1x4x512xf32>
    %128 = vector.shape_cast %127 : vector<1x4x512xf32> to vector<4x512xf32>
    %c18_92 = arith.constant 18 : index
    %c0_93 = arith.constant 0 : index
    %c0_94 = arith.constant 0 : index
    %129 = vector.load %arg2[%c18_92, %c0_93, %c0_94] : memref<27x1x512xf32, #tpu.memory_space<vmem>>, vector<1x1x512xf32>
    %130 = vector.shape_cast %129 : vector<1x1x512xf32> to vector<1x512xf32>
    %131 = vector.broadcast %130 : vector<1x512xf32> to vector<4x512xf32>
    %132 = arith.mulf %128, %131 : vector<4x512xf32>
    %133 = arith.addf %126, %132 : vector<4x512xf32>
    %c19 = arith.constant 19 : index
    %c0_95 = arith.constant 0 : index
    %c0_96 = arith.constant 0 : index
    %134 = vector.load %arg1[%c19, %c0_95, %c0_96] : memref<27x4x512xf32, #tpu.memory_space<vmem>>, vector<1x4x512xf32>
    %135 = vector.shape_cast %134 : vector<1x4x512xf32> to vector<4x512xf32>
    %c19_97 = arith.constant 19 : index
    %c0_98 = arith.constant 0 : index
    %c0_99 = arith.constant 0 : index
    %136 = vector.load %arg2[%c19_97, %c0_98, %c0_99] : memref<27x1x512xf32, #tpu.memory_space<vmem>>, vector<1x1x512xf32>
    %137 = vector.shape_cast %136 : vector<1x1x512xf32> to vector<1x512xf32>
    %138 = vector.broadcast %137 : vector<1x512xf32> to vector<4x512xf32>
    %139 = arith.mulf %135, %138 : vector<4x512xf32>
    %140 = arith.addf %133, %139 : vector<4x512xf32>
    %c20 = arith.constant 20 : index
    %c0_100 = arith.constant 0 : index
    %c0_101 = arith.constant 0 : index
    %141 = vector.load %arg1[%c20, %c0_100, %c0_101] : memref<27x4x512xf32, #tpu.memory_space<vmem>>, vector<1x4x512xf32>
    %142 = vector.shape_cast %141 : vector<1x4x512xf32> to vector<4x512xf32>
    %c20_102 = arith.constant 20 : index
    %c0_103 = arith.constant 0 : index
    %c0_104 = arith.constant 0 : index
    %143 = vector.load %arg2[%c20_102, %c0_103, %c0_104] : memref<27x1x512xf32, #tpu.memory_space<vmem>>, vector<1x1x512xf32>
    %144 = vector.shape_cast %143 : vector<1x1x512xf32> to vector<1x512xf32>
    %145 = vector.broadcast %144 : vector<1x512xf32> to vector<4x512xf32>
    %146 = arith.mulf %142, %145 : vector<4x512xf32>
    %147 = arith.addf %140, %146 : vector<4x512xf32>
    %c21 = arith.constant 21 : index
    %c0_105 = arith.constant 0 : index
    %c0_106 = arith.constant 0 : index
    %148 = vector.load %arg1[%c21, %c0_105, %c0_106] : memref<27x4x512xf32, #tpu.memory_space<vmem>>, vector<1x4x512xf32>
    %149 = vector.shape_cast %148 : vector<1x4x512xf32> to vector<4x512xf32>
    %c21_107 = arith.constant 21 : index
    %c0_108 = arith.constant 0 : index
    %c0_109 = arith.constant 0 : index
    %150 = vector.load %arg2[%c21_107, %c0_108, %c0_109] : memref<27x1x512xf32, #tpu.memory_space<vmem>>, vector<1x1x512xf32>
    %151 = vector.shape_cast %150 : vector<1x1x512xf32> to vector<1x512xf32>
    %152 = vector.broadcast %151 : vector<1x512xf32> to vector<4x512xf32>
    %153 = arith.mulf %149, %152 : vector<4x512xf32>
    %154 = arith.addf %147, %153 : vector<4x512xf32>
    %c22 = arith.constant 22 : index
    %c0_110 = arith.constant 0 : index
    %c0_111 = arith.constant 0 : index
    %155 = vector.load %arg1[%c22, %c0_110, %c0_111] : memref<27x4x512xf32, #tpu.memory_space<vmem>>, vector<1x4x512xf32>
    %156 = vector.shape_cast %155 : vector<1x4x512xf32> to vector<4x512xf32>
    %c22_112 = arith.constant 22 : index
    %c0_113 = arith.constant 0 : index
    %c0_114 = arith.constant 0 : index
    %157 = vector.load %arg2[%c22_112, %c0_113, %c0_114] : memref<27x1x512xf32, #tpu.memory_space<vmem>>, vector<1x1x512xf32>
    %158 = vector.shape_cast %157 : vector<1x1x512xf32> to vector<1x512xf32>
    %159 = vector.broadcast %158 : vector<1x512xf32> to vector<4x512xf32>
    %160 = arith.mulf %156, %159 : vector<4x512xf32>
    %161 = arith.addf %154, %160 : vector<4x512xf32>
    %c23 = arith.constant 23 : index
    %c0_115 = arith.constant 0 : index
    %c0_116 = arith.constant 0 : index
    %162 = vector.load %arg1[%c23, %c0_115, %c0_116] : memref<27x4x512xf32, #tpu.memory_space<vmem>>, vector<1x4x512xf32>
    %163 = vector.shape_cast %162 : vector<1x4x512xf32> to vector<4x512xf32>
    %c23_117 = arith.constant 23 : index
    %c0_118 = arith.constant 0 : index
    %c0_119 = arith.constant 0 : index
    %164 = vector.load %arg2[%c23_117, %c0_118, %c0_119] : memref<27x1x512xf32, #tpu.memory_space<vmem>>, vector<1x1x512xf32>
    %165 = vector.shape_cast %164 : vector<1x1x512xf32> to vector<1x512xf32>
    %166 = vector.broadcast %165 : vector<1x512xf32> to vector<4x512xf32>
    %167 = arith.mulf %163, %166 : vector<4x512xf32>
    %168 = arith.addf %161, %167 : vector<4x512xf32>
    %c24 = arith.constant 24 : index
    %c0_120 = arith.constant 0 : index
    %c0_121 = arith.constant 0 : index
    %169 = vector.load %arg1[%c24, %c0_120, %c0_121] : memref<27x4x512xf32, #tpu.memory_space<vmem>>, vector<1x4x512xf32>
    %170 = vector.shape_cast %169 : vector<1x4x512xf32> to vector<4x512xf32>
    %c24_122 = arith.constant 24 : index
    %c0_123 = arith.constant 0 : index
    %c0_124 = arith.constant 0 : index
    %171 = vector.load %arg2[%c24_122, %c0_123, %c0_124] : memref<27x1x512xf32, #tpu.memory_space<vmem>>, vector<1x1x512xf32>
    %172 = vector.shape_cast %171 : vector<1x1x512xf32> to vector<1x512xf32>
    %173 = vector.broadcast %172 : vector<1x512xf32> to vector<4x512xf32>
    %174 = arith.mulf %170, %173 : vector<4x512xf32>
    %175 = arith.addf %168, %174 : vector<4x512xf32>
    %c25 = arith.constant 25 : index
    %c0_125 = arith.constant 0 : index
    %c0_126 = arith.constant 0 : index
    %176 = vector.load %arg1[%c25, %c0_125, %c0_126] : memref<27x4x512xf32, #tpu.memory_space<vmem>>, vector<1x4x512xf32>
    %177 = vector.shape_cast %176 : vector<1x4x512xf32> to vector<4x512xf32>
    %c25_127 = arith.constant 25 : index
    %c0_128 = arith.constant 0 : index
    %c0_129 = arith.constant 0 : index
    %178 = vector.load %arg2[%c25_127, %c0_128, %c0_129] : memref<27x1x512xf32, #tpu.memory_space<vmem>>, vector<1x1x512xf32>
    %179 = vector.shape_cast %178 : vector<1x1x512xf32> to vector<1x512xf32>
    %180 = vector.broadcast %179 : vector<1x512xf32> to vector<4x512xf32>
    %181 = arith.mulf %177, %180 : vector<4x512xf32>
    %182 = arith.addf %175, %181 : vector<4x512xf32>
    %c26 = arith.constant 26 : index
    %c0_130 = arith.constant 0 : index
    %c0_131 = arith.constant 0 : index
    %183 = vector.load %arg1[%c26, %c0_130, %c0_131] : memref<27x4x512xf32, #tpu.memory_space<vmem>>, vector<1x4x512xf32>
    %184 = vector.shape_cast %183 : vector<1x4x512xf32> to vector<4x512xf32>
    %c26_132 = arith.constant 26 : index
    %c0_133 = arith.constant 0 : index
    %c0_134 = arith.constant 0 : index
    %185 = vector.load %arg2[%c26_132, %c0_133, %c0_134] : memref<27x1x512xf32, #tpu.memory_space<vmem>>, vector<1x1x512xf32>
    %186 = vector.shape_cast %185 : vector<1x1x512xf32> to vector<1x512xf32>
    %187 = vector.broadcast %186 : vector<1x512xf32> to vector<4x512xf32>
    %188 = arith.mulf %184, %187 : vector<4x512xf32>
    %189 = arith.addf %182, %188 : vector<4x512xf32>
    %c0_135 = arith.constant 0 : index
    %c0_136 = arith.constant 0 : index
    %190 = vector.load %arg3[%c0_135, %c0_136] : memref<1x512xf32, #tpu.memory_space<vmem>>, vector<1x512xf32>
    %191 = vector.broadcast %190 : vector<1x512xf32> to vector<4x512xf32>
    %192 = arith.addf %189, %191 : vector<4x512xf32>
    %cst_137 = arith.constant 0.000000e+00 : f32
    %193 = vector.broadcast %cst_137 : f32 to vector<4x512xf32>
    %194 = arith.maximumf %192, %193 : vector<4x512xf32>
    %195 = tpu.iota {dimensions = array<i32: 0>} : vector<4x1xi32>
    %c2_i32 = arith.constant 2 : i32
    %196 = vector.broadcast %c2_i32 : i32 to vector<4x1xi32>
    %197 = arith.cmpi sge, %195, %196 : vector<4x1xi32>
    %198 = arith.truncf %194 : vector<4x512xf32> to vector<4x512xbf16>
    %c0_138 = arith.constant 0 : index
    %c0_139 = arith.constant 0 : index
    %199 = vector.load %arg4[%c0_138, %c0_139] : memref<512x64xbf16, #tpu.memory_space<vmem>>, vector<512x64xbf16>
    %cst_140 = arith.constant dense<0.000000e+00> : vector<4x64xf32>
    %200 = tpu.matmul %198, %199, %cst_140 {dimension_numbers = #tpu.dot_dimension_numbers<[1], [0], [0], [1], [0, 0, 1, 1], [], []>} : vector<4x512xbf16>, vector<512x64xbf16>, vector<4x64xf32> -> vector<4x64xf32>
    %c0_141 = arith.constant 0 : index
    %c0_142 = arith.constant 0 : index
    %201 = vector.load %arg5[%c0_141, %c0_142] : memref<1x64xf32, #tpu.memory_space<vmem>>, vector<1x64xf32>
    %202 = vector.broadcast %201 : vector<1x64xf32> to vector<4x64xf32>
    %203 = arith.addf %200, %202 : vector<4x64xf32>
    %c0_143 = arith.constant 0 : index
    %c0_144 = arith.constant 0 : index
    %204 = vector.load %arg6[%c0_143, %c0_144] : memref<1x64xf32, #tpu.memory_space<vmem>>, vector<1x64xf32>
    %c0_145 = arith.constant 0 : index
    %c0_146 = arith.constant 0 : index
    %205 = vector.load %arg7[%c0_145, %c0_146] : memref<1x64xf32, #tpu.memory_space<vmem>>, vector<1x64xf32>
    %cst_147 = arith.constant 0.000000e+00 : f32
    %206 = vector.shape_cast %197 : vector<4x1xi1> to vector<4x1xi1>
    %207 = vector.broadcast %206 : vector<4x1xi1> to vector<4x64xi1>
    %208 = vector.broadcast %cst_147 : f32 to vector<4x64xf32>
    %209 = arith.select %207, %208, %203 : vector<4x64xi1>, vector<4x64xf32>
    %cst_148 = arith.constant dense<0.000000e+00> : vector<64xf32>
    %210 = vector.multi_reduction <add>, %209, %cst_148 [0] : vector<4x64xf32> to vector<64xf32>
    %211 = vector.shape_cast %210 : vector<64xf32> to vector<1x64xf32>
    %cst_149 = arith.constant 5.000000e-01 : f32
    %212 = vector.broadcast %cst_149 : f32 to vector<1x64xf32>
    %213 = arith.mulf %211, %212 : vector<1x64xf32>
    %cst_150 = arith.constant 0.000000e+00 : f32
    %214 = vector.shape_cast %197 : vector<4x1xi1> to vector<4x1xi1>
    %215 = vector.broadcast %214 : vector<4x1xi1> to vector<4x64xi1>
    %216 = vector.broadcast %cst_150 : f32 to vector<4x64xf32>
    %217 = arith.select %215, %203, %216 : vector<4x64xi1>, vector<4x64xf32>
    %cst_151 = arith.constant dense<0.000000e+00> : vector<64xf32>
    %218 = vector.multi_reduction <add>, %217, %cst_151 [0] : vector<4x64xf32> to vector<64xf32>
    %219 = vector.shape_cast %218 : vector<64xf32> to vector<1x64xf32>
    %cst_152 = arith.constant 5.000000e-01 : f32
    %220 = vector.broadcast %cst_152 : f32 to vector<1x64xf32>
    %221 = arith.mulf %219, %220 : vector<1x64xf32>
    %222 = vector.shape_cast %197 : vector<4x1xi1> to vector<4x1xi1>
    %223 = vector.broadcast %222 : vector<4x1xi1> to vector<4x64xi1>
    %224 = vector.shape_cast %221 : vector<1x64xf32> to vector<1x64xf32>
    %225 = vector.broadcast %224 : vector<1x64xf32> to vector<4x64xf32>
    %226 = vector.shape_cast %213 : vector<1x64xf32> to vector<1x64xf32>
    %227 = vector.broadcast %226 : vector<1x64xf32> to vector<4x64xf32>
    %228 = arith.select %223, %225, %227 : vector<4x64xi1>, vector<4x64xf32>
    %229 = arith.subf %203, %228 : vector<4x64xf32>
    %230 = arith.mulf %229, %229 : vector<4x64xf32>
    %cst_153 = arith.constant 0.000000e+00 : f32
    %231 = vector.shape_cast %197 : vector<4x1xi1> to vector<4x1xi1>
    %232 = vector.broadcast %231 : vector<4x1xi1> to vector<4x64xi1>
    %233 = vector.broadcast %cst_153 : f32 to vector<4x64xf32>
    %234 = arith.select %232, %233, %230 : vector<4x64xi1>, vector<4x64xf32>
    %cst_154 = arith.constant dense<0.000000e+00> : vector<64xf32>
    %235 = vector.multi_reduction <add>, %234, %cst_154 [0] : vector<4x64xf32> to vector<64xf32>
    %236 = vector.shape_cast %235 : vector<64xf32> to vector<1x64xf32>
    %cst_155 = arith.constant 5.000000e-01 : f32
    %237 = vector.broadcast %cst_155 : f32 to vector<1x64xf32>
    %238 = arith.mulf %236, %237 : vector<1x64xf32>
    %239 = arith.mulf %229, %229 : vector<4x64xf32>
    %cst_156 = arith.constant 0.000000e+00 : f32
    %240 = vector.shape_cast %197 : vector<4x1xi1> to vector<4x1xi1>
    %241 = vector.broadcast %240 : vector<4x1xi1> to vector<4x64xi1>
    %242 = vector.broadcast %cst_156 : f32 to vector<4x64xf32>
    %243 = arith.select %241, %239, %242 : vector<4x64xi1>, vector<4x64xf32>
    %cst_157 = arith.constant dense<0.000000e+00> : vector<64xf32>
    %244 = vector.multi_reduction <add>, %243, %cst_157 [0] : vector<4x64xf32> to vector<64xf32>
    %245 = vector.shape_cast %244 : vector<64xf32> to vector<1x64xf32>
    %cst_158 = arith.constant 5.000000e-01 : f32
    %246 = vector.broadcast %cst_158 : f32 to vector<1x64xf32>
    %247 = arith.mulf %245, %246 : vector<1x64xf32>
    %248 = vector.shape_cast %197 : vector<4x1xi1> to vector<4x1xi1>
    %249 = vector.broadcast %248 : vector<4x1xi1> to vector<4x64xi1>
    %250 = vector.shape_cast %247 : vector<1x64xf32> to vector<1x64xf32>
    %251 = vector.broadcast %250 : vector<1x64xf32> to vector<4x64xf32>
    %252 = vector.shape_cast %238 : vector<1x64xf32> to vector<1x64xf32>
    %253 = vector.broadcast %252 : vector<1x64xf32> to vector<4x64xf32>
    %254 = arith.select %249, %251, %253 : vector<4x64xi1>, vector<4x64xf32>
    %cst_159 = arith.constant 9.99999974E-6 : f32
    %255 = vector.broadcast %cst_159 : f32 to vector<4x64xf32>
    %256 = arith.addf %254, %255 : vector<4x64xf32>
    %257 = math.rsqrt %256 : vector<4x64xf32>
    %258 = vector.broadcast %204 : vector<1x64xf32> to vector<4x64xf32>
    %259 = arith.mulf %258, %257 : vector<4x64xf32>
    %260 = arith.mulf %229, %259 : vector<4x64xf32>
    %261 = vector.broadcast %205 : vector<1x64xf32> to vector<4x64xf32>
    %262 = arith.addf %260, %261 : vector<4x64xf32>
    %cst_160 = arith.constant 0.000000e+00 : f32
    %263 = vector.broadcast %cst_160 : f32 to vector<4x64xf32>
    %264 = arith.cmpf oge, %262, %263 : vector<4x64xf32>
    %cst_161 = arith.constant 0.00999999977 : f32
    %265 = vector.broadcast %cst_161 : f32 to vector<4x64xf32>
    %266 = arith.mulf %265, %262 : vector<4x64xf32>
    %267 = arith.select %264, %262, %266 : vector<4x64xi1>, vector<4x64xf32>
    %268 = arith.truncf %267 : vector<4x64xf32> to vector<4x64xbf16>
    %c0_162 = arith.constant 0 : index
    %c0_163 = arith.constant 0 : index
    %269 = vector.load %arg8[%c0_162, %c0_163] : memref<64x32xbf16, #tpu.memory_space<vmem>>, vector<64x32xbf16>
    %cst_164 = arith.constant dense<0.000000e+00> : vector<4x32xf32>
    %270 = tpu.matmul %268, %269, %cst_164 {dimension_numbers = #tpu.dot_dimension_numbers<[1], [0], [0], [1], [0, 0, 1, 1], [], []>} : vector<4x64xbf16>, vector<64x32xbf16>, vector<4x32xf32> -> vector<4x32xf32>
    %c0_165 = arith.constant 0 : index
    %c0_166 = arith.constant 0 : index
    %271 = vector.load %arg9[%c0_165, %c0_166] : memref<1x32xf32, #tpu.memory_space<vmem>>, vector<1x32xf32>
    %272 = vector.broadcast %271 : vector<1x32xf32> to vector<4x32xf32>
    %273 = arith.addf %270, %272 : vector<4x32xf32>
    %274 = arith.truncf %273 : vector<4x32xf32> to vector<4x32xbf16>
    %c0_167 = arith.constant 0 : index
    %c0_168 = arith.constant 0 : index
    %275 = vector.load %arg10[%c0_167, %c0_168] : memref<32x64xbf16, #tpu.memory_space<vmem>>, vector<32x64xbf16>
    %cst_169 = arith.constant dense<0.000000e+00> : vector<4x64xf32>
    %276 = tpu.matmul %274, %275, %cst_169 {dimension_numbers = #tpu.dot_dimension_numbers<[1], [0], [0], [1], [0, 0, 1, 1], [], []>} : vector<4x32xbf16>, vector<32x64xbf16>, vector<4x64xf32> -> vector<4x64xf32>
    %c0_170 = arith.constant 0 : index
    %c0_171 = arith.constant 0 : index
    %277 = vector.load %arg11[%c0_170, %c0_171] : memref<1x64xf32, #tpu.memory_space<vmem>>, vector<1x64xf32>
    %278 = vector.broadcast %277 : vector<1x64xf32> to vector<4x64xf32>
    %279 = arith.addf %276, %278 : vector<4x64xf32>
    %c0_172 = arith.constant 0 : index
    %c0_173 = arith.constant 0 : index
    %280 = vector.load %arg12[%c0_172, %c0_173] : memref<1x64xf32, #tpu.memory_space<vmem>>, vector<1x64xf32>
    %c0_174 = arith.constant 0 : index
    %c0_175 = arith.constant 0 : index
    %281 = vector.load %arg13[%c0_174, %c0_175] : memref<1x64xf32, #tpu.memory_space<vmem>>, vector<1x64xf32>
    %cst_176 = arith.constant 0.000000e+00 : f32
    %282 = vector.shape_cast %197 : vector<4x1xi1> to vector<4x1xi1>
    %283 = vector.broadcast %282 : vector<4x1xi1> to vector<4x64xi1>
    %284 = vector.broadcast %cst_176 : f32 to vector<4x64xf32>
    %285 = arith.select %283, %284, %279 : vector<4x64xi1>, vector<4x64xf32>
    %cst_177 = arith.constant dense<0.000000e+00> : vector<64xf32>
    %286 = vector.multi_reduction <add>, %285, %cst_177 [0] : vector<4x64xf32> to vector<64xf32>
    %287 = vector.shape_cast %286 : vector<64xf32> to vector<1x64xf32>
    %cst_178 = arith.constant 5.000000e-01 : f32
    %288 = vector.broadcast %cst_178 : f32 to vector<1x64xf32>
    %289 = arith.mulf %287, %288 : vector<1x64xf32>
    %cst_179 = arith.constant 0.000000e+00 : f32
    %290 = vector.shape_cast %197 : vector<4x1xi1> to vector<4x1xi1>
    %291 = vector.broadcast %290 : vector<4x1xi1> to vector<4x64xi1>
    %292 = vector.broadcast %cst_179 : f32 to vector<4x64xf32>
    %293 = arith.select %291, %279, %292 : vector<4x64xi1>, vector<4x64xf32>
    %cst_180 = arith.constant dense<0.000000e+00> : vector<64xf32>
    %294 = vector.multi_reduction <add>, %293, %cst_180 [0] : vector<4x64xf32> to vector<64xf32>
    %295 = vector.shape_cast %294 : vector<64xf32> to vector<1x64xf32>
    %cst_181 = arith.constant 5.000000e-01 : f32
    %296 = vector.broadcast %cst_181 : f32 to vector<1x64xf32>
    %297 = arith.mulf %295, %296 : vector<1x64xf32>
    %298 = vector.shape_cast %197 : vector<4x1xi1> to vector<4x1xi1>
    %299 = vector.broadcast %298 : vector<4x1xi1> to vector<4x64xi1>
    %300 = vector.shape_cast %297 : vector<1x64xf32> to vector<1x64xf32>
    %301 = vector.broadcast %300 : vector<1x64xf32> to vector<4x64xf32>
    %302 = vector.shape_cast %289 : vector<1x64xf32> to vector<1x64xf32>
    %303 = vector.broadcast %302 : vector<1x64xf32> to vector<4x64xf32>
    %304 = arith.select %299, %301, %303 : vector<4x64xi1>, vector<4x64xf32>
    %305 = arith.subf %279, %304 : vector<4x64xf32>
    %306 = arith.mulf %305, %305 : vector<4x64xf32>
    %cst_182 = arith.constant 0.000000e+00 : f32
    %307 = vector.shape_cast %197 : vector<4x1xi1> to vector<4x1xi1>
    %308 = vector.broadcast %307 : vector<4x1xi1> to vector<4x64xi1>
    %309 = vector.broadcast %cst_182 : f32 to vector<4x64xf32>
    %310 = arith.select %308, %309, %306 : vector<4x64xi1>, vector<4x64xf32>
    %cst_183 = arith.constant dense<0.000000e+00> : vector<64xf32>
    %311 = vector.multi_reduction <add>, %310, %cst_183 [0] : vector<4x64xf32> to vector<64xf32>
    %312 = vector.shape_cast %311 : vector<64xf32> to vector<1x64xf32>
    %cst_184 = arith.constant 5.000000e-01 : f32
    %313 = vector.broadcast %cst_184 : f32 to vector<1x64xf32>
    %314 = arith.mulf %312, %313 : vector<1x64xf32>
    %315 = arith.mulf %305, %305 : vector<4x64xf32>
    %cst_185 = arith.constant 0.000000e+00 : f32
    %316 = vector.shape_cast %197 : vector<4x1xi1> to vector<4x1xi1>
    %317 = vector.broadcast %316 : vector<4x1xi1> to vector<4x64xi1>
    %318 = vector.broadcast %cst_185 : f32 to vector<4x64xf32>
    %319 = arith.select %317, %315, %318 : vector<4x64xi1>, vector<4x64xf32>
    %cst_186 = arith.constant dense<0.000000e+00> : vector<64xf32>
    %320 = vector.multi_reduction <add>, %319, %cst_186 [0] : vector<4x64xf32> to vector<64xf32>
    %321 = vector.shape_cast %320 : vector<64xf32> to vector<1x64xf32>
    %cst_187 = arith.constant 5.000000e-01 : f32
    %322 = vector.broadcast %cst_187 : f32 to vector<1x64xf32>
    %323 = arith.mulf %321, %322 : vector<1x64xf32>
    %324 = vector.shape_cast %197 : vector<4x1xi1> to vector<4x1xi1>
    %325 = vector.broadcast %324 : vector<4x1xi1> to vector<4x64xi1>
    %326 = vector.shape_cast %323 : vector<1x64xf32> to vector<1x64xf32>
    %327 = vector.broadcast %326 : vector<1x64xf32> to vector<4x64xf32>
    %328 = vector.shape_cast %314 : vector<1x64xf32> to vector<1x64xf32>
    %329 = vector.broadcast %328 : vector<1x64xf32> to vector<4x64xf32>
    %330 = arith.select %325, %327, %329 : vector<4x64xi1>, vector<4x64xf32>
    %cst_188 = arith.constant 9.99999974E-6 : f32
    %331 = vector.broadcast %cst_188 : f32 to vector<4x64xf32>
    %332 = arith.addf %330, %331 : vector<4x64xf32>
    %333 = math.rsqrt %332 : vector<4x64xf32>
    %334 = vector.broadcast %280 : vector<1x64xf32> to vector<4x64xf32>
    %335 = arith.mulf %334, %333 : vector<4x64xf32>
    %336 = arith.mulf %305, %335 : vector<4x64xf32>
    %337 = vector.broadcast %281 : vector<1x64xf32> to vector<4x64xf32>
    %338 = arith.addf %336, %337 : vector<4x64xf32>
    %cst_189 = arith.constant 0.000000e+00 : f32
    %339 = vector.broadcast %cst_189 : f32 to vector<4x64xf32>
    %340 = arith.cmpf oge, %338, %339 : vector<4x64xf32>
    %cst_190 = arith.constant 0.00999999977 : f32
    %341 = vector.broadcast %cst_190 : f32 to vector<4x64xf32>
    %342 = arith.mulf %341, %338 : vector<4x64xf32>
    %343 = arith.select %340, %338, %342 : vector<4x64xi1>, vector<4x64xf32>
    %344 = arith.truncf %343 : vector<4x64xf32> to vector<4x64xbf16>
    %c0_191 = arith.constant 0 : index
    %c0_192 = arith.constant 0 : index
    %345 = vector.load %arg14[%c0_191, %c0_192] : memref<64x32xbf16, #tpu.memory_space<vmem>>, vector<64x32xbf16>
    %cst_193 = arith.constant dense<0.000000e+00> : vector<4x32xf32>
    %346 = tpu.matmul %344, %345, %cst_193 {dimension_numbers = #tpu.dot_dimension_numbers<[1], [0], [0], [1], [0, 0, 1, 1], [], []>} : vector<4x64xbf16>, vector<64x32xbf16>, vector<4x32xf32> -> vector<4x32xf32>
    %c0_194 = arith.constant 0 : index
    %c0_195 = arith.constant 0 : index
    %347 = vector.load %arg15[%c0_194, %c0_195] : memref<1x32xf32, #tpu.memory_space<vmem>>, vector<1x32xf32>
    %348 = vector.broadcast %347 : vector<1x32xf32> to vector<4x32xf32>
    %349 = arith.addf %346, %348 : vector<4x32xf32>
    %350 = vector.extract_strided_slice %349 {offsets = [0, 0], sizes = [2, 32], strides = [1, 1]} : vector<4x32xf32> to vector<2x32xf32>
    %351 = vector.extract_strided_slice %273 {offsets = [2, 0], sizes = [2, 32], strides = [1, 1]} : vector<4x32xf32> to vector<2x32xf32>
    %352 = arith.mulf %350, %350 : vector<2x32xf32>
    %cst_196 = arith.constant dense<0.000000e+00> : vector<2xf32>
    %353 = vector.multi_reduction <add>, %352, %cst_196 [1] : vector<2x32xf32> to vector<2xf32>
    %354 = vector.shape_cast %353 : vector<2xf32> to vector<2x1xf32>
    %cst_197 = arith.constant 1.000000e-24 : f32
    %355 = vector.broadcast %cst_197 : f32 to vector<2x1xf32>
    %356 = arith.maximumf %354, %355 : vector<2x1xf32>
    %357 = math.rsqrt %356 : vector<2x1xf32>
    %358 = arith.mulf %351, %351 : vector<2x32xf32>
    %cst_198 = arith.constant dense<0.000000e+00> : vector<2xf32>
    %359 = vector.multi_reduction <add>, %358, %cst_198 [1] : vector<2x32xf32> to vector<2xf32>
    %360 = vector.shape_cast %359 : vector<2xf32> to vector<2x1xf32>
    %cst_199 = arith.constant 1.000000e-24 : f32
    %361 = vector.broadcast %cst_199 : f32 to vector<2x1xf32>
    %362 = arith.maximumf %360, %361 : vector<2x1xf32>
    %363 = math.rsqrt %362 : vector<2x1xf32>
    %364 = arith.mulf %350, %351 : vector<2x32xf32>
    %cst_200 = arith.constant dense<0.000000e+00> : vector<2xf32>
    %365 = vector.multi_reduction <add>, %364, %cst_200 [1] : vector<2x32xf32> to vector<2xf32>
    %366 = vector.shape_cast %365 : vector<2xf32> to vector<2x1xf32>
    %367 = arith.mulf %366, %357 : vector<2x1xf32>
    %368 = arith.mulf %367, %363 : vector<2x1xf32>
    %cst_201 = arith.constant 2.000000e+00 : f32
    %369 = vector.broadcast %cst_201 : f32 to vector<2x1xf32>
    %370 = arith.mulf %369, %368 : vector<2x1xf32>
    %cst_202 = arith.constant 2.000000e+00 : f32
    %371 = vector.broadcast %cst_202 : f32 to vector<2x1xf32>
    %372 = arith.subf %371, %370 : vector<2x1xf32>
    %373 = vector.extract_strided_slice %349 {offsets = [2, 0], sizes = [2, 32], strides = [1, 1]} : vector<4x32xf32> to vector<2x32xf32>
    %374 = vector.extract_strided_slice %273 {offsets = [0, 0], sizes = [2, 32], strides = [1, 1]} : vector<4x32xf32> to vector<2x32xf32>
    %375 = arith.mulf %373, %373 : vector<2x32xf32>
    %cst_203 = arith.constant dense<0.000000e+00> : vector<2xf32>
    %376 = vector.multi_reduction <add>, %375, %cst_203 [1] : vector<2x32xf32> to vector<2xf32>
    %377 = vector.shape_cast %376 : vector<2xf32> to vector<2x1xf32>
    %cst_204 = arith.constant 1.000000e-24 : f32
    %378 = vector.broadcast %cst_204 : f32 to vector<2x1xf32>
    %379 = arith.maximumf %377, %378 : vector<2x1xf32>
    %380 = math.rsqrt %379 : vector<2x1xf32>
    %381 = arith.mulf %374, %374 : vector<2x32xf32>
    %cst_205 = arith.constant dense<0.000000e+00> : vector<2xf32>
    %382 = vector.multi_reduction <add>, %381, %cst_205 [1] : vector<2x32xf32> to vector<2xf32>
    %383 = vector.shape_cast %382 : vector<2xf32> to vector<2x1xf32>
    %cst_206 = arith.constant 1.000000e-24 : f32
    %384 = vector.broadcast %cst_206 : f32 to vector<2x1xf32>
    %385 = arith.maximumf %383, %384 : vector<2x1xf32>
    %386 = math.rsqrt %385 : vector<2x1xf32>
    %387 = arith.mulf %373, %374 : vector<2x32xf32>
    %cst_207 = arith.constant dense<0.000000e+00> : vector<2xf32>
    %388 = vector.multi_reduction <add>, %387, %cst_207 [1] : vector<2x32xf32> to vector<2xf32>
    %389 = vector.shape_cast %388 : vector<2xf32> to vector<2x1xf32>
    %390 = arith.mulf %389, %380 : vector<2x1xf32>
    %391 = arith.mulf %390, %386 : vector<2x1xf32>
    %cst_208 = arith.constant 2.000000e+00 : f32
    %392 = vector.broadcast %cst_208 : f32 to vector<2x1xf32>
    %393 = arith.mulf %392, %391 : vector<2x1xf32>
    %cst_209 = arith.constant 2.000000e+00 : f32
    %394 = vector.broadcast %cst_209 : f32 to vector<2x1xf32>
    %395 = arith.subf %394, %393 : vector<2x1xf32>
    %396 = arith.addf %372, %395 : vector<2x1xf32>
    %397 = vector.shape_cast %396 : vector<2x1xf32> to vector<1x2x1xf32>
    %cst_210 = arith.constant dense<0.000000e+00> : vector<1xf32>
    %398 = vector.multi_reduction <add>, %397, %cst_210 [1, 2] : vector<1x2x1xf32> to vector<1xf32>
    %399 = vector.shape_cast %398 : vector<1xf32> to vector<1x1x1xf32>
    %400 = vector.extract %399[0, 0, 0] : f32 from vector<1x1x1xf32>
    %cst_211 = arith.constant 2.000000e+00 : f32
    %401 = arith.divf %400, %cst_211 : f32
    %402 = vector.broadcast %401 : f32 to vector<1x1xf32>
    %c0_212 = arith.constant 0 : index
    %c0_213 = arith.constant 0 : index
    %403 = vector.load %arg16[%c0_212, %c0_213] : memref<1x1xf32, #tpu.memory_space<vmem>>, vector<1x1xf32>
    tpu.vector_store %arg16[%c0_212, %c0_213], %402 {strides = array<i32>} : memref<1x1xf32, #tpu.memory_space<vmem>>, vector<1x1xf32>,
    return
  }
  func.func @transform_0(%arg0: i32) -> (i32, i32, i32) {
    %c0_i32 = arith.constant 0 : i32
    %c0_i32_0 = arith.constant 0 : i32
    %c0_i32_1 = arith.constant 0 : i32
    %c0_i32_2 = arith.constant 0 : i32
    return %c0_i32, %c0_i32_0, %c0_i32_1 : i32, i32, i32
  }
  func.func @transform_1(%arg0: i32) -> (i32, i32, i32) {
    %c0_i32 = arith.constant 0 : i32
    %c0_i32_0 = arith.constant 0 : i32
    %c0_i32_1 = arith.constant 0 : i32
    %c0_i32_2 = arith.constant 0 : i32
    return %c0_i32, %c0_i32_0, %c0_i32_1 : i32, i32, i32
  }
  func.func @transform_2(%arg0: i32) -> (i32, i32) {
    %c0_i32 = arith.constant 0 : i32
    %c0_i32_0 = arith.constant 0 : i32
    %c0_i32_1 = arith.constant 0 : i32
    return %c0_i32, %c0_i32_0 : i32, i32
  }
  func.func @transform_3(%arg0: i32) -> (i32, i32) {
    %c0_i32 = arith.constant 0 : i32
    %c0_i32_0 = arith.constant 0 : i32
    %c0_i32_1 = arith.constant 0 : i32
    return %c0_i32, %c0_i32_0 : i32, i32
  }
  func.func @transform_4(%arg0: i32) -> (i32, i32) {
    %c0_i32 = arith.constant 0 : i32
    %c0_i32_0 = arith.constant 0 : i32
    %c0_i32_1 = arith.constant 0 : i32
    return %c0_i32, %c0_i32_0 : i32, i32
  }
  func.func @transform_5(%arg0: i32) -> (i32, i32) {
    %c0_i32 = arith.constant 0 : i32
    %c0_i32_0 = arith.constant 0 : i32
    %c0_i32_1 = arith.constant 0 : i32
    return %c0_i32, %c0_i32_0 : i32, i32
  }
  func.func @transform_6(%arg0: i32) -> (i32, i32) {
    %c0_i32 = arith.constant 0 : i32
    %c0_i32_0 = arith.constant 0 : i32
    %c0_i32_1 = arith.constant 0 : i32
    return %c0_i32, %c0_i32_0 : i32, i32
  }
  func.func @transform_7(%arg0: i32) -> (i32, i32) {
    %c0_i32 = arith.constant 0 : i32
    %c0_i32_0 = arith.constant 0 : i32
    %c0_i32_1 = arith.constant 0 : i32
    return %c0_i32, %c0_i32_0 : i32, i32
  }
  func.func @transform_8(%arg0: i32) -> (i32, i32) {
    %c0_i32 = arith.constant 0 : i32
    %c0_i32_0 = arith.constant 0 : i32
    %c0_i32_1 = arith.constant 0 : i32
    return %c0_i32, %c0_i32_0 : i32, i32
  }
  func.func @transform_9(%arg0: i32) -> (i32, i32) {
    %c0_i32 = arith.constant 0 : i32
    %c0_i32_0 = arith.constant 0 : i32
    %c0_i32_1 = arith.constant 0 : i32
    return %c0_i32, %c0_i32_0 : i32, i32
  }
  func.func @transform_10(%arg0: i32) -> (i32, i32) {
    %c0_i32 = arith.constant 0 : i32
    %c0_i32_0 = arith.constant 0 : i32
    %c0_i32_1 = arith.constant 0 : i32
    return %c0_i32, %c0_i32_0 : i32, i32
  }
  func.func @transform_11(%arg0: i32) -> (i32, i32) {
    %c0_i32 = arith.constant 0 : i32
    %c0_i32_0 = arith.constant 0 : i32
    %c0_i32_1 = arith.constant 0 : i32
    return %c0_i32, %c0_i32_0 : i32, i32
  }
  func.func @transform_12(%arg0: i32) -> (i32, i32) {
    %c0_i32 = arith.constant 0 : i32
    %c0_i32_0 = arith.constant 0 : i32
    %c0_i32_1 = arith.constant 0 : i32
    return %c0_i32, %c0_i32_0 : i32, i32
  }
  func.func @transform_13(%arg0: i32) -> (i32, i32) {
    %c0_i32 = arith.constant 0 : i32
    %c0_i32_0 = arith.constant 0 : i32
    %c0_i32_1 = arith.constant 0 : i32
    return %c0_i32, %c0_i32_0 : i32, i32
  }
  func.func @transform_14(%arg0: i32) -> (i32, i32) {
    %c0_i32 = arith.constant 0 : i32
    %c0_i32_0 = arith.constant 0 : i32
    %c0_i32_1 = arith.constant 0 : i32
    return %c0_i32, %c0_i32_0 : i32, i32
  }
  func.func @transform_15(%arg0: i32) -> (i32, i32) {
    %c0_i32 = arith.constant 0 : i32
    %c0_i32_0 = arith.constant 0 : i32
    %c0_i32_1 = arith.constant 0 : i32
    return %c0_i32, %c0_i32_0 : i32, i32
  }
}

</mosaic_0001>

<llo_original>
// kernel: tile.7
$region0: #{tile.7}
  %s0 = inlined_call_operand.vmem [shape: f32[27,4,8,64], index: 0, kind: input, shape index: {}]
  %s1 = inlined_call_operand.vmem [shape: f32[27,4,512], index: 1, kind: output, shape index: {}]
  $region1: #{tile.7} parent=0
    #allocation0 [shape = 'u8[442368]{0}', space=vmem, size = 0x6c000, scoped, tag = 'scoped mem for output reshape']
    %v2 = vld [vmem:[%s0] ss:$2 sm:$0xff]
    %vm3 = vcmask 523264
    %4 = vst.msk [vmem:[#allocation0] ss:$8 sm:$0xf] %vm3, %v2
    %s5 = scalar_lea.vmem [#allocation0], 4294967265
    %6 = vst.msk [vmem:[%s5] ss:$8 sm:$0xf0] %vm3, %v2
    %s7 = scalar_lea.vmem %s0, 16
    %v8 = vld [vmem:[%s7] ss:$2 sm:$0xff]
    %vm9 = vcmask 523264
    %s10 = scalar_lea.vmem [#allocation0], 2
    %11 = vst.msk [vmem:[%s10] ss:$8 sm:$0xf] %vm9, %v8
    %s12 = scalar_lea.vmem [#allocation0], 4294967267
    %13 = vst.msk [vmem:[%s12] ss:$8 sm:$0xf0] %vm9, %v8
    %s14 = scalar_lea.vmem %s0, 32
    %v15 = vld [vmem:[%s14] ss:$2 sm:$0xff]
    %vm16 = vcmask 523264
    %s17 = scalar_lea.vmem [#allocation0], 32
    %18 = vst.msk [vmem:[%s17] ss:$8 sm:$0xf] %vm16, %v15
    %s19 = scalar_lea.vmem [#allocation0], 1
    %20 = vst.msk [vmem:[%s19] ss:$8 sm:$0xf0] %vm16, %v15
    %s21 = scalar_lea.vmem %s0, 48
    %v22 = vld [vmem:[%s21] ss:$2 sm:$0xff]
    %vm23 = vcmask 523264
    %s24 = scalar_lea.vmem [#allocation0], 34
    %25 = vst.msk [vmem:[%s24] ss:$8 sm:$0xf] %vm23, %v22
    %s26 = scalar_lea.vmem [#allocation0], 3
    %27 = vst.msk [vmem:[%s26] ss:$8 sm:$0xf0] %vm23, %v22
    %s28 = scalar_lea.vmem %s0, 64
    %v29 = vld [vmem:[%s28] ss:$2 sm:$0xff]
    %vm30 = vcmask 523264
    %s31 = scalar_lea.vmem [#allocation0], 64
    %32 = vst.msk [vmem:[%s31] ss:$8 sm:$0xf] %vm30, %v29
    %s33 = scalar_lea.vmem [#allocation0], 33
    %34 = vst.msk [vmem:[%s33] ss:$8 sm:$0xf0] %vm30, %v29
    %s35 = scalar_lea.vmem %s0, 80
    %v36 = vld [vmem:[%s35] ss:$2 sm:$0xff]
    %vm37 = vcmask 523264
    %s38 = scalar_lea.vmem [#allocation0], 66
    %39 = vst.msk [vmem:[%s38] ss:$8 sm:$0xf] %vm37, %v36
    %s40 = scalar_lea.vmem [#allocation0], 35
    %41 = vst.msk [vmem:[%s40] ss:$8 sm:$0xf0] %vm37, %v36
    %s42 = scalar_lea.vmem %s0, 96
    %v43 = vld [vmem:[%s42] ss:$2 sm:$0xff]
    %vm44 = vcmask 523264
    %s45 = scalar_lea.vmem [#allocation0], 96
    %46 = vst.msk [vmem:[%s45] ss:$8 sm:$0xf] %vm44, %v43
    %s47 = scalar_lea.vmem [#allocation0], 65
    %48 = vst.msk [vmem:[%s47] ss:$8 sm:$0xf0] %vm44, %v43
    %s49 = scalar_lea.vmem %s0, 112
    %v50 = vld [vmem:[%s49] ss:$2 sm:$0xff]
    %vm51 = vcmask 523264
    %s52 = scalar_lea.vmem [#allocation0], 98
    %53 = vst.msk [vmem:[%s52] ss:$8 sm:$0xf] %vm51, %v50
    %s54 = scalar_lea.vmem [#allocation0], 67
    %55 = vst.msk [vmem:[%s54] ss:$8 sm:$0xf0] %vm51, %v50
    %s56 = scalar_lea.vmem %s0, 128
    %v57 = vld [vmem:[%s56] ss:$2 sm:$0xff]
    %vm58 = vcmask 523264
    %s59 = scalar_lea.vmem [#allocation0], 128
    %60 = vst.msk [vmem:[%s59] ss:$8 sm:$0xf] %vm58, %v57
    %s61 = scalar_lea.vmem [#allocation0], 97
    %62 = vst.msk [vmem:[%s61] ss:$8 sm:$0xf0] %vm58, %v57
    %s63 = scalar_lea.vmem %s0, 144
    %v64 = vld [vmem:[%s63] ss:$2 sm:$0xff]
    %vm65 = vcmask 523264
    %s66 = scalar_lea.vmem [#allocation0], 130
    %67 = vst.msk [vmem:[%s66] ss:$8 sm:$0xf] %vm65, %v64
    %s68 = scalar_lea.vmem [#allocation0], 99
    %69 = vst.msk [vmem:[%s68] ss:$8 sm:$0xf0] %vm65, %v64
    %s70 = scalar_lea.vmem %s0, 160
    %v71 = vld [vmem:[%s70] ss:$2 sm:$0xff]
    %vm72 = vcmask 523264
    %s73 = scalar_lea.vmem [#allocation0], 160
    %74 = vst.msk [vmem:[%s73] ss:$8 sm:$0xf] %vm72, %v71
    %s75 = scalar_lea.vmem [#allocation0], 129
    %76 = vst.msk [vmem:[%s75] ss:$8 sm:$0xf0] %vm72, %v71
    %s77 = scalar_lea.vmem %s0, 176
    %v78 = vld [vmem:[%s77] ss:$2 sm:$0xff]
    %vm79 = vcmask 523264
    %s80 = scalar_lea.vmem [#allocation0], 162
    %81 = vst.msk [vmem:[%s80] ss:$8 sm:$0xf] %vm79, %v78
    %s82 = scalar_lea.vmem [#allocation0], 131
    %83 = vst.msk [vmem:[%s82] ss:$8 sm:$0xf0] %vm79, %v78
    %s84 = scalar_lea.vmem %s0, 192
    %v85 = vld [vmem:[%s84] ss:$2 sm:$0xff]
    %vm86 = vcmask 523264
    %s87 = scalar_lea.vmem [#allocation0], 192
    %88 = vst.msk [vmem:[%s87] ss:$8 sm:$0xf] %vm86, %v85
    %s89 = scalar_lea.vmem [#allocation0], 161
    %90 = vst.msk [vmem:[%s89] ss:$8 sm:$0xf0] %vm86, %v85
    %s91 = scalar_lea.vmem %s0, 208
    %v92 = vld [vmem:[%s91] ss:$2 sm:$0xff]
    %vm93 = vcmask 523264
    %s94 = scalar_lea.vmem [#allocation0], 194
    %95 = vst.msk [vmem:[%s94] ss:$8 sm:$0xf] %vm93, %v92
    %s96 = scalar_lea.vmem [#allocation0], 163
    %97 = vst.msk [vmem:[%s96] ss:$8 sm:$0xf0] %vm93, %v92
    %s98 = scalar_lea.vmem %s0, 224
    %v99 = vld [vmem:[%s98] ss:$2 sm:$0xff]
    %vm100 = vcmask 523264
    %s101 = scalar_lea.vmem [#allocation0], 224
    %102 = vst.msk [vmem:[%s101] ss:$8 sm:$0xf] %vm100, %v99
    %s103 = scalar_lea.vmem [#allocation0], 193
    %104 = vst.msk [vmem:[%s103] ss:$8 sm:$0xf0] %vm100, %v99
    %s105 = scalar_lea.vmem %s0, 240
    %v106 = vld [vmem:[%s105] ss:$2 sm:$0xff]
    %vm107 = vcmask 523264
    %s108 = scalar_lea.vmem [#allocation0], 226
    %109 = vst.msk [vmem:[%s108] ss:$8 sm:$0xf] %vm107, %v106
    %s110 = scalar_lea.vmem [#allocation0], 195
    %111 = vst.msk [vmem:[%s110] ss:$8 sm:$0xf0] %vm107, %v106
    %s112 = scalar_lea.vmem %s0, 256
    %v113 = vld [vmem:[%s112] ss:$2 sm:$0xff]
    %vm114 = vcmask 523264
    %s115 = scalar_lea.vmem [#allocation0], 256
    %116 = vst.msk [vmem:[%s115] ss:$8 sm:$0xf] %vm114, %v113
    %s117 = scalar_lea.vmem [#allocation0], 225
    %118 = vst.msk [vmem:[%s117] ss:$8 sm:$0xf0] %vm114, %v113
    %s119 = scalar_lea.vmem %s0, 272
    %v120 = vld [vmem:[%s119] ss:$2 sm:$0xff]
    %vm121 = vcmask 523264
    %s122 = scalar_lea.vmem [#allocation0], 258
    %123 = vst.msk [vmem:[%s122] ss:$8 sm:$0xf] %vm121, %v120
    %s124 = scalar_lea.vmem [#allocation0], 227
    %125 = vst.msk [vmem:[%s124] ss:$8 sm:$0xf0] %vm121, %v120
    %s126 = scalar_lea.vmem %s0, 288
    %v127 = vld [vmem:[%s126] ss:$2 sm:$0xff]
    %vm128 = vcmask 523264
    %s129 = scalar_lea.vmem [#allocation0], 288
    %130 = vst.msk [vmem:[%s129] ss:$8 sm:$0xf] %vm128, %v127
    %s131 = scalar_lea.vmem [#allocation0], 257
    %132 = vst.msk [vmem:[%s131] ss:$8 sm:$0xf0] %vm128, %v127
    %s133 = scalar_lea.vmem %s0, 304
    %v134 = vld [vmem:[%s133] ss:$2 sm:$0xff]
    %vm135 = vcmask 523264
    %s136 = scalar_lea.vmem [#allocation0], 290
    %137 = vst.msk [vmem:[%s136] ss:$8 sm:$0xf] %vm135, %v134
    %s138 = scalar_lea.vmem [#allocation0], 259
    %139 = vst.msk [vmem:[%s138] ss:$8 sm:$0xf0] %vm135, %v134
    %s140 = scalar_lea.vmem %s0, 320
    %v141 = vld [vmem:[%s140] ss:$2 sm:$0xff]
    %vm142 = vcmask 523264
    %s143 = scalar_lea.vmem [#allocation0], 320
    %144 = vst.msk [vmem:[%s143] ss:$8 sm:$0xf] %vm142, %v141
    %s145 = scalar_lea.vmem [#allocation0], 289
    %146 = vst.msk [vmem:[%s145] ss:$8 sm:$0xf0] %vm142, %v141
    %s147 = scalar_lea.vmem %s0, 336
    %v148 = vld [vmem:[%s147] ss:$2 sm:$0xff]
    %vm149 = vcmask 523264
    %s150 = scalar_lea.vmem [#allocation0], 322
    %151 = vst.msk [vmem:[%s150] ss:$8 sm:$0xf] %vm149, %v148
    %s152 = scalar_lea.vmem [#allocation0], 291
    %153 = vst.msk [vmem:[%s152] ss:$8 sm:$0xf0] %vm149, %v148
    %s154 = scalar_lea.vmem %s0, 352
    %v155 = vld [vmem:[%s154] ss:$2 sm:$0xff]
    %vm156 = vcmask 523264
    %s157 = scalar_lea.vmem [#allocation0], 352
    %158 = vst.msk [vmem:[%s157] ss:$8 sm:$0xf] %vm156, %v155
    %s159 = scalar_lea.vmem [#allocation0], 321
    %160 = vst.msk [vmem:[%s159] ss:$8 sm:$0xf0] %vm156, %v155
    %s161 = scalar_lea.vmem %s0, 368
    %v162 = vld [vmem:[%s161] ss:$2 sm:$0xff]
    %vm163 = vcmask 523264
    %s164 = scalar_lea.vmem [#allocation0], 354
    %165 = vst.msk [vmem:[%s164] ss:$8 sm:$0xf] %vm163, %v162
    %s166 = scalar_lea.vmem [#allocation0], 323
    %167 = vst.msk [vmem:[%s166] ss:$8 sm:$0xf0] %vm163, %v162
    %s168 = scalar_lea.vmem %s0, 384
    %v169 = vld [vmem:[%s168] ss:$2 sm:$0xff]
    %vm170 = vcmask 523264
    %s171 = scalar_lea.vmem [#allocation0], 384
    %172 = vst.msk [vmem:[%s171] ss:$8 sm:$0xf] %vm170, %v169
    %s173 = scalar_lea.vmem [#allocation0], 353
    %174 = vst.msk [vmem:[%s173] ss:$8 sm:$0xf0] %vm170, %v169
    %s175 = scalar_lea.vmem %s0, 400
    %v176 = vld [vmem:[%s175] ss:$2 sm:$0xff]
    %vm177 = vcmask 523264
    %s178 = scalar_lea.vmem [#allocation0], 386
    %179 = vst.msk [vmem:[%s178] ss:$8 sm:$0xf] %vm177, %v176
    %s180 = scalar_lea.vmem [#allocation0], 355
    %181 = vst.msk [vmem:[%s180] ss:$8 sm:$0xf0] %vm177, %v176
    %s182 = scalar_lea.vmem %s0, 416
    %v183 = vld [vmem:[%s182] ss:$2 sm:$0xff]
    %vm184 = vcmask 523264
    %s185 = scalar_lea.vmem [#allocation0], 416
    %186 = vst.msk [vmem:[%s185] ss:$8 sm:$0xf] %vm184, %v183
    %s187 = scalar_lea.vmem [#allocation0], 385
    %188 = vst.msk [vmem:[%s187] ss:$8 sm:$0xf0] %vm184, %v183
    %s189 = scalar_lea.vmem %s0, 432
    %v190 = vld [vmem:[%s189] ss:$2 sm:$0xff]
    %vm191 = vcmask 523264
    %s192 = scalar_lea.vmem [#allocation0], 418
    %193 = vst.msk [vmem:[%s192] ss:$8 sm:$0xf] %vm191, %v190
    %s194 = scalar_lea.vmem [#allocation0], 387
    %195 = vst.msk [vmem:[%s194] ss:$8 sm:$0xf0] %vm191, %v190
    %s196 = scalar_lea.vmem %s0, 448
    %v197 = vld [vmem:[%s196] ss:$2 sm:$0xff]
    %vm198 = vcmask 523264
    %s199 = scalar_lea.vmem [#allocation0], 448
    %200 = vst.msk [vmem:[%s199] ss:$8 sm:$0xf] %vm198, %v197
    %s201 = scalar_lea.vmem [#allocation0], 417
    %202 = vst.msk [vmem:[%s201] ss:$8 sm:$0xf0] %vm198, %v197
    %s203 = scalar_lea.vmem %s0, 464
    %v204 = vld [vmem:[%s203] ss:$2 sm:$0xff]
    %vm205 = vcmask 523264
    %s206 = scalar_lea.vmem [#allocation0], 450
    %207 = vst.msk [vmem:[%s206] ss:$8 sm:$0xf] %vm205, %v204
    %s208 = scalar_lea.vmem [#allocation0], 419
    %209 = vst.msk [vmem:[%s208] ss:$8 sm:$0xf0] %vm205, %v204
    %s210 = scalar_lea.vmem %s0, 480
    %v211 = vld [vmem:[%s210] ss:$2 sm:$0xff]
    %vm212 = vcmask 523264
    %s213 = scalar_lea.vmem [#allocation0], 480
    %214 = vst.msk [vmem:[%s213] ss:$8 sm:$0xf] %vm212, %v211
    %s215 = scalar_lea.vmem [#allocation0], 449
    %216 = vst.msk [vmem:[%s215] ss:$8 sm:$0xf0] %vm212, %v211
    %s217 = scalar_lea.vmem %s0, 496
    %v218 = vld [vmem:[%s217] ss:$2 sm:$0xff]
    %vm219 = vcmask 523264
    %s220 = scalar_lea.vmem [#allocation0], 482
    %221 = vst.msk [vmem:[%s220] ss:$8 sm:$0xf] %vm219, %v218
    %s222 = scalar_lea.vmem [#allocation0], 451
    %223 = vst.msk [vmem:[%s222] ss:$8 sm:$0xf0] %vm219, %v218
    %s224 = scalar_lea.vmem %s0, 512
    %v225 = vld [vmem:[%s224] ss:$2 sm:$0xff]
    %vm226 = vcmask 523264
    %s227 = scalar_lea.vmem [#allocation0], 512
    %228 = vst.msk [vmem:[%s227] ss:$8 sm:$0xf] %vm226, %v225
    %s229 = scalar_lea.vmem [#allocation0], 481
    %230 = vst.msk [vmem:[%s229] ss:$8 sm:$0xf0] %vm226, %v225
    %s231 = scalar_lea.vmem %s0, 528
    %v232 = vld [vmem:[%s231] ss:$2 sm:$0xff]
    %vm233 = vcmask 523264
    %s234 = scalar_lea.vmem [#allocation0], 514
    %235 = vst.msk [vmem:[%s234] ss:$8 sm:$0xf] %vm233, %v232
    %s236 = scalar_lea.vmem [#allocation0], 483
    %237 = vst.msk [vmem:[%s236] ss:$8 sm:$0xf0] %vm233, %v232
    %s238 = scalar_lea.vmem %s0, 544
    %v239 = vld [vmem:[%s238] ss:$2 sm:$0xff]
    %vm240 = vcmask 523264
    %s241 = scalar_lea.vmem [#allocation0], 544
    %242 = vst.msk [vmem:[%s241] ss:$8 sm:$0xf] %vm240, %v239
    %s243 = scalar_lea.vmem [#allocation0], 513
    %244 = vst.msk [vmem:[%s243] ss:$8 sm:$0xf0] %vm240, %v239
    %s245 = scalar_lea.vmem %s0, 560
    %v246 = vld [vmem:[%s245] ss:$2 sm:$0xff]
    %vm247 = vcmask 523264
    %s248 = scalar_lea.vmem [#allocation0], 546
    %249 = vst.msk [vmem:[%s248] ss:$8 sm:$0xf] %vm247, %v246
    %s250 = scalar_lea.vmem [#allocation0], 515
    %251 = vst.msk [vmem:[%s250] ss:$8 sm:$0xf0] %vm247, %v246
    %s252 = scalar_lea.vmem %s0, 576
    %v253 = vld [vmem:[%s252] ss:$2 sm:$0xff]
    %vm254 = vcmask 523264
    %s255 = scalar_lea.vmem [#allocation0], 576
    %256 = vst.msk [vmem:[%s255] ss:$8 sm:$0xf] %vm254, %v253
    %s257 = scalar_lea.vmem [#allocation0], 545
    %258 = vst.msk [vmem:[%s257] ss:$8 sm:$0xf0] %vm254, %v253
    %s259 = scalar_lea.vmem %s0, 592
    %v260 = vld [vmem:[%s259] ss:$2 sm:$0xff]
    %vm261 = vcmask 523264
    %s262 = scalar_lea.vmem [#allocation0], 578
    %263 = vst.msk [vmem:[%s262] ss:$8 sm:$0xf] %vm261, %v260
    %s264 = scalar_lea.vmem [#allocation0], 547
    %265 = vst.msk [vmem:[%s264] ss:$8 sm:$0xf0] %vm261, %v260
    %s266 = scalar_lea.vmem %s0, 608
    %v267 = vld [vmem:[%s266] ss:$2 sm:$0xff]
    %vm268 = vcmask 523264
    %s269 = scalar_lea.vmem [#allocation0], 608
    %270 = vst.msk [vmem:[%s269] ss:$8 sm:$0xf] %vm268, %v267
    %s271 = scalar_lea.vmem [#allocation0], 577
    %272 = vst.msk [vmem:[%s271] ss:$8 sm:$0xf0] %vm268, %v267
    %s273 = scalar_lea.vmem %s0, 624
    %v274 = vld [vmem:[%s273] ss:$2 sm:$0xff]
    %vm275 = vcmask 523264
    %s276 = scalar_lea.vmem [#allocation0], 610
    %277 = vst.msk [vmem:[%s276] ss:$8 sm:$0xf] %vm275, %v274
    %s278 = scalar_lea.vmem [#allocation0], 579
    %279 = vst.msk [vmem:[%s278] ss:$8 sm:$0xf0] %vm275, %v274
    %s280 = scalar_lea.vmem %s0, 640
    %v281 = vld [vmem:[%s280] ss:$2 sm:$0xff]
    %vm282 = vcmask 523264
    %s283 = scalar_lea.vmem [#allocation0], 640
    %284 = vst.msk [vmem:[%s283] ss:$8 sm:$0xf] %vm282, %v281
    %s285 = scalar_lea.vmem [#allocation0], 609
    %286 = vst.msk [vmem:[%s285] ss:$8 sm:$0xf0] %vm282, %v281
    %s287 = scalar_lea.vmem %s0, 656
    %v288 = vld [vmem:[%s287] ss:$2 sm:$0xff]
    %vm289 = vcmask 523264
    %s290 = scalar_lea.vmem [#allocation0], 642
    %291 = vst.msk [vmem:[%s290] ss:$8 sm:$0xf] %vm289, %v288
    %s292 = scalar_lea.vmem [#allocation0], 611
    %293 = vst.msk [vmem:[%s292] ss:$8 sm:$0xf0] %vm289, %v288
    %s294 = scalar_lea.vmem %s0, 672
    %v295 = vld [vmem:[%s294] ss:$2 sm:$0xff]
    %vm296 = vcmask 523264
    %s297 = scalar_lea.vmem [#allocation0], 672
    %298 = vst.msk [vmem:[%s297] ss:$8 sm:$0xf] %vm296, %v295
    %s299 = scalar_lea.vmem [#allocation0], 641
    %300 = vst.msk [vmem:[%s299] ss:$8 sm:$0xf0] %vm296, %v295
    %s301 = scalar_lea.vmem %s0, 688
    %v302 = vld [vmem:[%s301] ss:$2 sm:$0xff]
    %vm303 = vcmask 523264
    %s304 = scalar_lea.vmem [#allocation0], 674
    %305 = vst.msk [vmem:[%s304] ss:$8 sm:$0xf] %vm303, %v302
    %s306 = scalar_lea.vmem [#allocation0], 643
    %307 = vst.msk [vmem:[%s306] ss:$8 sm:$0xf0] %vm303, %v302
    %s308 = scalar_lea.vmem %s0, 704
    %v309 = vld [vmem:[%s308] ss:$2 sm:$0xff]
    %vm310 = vcmask 523264
    %s311 = scalar_lea.vmem [#allocation0], 704
    %312 = vst.msk [vmem:[%s311] ss:$8 sm:$0xf] %vm310, %v309
    %s313 = scalar_lea.vmem [#allocation0], 673
    %314 = vst.msk [vmem:[%s313] ss:$8 sm:$0xf0] %vm310, %v309
    %s315 = scalar_lea.vmem %s0, 720
    %v316 = vld [vmem:[%s315] ss:$2 sm:$0xff]
    %vm317 = vcmask 523264
    %s318 = scalar_lea.vmem [#allocation0], 706
    %319 = vst.msk [vmem:[%s318] ss:$8 sm:$0xf] %vm317, %v316
    %s320 = scalar_lea.vmem [#allocation0], 675
    %321 = vst.msk [vmem:[%s320] ss:$8 sm:$0xf0] %vm317, %v316
    %s322 = scalar_lea.vmem %s0, 736
    %v323 = vld [vmem:[%s322] ss:$2 sm:$0xff]
    %vm324 = vcmask 523264
    %s325 = scalar_lea.vmem [#allocation0], 736
    %326 = vst.msk [vmem:[%s325] ss:$8 sm:$0xf] %vm324, %v323
    %s327 = scalar_lea.vmem [#allocation0], 705
    %328 = vst.msk [vmem:[%s327] ss:$8 sm:$0xf0] %vm324, %v323
    %s329 = scalar_lea.vmem %s0, 752
    %v330 = vld [vmem:[%s329] ss:$2 sm:$0xff]
    %vm331 = vcmask 523264
    %s332 = scalar_lea.vmem [#allocation0], 738
    %333 = vst.msk [vmem:[%s332] ss:$8 sm:$0xf] %vm331, %v330
    %s334 = scalar_lea.vmem [#allocation0], 707
    %335 = vst.msk [vmem:[%s334] ss:$8 sm:$0xf0] %vm331, %v330
    %s336 = scalar_lea.vmem %s0, 768
    %v337 = vld [vmem:[%s336] ss:$2 sm:$0xff]
    %vm338 = vcmask 523264
    %s339 = scalar_lea.vmem [#allocation0], 768
    %340 = vst.msk [vmem:[%s339] ss:$8 sm:$0xf] %vm338, %v337
    %s341 = scalar_lea.vmem [#allocation0], 737
    %342 = vst.msk [vmem:[%s341] ss:$8 sm:$0xf0] %vm338, %v337
    %s343 = scalar_lea.vmem %s0, 784
    %v344 = vld [vmem:[%s343] ss:$2 sm:$0xff]
    %vm345 = vcmask 523264
    %s346 = scalar_lea.vmem [#allocation0], 770
    %347 = vst.msk [vmem:[%s346] ss:$8 sm:$0xf] %vm345, %v344
    %s348 = scalar_lea.vmem [#allocation0], 739
    %349 = vst.msk [vmem:[%s348] ss:$8 sm:$0xf0] %vm345, %v344
    %s350 = scalar_lea.vmem %s0, 800
    %v351 = vld [vmem:[%s350] ss:$2 sm:$0xff]
    %vm352 = vcmask 523264
    %s353 = scalar_lea.vmem [#allocation0], 800
    %354 = vst.msk [vmem:[%s353] ss:$8 sm:$0xf] %vm352, %v351
    %s355 = scalar_lea.vmem [#allocation0], 769
    %356 = vst.msk [vmem:[%s355] ss:$8 sm:$0xf0] %vm352, %v351
    %s357 = scalar_lea.vmem %s0, 816
    %v358 = vld [vmem:[%s357] ss:$2 sm:$0xff]
    %vm359 = vcmask 523264
    %s360 = scalar_lea.vmem [#allocation0], 802
    %361 = vst.msk [vmem:[%s360] ss:$8 sm:$0xf] %vm359, %v358
    %s362 = scalar_lea.vmem [#allocation0], 771
    %363 = vst.msk [vmem:[%s362] ss:$8 sm:$0xf0] %vm359, %v358
    %s364 = scalar_lea.vmem %s0, 832
    %v365 = vld [vmem:[%s364] ss:$2 sm:$0xff]
    %vm366 = vcmask 523264
    %s367 = scalar_lea.vmem [#allocation0], 832
    %368 = vst.msk [vmem:[%s367] ss:$8 sm:$0xf] %vm366, %v365
    %s369 = scalar_lea.vmem [#allocation0], 801
    %370 = vst.msk [vmem:[%s369] ss:$8 sm:$0xf0] %vm366, %v365
    %s371 = scalar_lea.vmem %s0, 848
    %v372 = vld [vmem:[%s371] ss:$2 sm:$0xff]
    %vm373 = vcmask 523264
    %s374 = scalar_lea.vmem [#allocation0], 834
    %375 = vst.msk [vmem:[%s374] ss:$8 sm:$0xf] %vm373, %v372
    %s376 = scalar_lea.vmem [#allocation0], 803
    %377 = vst.msk [vmem:[%s376] ss:$8 sm:$0xf0] %vm373, %v372
    %s378 = scalar_lea.vmem %s0, 1
    %v379 = vld [vmem:[%s378] ss:$8 sm:$0xf]
    %s380 = scalar_lea.vmem %s0, 4294967267
    %v381 = vld [vmem:[%s380] ss:$8 sm:$0xf0]
    %vm382 = vcmask 1047556
    %v383 = vsel %vm382, %v381, %v379
    %384 = vrot.lane.b32.xlu0 %v383, 64
    %v385 = vpop.permute.xlu0 %384
    %vm386 = vcmask 1048064
    %387 = vst.msk [vmem:[#allocation0] sm:$0xf] %vm386, %v385
    %s388 = scalar_lea.vmem [#allocation0], 4
    %389 = vst.msk [vmem:[%s388] sm:$0xf0] %vm386, %v385
    %s390 = scalar_lea.vmem %s0, 33
    %v391 = vld [vmem:[%s390] ss:$8 sm:$0xf]
    %s392 = scalar_lea.vmem %s0, 3
    %v393 = vld [vmem:[%s392] ss:$8 sm:$0xf0]
    %vm394 = vcmask 1047556
    %v395 = vsel %vm394, %v393, %v391
    %396 = vrot.lane.b32.xlu0 %v395, 64
    %v397 = vpop.permute.xlu0 %396
    %vm398 = vcmask 1048064
    %s399 = scalar_lea.vmem [#allocation0], 32
    %400 = vst.msk [vmem:[%s399] sm:$0xf] %vm398, %v397
    %s401 = scalar_lea.vmem [#allocation0], 36
    %402 = vst.msk [vmem:[%s401] sm:$0xf0] %vm398, %v397
    %s403 = scalar_lea.vmem %s0, 65
    %v404 = vld [vmem:[%s403] ss:$8 sm:$0xf]
    %s405 = scalar_lea.vmem %s0, 35
    %v406 = vld [vmem:[%s405] ss:$8 sm:$0xf0]
    %vm407 = vcmask 1047556
    %v408 = vsel %vm407, %v406, %v404
    %409 = vrot.lane.b32.xlu0 %v408, 64
    %v410 = vpop.permute.xlu0 %409
    %vm411 = vcmask 1048064
    %s412 = scalar_lea.vmem [#allocation0], 64
    %413 = vst.msk [vmem:[%s412] sm:$0xf] %vm411, %v410
    %s414 = scalar_lea.vmem [#allocation0], 68
    %415 = vst.msk [vmem:[%s414] sm:$0xf0] %vm411, %v410
    %s416 = scalar_lea.vmem %s0, 97
    %v417 = vld [vmem:[%s416] ss:$8 sm:$0xf]
    %s418 = scalar_lea.vmem %s0, 67
    %v419 = vld [vmem:[%s418] ss:$8 sm:$0xf0]
    %vm420 = vcmask 1047556
    %v421 = vsel %vm420, %v419, %v417
    %422 = vrot.lane.b32.xlu0 %v421, 64
    %v423 = vpop.permute.xlu0 %422
    %vm424 = vcmask 1048064
    %s425 = scalar_lea.vmem [#allocation0], 96
    %426 = vst.msk [vmem:[%s425] sm:$0xf] %vm424, %v423
    %s427 = scalar_lea.vmem [#allocation0], 100
    %428 = vst.msk [vmem:[%s427] sm:$0xf0] %vm424, %v423
    %s429 = scalar_lea.vmem %s0, 129
    %v430 = vld [vmem:[%s429] ss:$8 sm:$0xf]
    %s431 = scalar_lea.vmem %s0, 99
    %v432 = vld [vmem:[%s431] ss:$8 sm:$0xf0]
    %vm433 = vcmask 1047556
    %v434 = vsel %vm433, %v432, %v430
    %435 = vrot.lane.b32.xlu0 %v434, 64
    %v436 = vpop.permute.xlu0 %435
    %vm437 = vcmask 1048064
    %s438 = scalar_lea.vmem [#allocation0], 128
    %439 = vst.msk [vmem:[%s438] sm:$0xf] %vm437, %v436
    %s440 = scalar_lea.vmem [#allocation0], 132
    %441 = vst.msk [vmem:[%s440] sm:$0xf0] %vm437, %v436
    %s442 = scalar_lea.vmem %s0, 161
    %v443 = vld [vmem:[%s442] ss:$8 sm:$0xf]
    %s444 = scalar_lea.vmem %s0, 131
    %v445 = vld [vmem:[%s444] ss:$8 sm:$0xf0]
    %vm446 = vcmask 1047556
    %v447 = vsel %vm446, %v445, %v443
    %448 = vrot.lane.b32.xlu0 %v447, 64
    %v449 = vpop.permute.xlu0 %448
    %vm450 = vcmask 1048064
    %s451 = scalar_lea.vmem [#allocation0], 160
    %452 = vst.msk [vmem:[%s451] sm:$0xf] %vm450, %v449
    %s453 = scalar_lea.vmem [#allocation0], 164
    %454 = vst.msk [vmem:[%s453] sm:$0xf0] %vm450, %v449
    %s455 = scalar_lea.vmem %s0, 193
    %v456 = vld [vmem:[%s455] ss:$8 sm:$0xf]
    %s457 = scalar_lea.vmem %s0, 163
    %v458 = vld [vmem:[%s457] ss:$8 sm:$0xf0]
    %vm459 = vcmask 1047556
    %v460 = vsel %vm459, %v458, %v456
    %461 = vrot.lane.b32.xlu0 %v460, 64
    %v462 = vpop.permute.xlu0 %461
    %vm463 = vcmask 1048064
    %s464 = scalar_lea.vmem [#allocation0], 192
    %465 = vst.msk [vmem:[%s464] sm:$0xf] %vm463, %v462
    %s466 = scalar_lea.vmem [#allocation0], 196
    %467 = vst.msk [vmem:[%s466] sm:$0xf0] %vm463, %v462
    %s468 = scalar_lea.vmem %s0, 225
    %v469 = vld [vmem:[%s468] ss:$8 sm:$0xf]
    %s470 = scalar_lea.vmem %s0, 195
    %v471 = vld [vmem:[%s470] ss:$8 sm:$0xf0]
    %vm472 = vcmask 1047556
    %v473 = vsel %vm472, %v471, %v469
    %474 = vrot.lane.b32.xlu0 %v473, 64
    %v475 = vpop.permute.xlu0 %474
    %vm476 = vcmask 1048064
    %s477 = scalar_lea.vmem [#allocation0], 224
    %478 = vst.msk [vmem:[%s477] sm:$0xf] %vm476, %v475
    %s479 = scalar_lea.vmem [#allocation0], 228
    %480 = vst.msk [vmem:[%s479] sm:$0xf0] %vm476, %v475
    %s481 = scalar_lea.vmem %s0, 257
    %v482 = vld [vmem:[%s481] ss:$8 sm:$0xf]
    %s483 = scalar_lea.vmem %s0, 227
    %v484 = vld [vmem:[%s483] ss:$8 sm:$0xf0]
    %vm485 = vcmask 1047556
    %v486 = vsel %vm485, %v484, %v482
    %487 = vrot.lane.b32.xlu0 %v486, 64
    %v488 = vpop.permute.xlu0 %487
    %vm489 = vcmask 1048064
    %s490 = scalar_lea.vmem [#allocation0], 256
    %491 = vst.msk [vmem:[%s490] sm:$0xf] %vm489, %v488
    %s492 = scalar_lea.vmem [#allocation0], 260
    %493 = vst.msk [vmem:[%s492] sm:$0xf0] %vm489, %v488
    %s494 = scalar_lea.vmem %s0, 289
    %v495 = vld [vmem:[%s494] ss:$8 sm:$0xf]
    %s496 = scalar_lea.vmem %s0, 259
    %v497 = vld [vmem:[%s496] ss:$8 sm:$0xf0]
    %vm498 = vcmask 1047556
    %v499 = vsel %vm498, %v497, %v495
    %500 = vrot.lane.b32.xlu0 %v499, 64
    %v501 = vpop.permute.xlu0 %500
    %vm502 = vcmask 1048064
    %s503 = scalar_lea.vmem [#allocation0], 288
    %504 = vst.msk [vmem:[%s503] sm:$0xf] %vm502, %v501
    %s505 = scalar_lea.vmem [#allocation0], 292
    %506 = vst.msk [vmem:[%s505] sm:$0xf0] %vm502, %v501
    %s507 = scalar_lea.vmem %s0, 321
    %v508 = vld [vmem:[%s507] ss:$8 sm:$0xf]
    %s509 = scalar_lea.vmem %s0, 291
    %v510 = vld [vmem:[%s509] ss:$8 sm:$0xf0]
    %vm511 = vcmask 1047556
    %v512 = vsel %vm511, %v510, %v508
    %513 = vrot.lane.b32.xlu0 %v512, 64
    %v514 = vpop.permute.xlu0 %513
    %vm515 = vcmask 1048064
    %s516 = scalar_lea.vmem [#allocation0], 320
    %517 = vst.msk [vmem:[%s516] sm:$0xf] %vm515, %v514
    %s518 = scalar_lea.vmem [#allocation0], 324
    %519 = vst.msk [vmem:[%s518] sm:$0xf0] %vm515, %v514
    %s520 = scalar_lea.vmem %s0, 353
    %v521 = vld [vmem:[%s520] ss:$8 sm:$0xf]
    %s522 = scalar_lea.vmem %s0, 323
    %v523 = vld [vmem:[%s522] ss:$8 sm:$0xf0]
    %vm524 = vcmask 1047556
    %v525 = vsel %vm524, %v523, %v521
    %526 = vrot.lane.b32.xlu0 %v525, 64
    %v527 = vpop.permute.xlu0 %526
    %vm528 = vcmask 1048064
    %s529 = scalar_lea.vmem [#allocation0], 352
    %530 = vst.msk [vmem:[%s529] sm:$0xf] %vm528, %v527
    %s531 = scalar_lea.vmem [#allocation0], 356
    %532 = vst.msk [vmem:[%s531] sm:$0xf0] %vm528, %v527
    %s533 = scalar_lea.vmem %s0, 385
    %v534 = vld [vmem:[%s533] ss:$8 sm:$0xf]
    %s535 = scalar_lea.vmem %s0, 355
    %v536 = vld [vmem:[%s535] ss:$8 sm:$0xf0]
    %vm537 = vcmask 1047556
    %v538 = vsel %vm537, %v536, %v534
    %539 = vrot.lane.b32.xlu0 %v538, 64
    %v540 = vpop.permute.xlu0 %539
    %vm541 = vcmask 1048064
    %s542 = scalar_lea.vmem [#allocation0], 384
    %543 = vst.msk [vmem:[%s542] sm:$0xf] %vm541, %v540
    %s544 = scalar_lea.vmem [#allocation0], 388
    %545 = vst.msk [vmem:[%s544] sm:$0xf0] %vm541, %v540
    %s546 = scalar_lea.vmem %s0, 417
    %v547 = vld [vmem:[%s546] ss:$8 sm:$0xf]
    %s548 = scalar_lea.vmem %s0, 387
    %v549 = vld [vmem:[%s548] ss:$8 sm:$0xf0]
    %vm550 = vcmask 1047556
    %v551 = vsel %vm550, %v549, %v547
    %552 = vrot.lane.b32.xlu0 %v551, 64
    %v553 = vpop.permute.xlu0 %552
    %vm554 = vcmask 1048064
    %s555 = scalar_lea.vmem [#allocation0], 416
    %556 = vst.msk [vmem:[%s555] sm:$0xf] %vm554, %v553
    %s557 = scalar_lea.vmem [#allocation0], 420
    %558 = vst.msk [vmem:[%s557] sm:$0xf0] %vm554, %v553
    %s559 = scalar_lea.vmem %s0, 449
    %v560 = vld [vmem:[%s559] ss:$8 sm:$0xf]
    %s561 = scalar_lea.vmem %s0, 419
    %v562 = vld [vmem:[%s561] ss:$8 sm:$0xf0]
    %vm563 = vcmask 1047556
    %v564 = vsel %vm563, %v562, %v560
    %565 = vrot.lane.b32.xlu0 %v564, 64
    %v566 = vpop.permute.xlu0 %565
    %vm567 = vcmask 1048064
    %s568 = scalar_lea.vmem [#allocation0], 448
    %569 = vst.msk [vmem:[%s568] sm:$0xf] %vm567, %v566
    %s570 = scalar_lea.vmem [#allocation0], 452
    %571 = vst.msk [vmem:[%s570] sm:$0xf0] %vm567, %v566
    %s572 = scalar_lea.vmem %s0, 481
    %v573 = vld [vmem:[%s572] ss:$8 sm:$0xf]
    %s574 = scalar_lea.vmem %s0, 451
    %v575 = vld [vmem:[%s574] ss:$8 sm:$0xf0]
    %vm576 = vcmask 1047556
    %v577 = vsel %vm576, %v575, %v573
    %578 = vrot.lane.b32.xlu0 %v577, 64
    %v579 = vpop.permute.xlu0 %578
    %vm580 = vcmask 1048064
    %s581 = scalar_lea.vmem [#allocation0], 480
    %582 = vst.msk [vmem:[%s581] sm:$0xf] %vm580, %v579
    %s583 = scalar_lea.vmem [#allocation0], 484
    %584 = vst.msk [vmem:[%s583] sm:$0xf0] %vm580, %v579
    %s585 = scalar_lea.vmem %s0, 513
    %v586 = vld [vmem:[%s585] ss:$8 sm:$0xf]
    %s587 = scalar_lea.vmem %s0, 483
    %v588 = vld [vmem:[%s587] ss:$8 sm:$0xf0]
    %vm589 = vcmask 1047556
    %v590 = vsel %vm589, %v588, %v586
    %591 = vrot.lane.b32.xlu0 %v590, 64
    %v592 = vpop.permute.xlu0 %591
    %vm593 = vcmask 1048064
    %s594 = scalar_lea.vmem [#allocation0], 512
    %595 = vst.msk [vmem:[%s594] sm:$0xf] %vm593, %v592
    %s596 = scalar_lea.vmem [#allocation0], 516
    %597 = vst.msk [vmem:[%s596] sm:$0xf0] %vm593, %v592
    %s598 = scalar_lea.vmem %s0, 545
    %v599 = vld [vmem:[%s598] ss:$8 sm:$0xf]
    %s600 = scalar_lea.vmem %s0, 515
    %v601 = vld [vmem:[%s600] ss:$8 sm:$0xf0]
    %vm602 = vcmask 1047556
    %v603 = vsel %vm602, %v601, %v599
    %604 = vrot.lane.b32.xlu0 %v603, 64
    %v605 = vpop.permute.xlu0 %604
    %vm606 = vcmask 1048064
    %s607 = scalar_lea.vmem [#allocation0], 544
    %608 = vst.msk [vmem:[%s607] sm:$0xf] %vm606, %v605
    %s609 = scalar_lea.vmem [#allocation0], 548
    %610 = vst.msk [vmem:[%s609] sm:$0xf0] %vm606, %v605
    %s611 = scalar_lea.vmem %s0, 577
    %v612 = vld [vmem:[%s611] ss:$8 sm:$0xf]
    %s613 = scalar_lea.vmem %s0, 547
    %v614 = vld [vmem:[%s613] ss:$8 sm:$0xf0]
    %vm615 = vcmask 1047556
    %v616 = vsel %vm615, %v614, %v612
    %617 = vrot.lane.b32.xlu0 %v616, 64
    %v618 = vpop.permute.xlu0 %617
    %vm619 = vcmask 1048064
    %s620 = scalar_lea.vmem [#allocation0], 576
    %621 = vst.msk [vmem:[%s620] sm:$0xf] %vm619, %v618
    %s622 = scalar_lea.vmem [#allocation0], 580
    %623 = vst.msk [vmem:[%s622] sm:$0xf0] %vm619, %v618
    %s624 = scalar_lea.vmem %s0, 609
    %v625 = vld [vmem:[%s624] ss:$8 sm:$0xf]
    %s626 = scalar_lea.vmem %s0, 579
    %v627 = vld [vmem:[%s626] ss:$8 sm:$0xf0]
    %vm628 = vcmask 1047556
    %v629 = vsel %vm628, %v627, %v625
    %630 = vrot.lane.b32.xlu0 %v629, 64
    %v631 = vpop.permute.xlu0 %630
    %vm632 = vcmask 1048064
    %s633 = scalar_lea.vmem [#allocation0], 608
    %634 = vst.msk [vmem:[%s633] sm:$0xf] %vm632, %v631
    %s635 = scalar_lea.vmem [#allocation0], 612
    %636 = vst.msk [vmem:[%s635] sm:$0xf0] %vm632, %v631
    %s637 = scalar_lea.vmem %s0, 641
    %v638 = vld [vmem:[%s637] ss:$8 sm:$0xf]
    %s639 = scalar_lea.vmem %s0, 611
    %v640 = vld [vmem:[%s639] ss:$8 sm:$0xf0]
    %vm641 = vcmask 1047556
    %v642 = vsel %vm641, %v640, %v638
    %643 = vrot.lane.b32.xlu0 %v642, 64
    %v644 = vpop.permute.xlu0 %643
    %vm645 = vcmask 1048064
    %s646 = scalar_lea.vmem [#allocation0], 640
    %647 = vst.msk [vmem:[%s646] sm:$0xf] %vm645, %v644
    %s648 = scalar_lea.vmem [#allocation0], 644
    %649 = vst.msk [vmem:[%s648] sm:$0xf0] %vm645, %v644
    %s650 = scalar_lea.vmem %s0, 673
    %v651 = vld [vmem:[%s650] ss:$8 sm:$0xf]
    %s652 = scalar_lea.vmem %s0, 643
    %v653 = vld [vmem:[%s652] ss:$8 sm:$0xf0]
    %vm654 = vcmask 1047556
    %v655 = vsel %vm654, %v653, %v651
    %656 = vrot.lane.b32.xlu0 %v655, 64
    %v657 = vpop.permute.xlu0 %656
    %vm658 = vcmask 1048064
    %s659 = scalar_lea.vmem [#allocation0], 672
    %660 = vst.msk [vmem:[%s659] sm:$0xf] %vm658, %v657
    %s661 = scalar_lea.vmem [#allocation0], 676
    %662 = vst.msk [vmem:[%s661] sm:$0xf0] %vm658, %v657
    %s663 = scalar_lea.vmem %s0, 705
    %v664 = vld [vmem:[%s663] ss:$8 sm:$0xf]
    %s665 = scalar_lea.vmem %s0, 675
    %v666 = vld [vmem:[%s665] ss:$8 sm:$0xf0]
    %vm667 = vcmask 1047556
    %v668 = vsel %vm667, %v666, %v664
    %669 = vrot.lane.b32.xlu0 %v668, 64
    %v670 = vpop.permute.xlu0 %669
    %vm671 = vcmask 1048064
    %s672 = scalar_lea.vmem [#allocation0], 704
    %673 = vst.msk [vmem:[%s672] sm:$0xf] %vm671, %v670
    %s674 = scalar_lea.vmem [#allocation0], 708
    %675 = vst.msk [vmem:[%s674] sm:$0xf0] %vm671, %v670
    %s676 = scalar_lea.vmem %s0, 737
    %v677 = vld [vmem:[%s676] ss:$8 sm:$0xf]
    %s678 = scalar_lea.vmem %s0, 707
    %v679 = vld [vmem:[%s678] ss:$8 sm:$0xf0]
    %vm680 = vcmask 1047556
    %v681 = vsel %vm680, %v679, %v677
    %682 = vrot.lane.b32.xlu0 %v681, 64
    %v683 = vpop.permute.xlu0 %682
    %vm684 = vcmask 1048064
    %s685 = scalar_lea.vmem [#allocation0], 736
    %686 = vst.msk [vmem:[%s685] sm:$0xf] %vm684, %v683
    %s687 = scalar_lea.vmem [#allocation0], 740
    %688 = vst.msk [vmem:[%s687] sm:$0xf0] %vm684, %v683
    %s689 = scalar_lea.vmem %s0, 769
    %v690 = vld [vmem:[%s689] ss:$8 sm:$0xf]
    %s691 = scalar_lea.vmem %s0, 739
    %v692 = vld [vmem:[%s691] ss:$8 sm:$0xf0]
    %vm693 = vcmask 1047556
    %v694 = vsel %vm693, %v692, %v690
    %695 = vrot.lane.b32.xlu0 %v694, 64
    %v696 = vpop.permute.xlu0 %695
    %vm697 = vcmask 1048064
    %s698 = scalar_lea.vmem [#allocation0], 768
    %699 = vst.msk [vmem:[%s698] sm:$0xf] %vm697, %v696
    %s700 = scalar_lea.vmem [#allocation0], 772
    %701 = vst.msk [vmem:[%s700] sm:$0xf0] %vm697, %v696
    %s702 = scalar_lea.vmem %s0, 801
    %v703 = vld [vmem:[%s702] ss:$8 sm:$0xf]
    %s704 = scalar_lea.vmem %s0, 771
    %v705 = vld [vmem:[%s704] ss:$8 sm:$0xf0]
    %vm706 = vcmask 1047556
    %v707 = vsel %vm706, %v705, %v703
    %708 = vrot.lane.b32.xlu0 %v707, 64
    %v709 = vpop.permute.xlu0 %708
    %vm710 = vcmask 1048064
    %s711 = scalar_lea.vmem [#allocation0], 800
    %712 = vst.msk [vmem:[%s711] sm:$0xf] %vm710, %v709
    %s713 = scalar_lea.vmem [#allocation0], 804
    %714 = vst.msk [vmem:[%s713] sm:$0xf0] %vm710, %v709
    %s715 = scalar_lea.vmem %s0, 833
    %v716 = vld [vmem:[%s715] ss:$8 sm:$0xf]
    %s717 = scalar_lea.vmem %s0, 803
    %v718 = vld [vmem:[%s717] ss:$8 sm:$0xf0]
    %vm719 = vcmask 1047556
    %v720 = vsel %vm719, %v718, %v716
    %721 = vrot.lane.b32.xlu0 %v720, 64
    %v722 = vpop.permute.xlu0 %721
    %vm723 = vcmask 1048064
    %s724 = scalar_lea.vmem [#allocation0], 832
    %725 = vst.msk [vmem:[%s724] sm:$0xf] %vm723, %v722
    %s726 = scalar_lea.vmem [#allocation0], 836
    %727 = vst.msk [vmem:[%s726] sm:$0xf0] %vm723, %v722
    %s728 = scalar_lea.vmem %s0, 5
    %v729 = vld [vmem:[%s728] ss:$8 sm:$0xf]
    %s730 = scalar_lea.vmem %s0, 4294967271
    %v731 = vld [vmem:[%s730] ss:$8 sm:$0xf0]
    %vm732 = vcmask 1047556
    %v733 = vsel %vm732, %v731, %v729
    %734 = vrot.lane.b32.xlu0 %v733, 64
    %v735 = vpop.permute.xlu0 %734
    %vm736 = vcmask 1048064
    %s737 = scalar_lea.vmem [#allocation0], 16
    %738 = vst.msk [vmem:[%s737] sm:$0xf] %vm736, %v735
    %s739 = scalar_lea.vmem [#allocation0], 20
    %740 = vst.msk [vmem:[%s739] sm:$0xf0] %vm736, %v735
    %s741 = scalar_lea.vmem %s0, 37
    %v742 = vld [vmem:[%s741] ss:$8 sm:$0xf]
    %s743 = scalar_lea.vmem %s0, 7
    %v744 = vld [vmem:[%s743] ss:$8 sm:$0xf0]
    %vm745 = vcmask 1047556
    %v746 = vsel %vm745, %v744, %v742
    %747 = vrot.lane.b32.xlu0 %v746, 64
    %v748 = vpop.permute.xlu0 %747
    %vm749 = vcmask 1048064
    %s750 = scalar_lea.vmem [#allocation0], 48
    %751 = vst.msk [vmem:[%s750] sm:$0xf] %vm749, %v748
    %s752 = scalar_lea.vmem [#allocation0], 52
    %753 = vst.msk [vmem:[%s752] sm:$0xf0] %vm749, %v748
    %s754 = scalar_lea.vmem %s0, 69
    %v755 = vld [vmem:[%s754] ss:$8 sm:$0xf]
    %s756 = scalar_lea.vmem %s0, 39
    %v757 = vld [vmem:[%s756] ss:$8 sm:$0xf0]
    %vm758 = vcmask 1047556
    %v759 = vsel %vm758, %v757, %v755
    %760 = vrot.lane.b32.xlu0 %v759, 64
    %v761 = vpop.permute.xlu0 %760
    %vm762 = vcmask 1048064
    %s763 = scalar_lea.vmem [#allocation0], 80
    %764 = vst.msk [vmem:[%s763] sm:$0xf] %vm762, %v761
    %s765 = scalar_lea.vmem [#allocation0], 84
    %766 = vst.msk [vmem:[%s765] sm:$0xf0] %vm762, %v761
    %s767 = scalar_lea.vmem %s0, 101
    %v768 = vld [vmem:[%s767] ss:$8 sm:$0xf]
    %s769 = scalar_lea.vmem %s0, 71
    %v770 = vld [vmem:[%s769] ss:$8 sm:$0xf0]
    %vm771 = vcmask 1047556
    %v772 = vsel %vm771, %v770, %v768
    %773 = vrot.lane.b32.xlu0 %v772, 64
    %v774 = vpop.permute.xlu0 %773
    %vm775 = vcmask 1048064
    %s776 = scalar_lea.vmem [#allocation0], 112
    %777 = vst.msk [vmem:[%s776] sm:$0xf] %vm775, %v774
    %s778 = scalar_lea.vmem [#allocation0], 116
    %779 = vst.msk [vmem:[%s778] sm:$0xf0] %vm775, %v774
    %s780 = scalar_lea.vmem %s0, 133
    %v781 = vld [vmem:[%s780] ss:$8 sm:$0xf]
    %s782 = scalar_lea.vmem %s0, 103
    %v783 = vld [vmem:[%s782] ss:$8 sm:$0xf0]
    %vm784 = vcmask 1047556
    %v785 = vsel %vm784, %v783, %v781
    %786 = vrot.lane.b32.xlu0 %v785, 64
    %v787 = vpop.permute.xlu0 %786
    %vm788 = vcmask 1048064
    %s789 = scalar_lea.vmem [#allocation0], 144
    %790 = vst.msk [vmem:[%s789] sm:$0xf] %vm788, %v787
    %s791 = scalar_lea.vmem [#allocation0], 148
    %792 = vst.msk [vmem:[%s791] sm:$0xf0] %vm788, %v787
    %s793 = scalar_lea.vmem %s0, 165
    %v794 = vld [vmem:[%s793] ss:$8 sm:$0xf]
    %s795 = scalar_lea.vmem %s0, 135
    %v796 = vld [vmem:[%s795] ss:$8 sm:$0xf0]
    %vm797 = vcmask 1047556
    %v798 = vsel %vm797, %v796, %v794
    %799 = vrot.lane.b32.xlu0 %v798, 64
    %v800 = vpop.permute.xlu0 %799
    %vm801 = vcmask 1048064
    %s802 = scalar_lea.vmem [#allocation0], 176
    %803 = vst.msk [vmem:[%s802] sm:$0xf] %vm801, %v800
    %s804 = scalar_lea.vmem [#allocation0], 180
    %805 = vst.msk [vmem:[%s804] sm:$0xf0] %vm801, %v800
    %s806 = scalar_lea.vmem %s0, 197
    %v807 = vld [vmem:[%s806] ss:$8 sm:$0xf]
    %s808 = scalar_lea.vmem %s0, 167
    %v809 = vld [vmem:[%s808] ss:$8 sm:$0xf0]
    %vm810 = vcmask 1047556
    %v811 = vsel %vm810, %v809, %v807
    %812 = vrot.lane.b32.xlu0 %v811, 64
    %v813 = vpop.permute.xlu0 %812
    %vm814 = vcmask 1048064
    %s815 = scalar_lea.vmem [#allocation0], 208
    %816 = vst.msk [vmem:[%s815] sm:$0xf] %vm814, %v813
    %s817 = scalar_lea.vmem [#allocation0], 212
    %818 = vst.msk [vmem:[%s817] sm:$0xf0] %vm814, %v813
    %s819 = scalar_lea.vmem %s0, 229
    %v820 = vld [vmem:[%s819] ss:$8 sm:$0xf]
    %s821 = scalar_lea.vmem %s0, 199
    %v822 = vld [vmem:[%s821] ss:$8 sm:$0xf0]
    %vm823 = vcmask 1047556
    %v824 = vsel %vm823, %v822, %v820
    %825 = vrot.lane.b32.xlu0 %v824, 64
    %v826 = vpop.permute.xlu0 %825
    %vm827 = vcmask 1048064
    %s828 = scalar_lea.vmem [#allocation0], 240
    %829 = vst.msk [vmem:[%s828] sm:$0xf] %vm827, %v826
    %s830 = scalar_lea.vmem [#allocation0], 244
    %831 = vst.msk [vmem:[%s830] sm:$0xf0] %vm827, %v826
    %s832 = scalar_lea.vmem %s0, 261
    %v833 = vld [vmem:[%s832] ss:$8 sm:$0xf]
    %s834 = scalar_lea.vmem %s0, 231
    %v835 = vld [vmem:[%s834] ss:$8 sm:$0xf0]
    %vm836 = vcmask 1047556
    %v837 = vsel %vm836, %v835, %v833
    %838 = vrot.lane.b32.xlu0 %v837, 64
    %v839 = vpop.permute.xlu0 %838
    %vm840 = vcmask 1048064
    %s841 = scalar_lea.vmem [#allocation0], 272
    %842 = vst.msk [vmem:[%s841] sm:$0xf] %vm840, %v839
    %s843 = scalar_lea.vmem [#allocation0], 276
    %844 = vst.msk [vmem:[%s843] sm:$0xf0] %vm840, %v839
    %s845 = scalar_lea.vmem %s0, 293
    %v846 = vld [vmem:[%s845] ss:$8 sm:$0xf]
    %s847 = scalar_lea.vmem %s0, 263
    %v848 = vld [vmem:[%s847] ss:$8 sm:$0xf0]
    %vm849 = vcmask 1047556
    %v850 = vsel %vm849, %v848, %v846
    %851 = vrot.lane.b32.xlu0 %v850, 64
    %v852 = vpop.permute.xlu0 %851
    %vm853 = vcmask 1048064
    %s854 = scalar_lea.vmem [#allocation0], 304
    %855 = vst.msk [vmem:[%s854] sm:$0xf] %vm853, %v852
    %s856 = scalar_lea.vmem [#allocation0], 308
    %857 = vst.msk [vmem:[%s856] sm:$0xf0] %vm853, %v852
    %s858 = scalar_lea.vmem %s0, 325
    %v859 = vld [vmem:[%s858] ss:$8 sm:$0xf]
    %s860 = scalar_lea.vmem %s0, 295
    %v861 = vld [vmem:[%s860] ss:$8 sm:$0xf0]
    %vm862 = vcmask 1047556
    %v863 = vsel %vm862, %v861, %v859
    %864 = vrot.lane.b32.xlu0 %v863, 64
    %v865 = vpop.permute.xlu0 %864
    %vm866 = vcmask 1048064
    %s867 = scalar_lea.vmem [#allocation0], 336
    %868 = vst.msk [vmem:[%s867] sm:$0xf] %vm866, %v865
    %s869 = scalar_lea.vmem [#allocation0], 340
    %870 = vst.msk [vmem:[%s869] sm:$0xf0] %vm866, %v865
    %s871 = scalar_lea.vmem %s0, 357
    %v872 = vld [vmem:[%s871] ss:$8 sm:$0xf]
    %s873 = scalar_lea.vmem %s0, 327
    %v874 = vld [vmem:[%s873] ss:$8 sm:$0xf0]
    %vm875 = vcmask 1047556
    %v876 = vsel %vm875, %v874, %v872
    %877 = vrot.lane.b32.xlu0 %v876, 64
    %v878 = vpop.permute.xlu0 %877
    %vm879 = vcmask 1048064
    %s880 = scalar_lea.vmem [#allocation0], 368
    %881 = vst.msk [vmem:[%s880] sm:$0xf] %vm879, %v878
    %s882 = scalar_lea.vmem [#allocation0], 372
    %883 = vst.msk [vmem:[%s882] sm:$0xf0] %vm879, %v878
    %s884 = scalar_lea.vmem %s0, 389
    %v885 = vld [vmem:[%s884] ss:$8 sm:$0xf]
    %s886 = scalar_lea.vmem %s0, 359
    %v887 = vld [vmem:[%s886] ss:$8 sm:$0xf0]
    %vm888 = vcmask 1047556
    %v889 = vsel %vm888, %v887, %v885
    %890 = vrot.lane.b32.xlu0 %v889, 64
    %v891 = vpop.permute.xlu0 %890
    %vm892 = vcmask 1048064
    %s893 = scalar_lea.vmem [#allocation0], 400
    %894 = vst.msk [vmem:[%s893] sm:$0xf] %vm892, %v891
    %s895 = scalar_lea.vmem [#allocation0], 404
    %896 = vst.msk [vmem:[%s895] sm:$0xf0] %vm892, %v891
    %s897 = scalar_lea.vmem %s0, 421
    %v898 = vld [vmem:[%s897] ss:$8 sm:$0xf]
    %s899 = scalar_lea.vmem %s0, 391
    %v900 = vld [vmem:[%s899] ss:$8 sm:$0xf0]
    %vm901 = vcmask 1047556
    %v902 = vsel %vm901, %v900, %v898
    %903 = vrot.lane.b32.xlu0 %v902, 64
    %v904 = vpop.permute.xlu0 %903
    %vm905 = vcmask 1048064
    %s906 = scalar_lea.vmem [#allocation0], 432
    %907 = vst.msk [vmem:[%s906] sm:$0xf] %vm905, %v904
    %s908 = scalar_lea.vmem [#allocation0], 436
    %909 = vst.msk [vmem:[%s908] sm:$0xf0] %vm905, %v904
    %s910 = scalar_lea.vmem %s0, 453
    %v911 = vld [vmem:[%s910] ss:$8 sm:$0xf]
    %s912 = scalar_lea.vmem %s0, 423
    %v913 = vld [vmem:[%s912] ss:$8 sm:$0xf0]
    %vm914 = vcmask 1047556
    %v915 = vsel %vm914, %v913, %v911
    %916 = vrot.lane.b32.xlu0 %v915, 64
    %v917 = vpop.permute.xlu0 %916
    %vm918 = vcmask 1048064
    %s919 = scalar_lea.vmem [#allocation0], 464
    %920 = vst.msk [vmem:[%s919] sm:$0xf] %vm918, %v917
    %s921 = scalar_lea.vmem [#allocation0], 468
    %922 = vst.msk [vmem:[%s921] sm:$0xf0] %vm918, %v917
    %s923 = scalar_lea.vmem %s0, 485
    %v924 = vld [vmem:[%s923] ss:$8 sm:$0xf]
    %s925 = scalar_lea.vmem %s0, 455
    %v926 = vld [vmem:[%s925] ss:$8 sm:$0xf0]
    %vm927 = vcmask 1047556
    %v928 = vsel %vm927, %v926, %v924
    %929 = vrot.lane.b32.xlu0 %v928, 64
    %v930 = vpop.permute.xlu0 %929
    %vm931 = vcmask 1048064
    %s932 = scalar_lea.vmem [#allocation0], 496
    %933 = vst.msk [vmem:[%s932] sm:$0xf] %vm931, %v930
    %s934 = scalar_lea.vmem [#allocation0], 500
    %935 = vst.msk [vmem:[%s934] sm:$0xf0] %vm931, %v930
    %s936 = scalar_lea.vmem %s0, 517
    %v937 = vld [vmem:[%s936] ss:$8 sm:$0xf]
    %s938 = scalar_lea.vmem %s0, 487
    %v939 = vld [vmem:[%s938] ss:$8 sm:$0xf0]
    %vm940 = vcmask 1047556
    %v941 = vsel %vm940, %v939, %v937
    %942 = vrot.lane.b32.xlu0 %v941, 64
    %v943 = vpop.permute.xlu0 %942
    %vm944 = vcmask 1048064
    %s945 = scalar_lea.vmem [#allocation0], 528
    %946 = vst.msk [vmem:[%s945] sm:$0xf] %vm944, %v943
    %s947 = scalar_lea.vmem [#allocation0], 532
    %948 = vst.msk [vmem:[%s947] sm:$0xf0] %vm944, %v943
    %s949 = scalar_lea.vmem %s0, 549
    %v950 = vld [vmem:[%s949] ss:$8 sm:$0xf]
    %s951 = scalar_lea.vmem %s0, 519
    %v952 = vld [vmem:[%s951] ss:$8 sm:$0xf0]
    %vm953 = vcmask 1047556
    %v954 = vsel %vm953, %v952, %v950
    %955 = vrot.lane.b32.xlu0 %v954, 64
    %v956 = vpop.permute.xlu0 %955
    %vm957 = vcmask 1048064
    %s958 = scalar_lea.vmem [#allocation0], 560
    %959 = vst.msk [vmem:[%s958] sm:$0xf] %vm957, %v956
    %s960 = scalar_lea.vmem [#allocation0], 564
    %961 = vst.msk [vmem:[%s960] sm:$0xf0] %vm957, %v956
    %s962 = scalar_lea.vmem %s0, 581
    %v963 = vld [vmem:[%s962] ss:$8 sm:$0xf]
    %s964 = scalar_lea.vmem %s0, 551
    %v965 = vld [vmem:[%s964] ss:$8 sm:$0xf0]
    %vm966 = vcmask 1047556
    %v967 = vsel %vm966, %v965, %v963
    %968 = vrot.lane.b32.xlu0 %v967, 64
    %v969 = vpop.permute.xlu0 %968
    %vm970 = vcmask 1048064
    %s971 = scalar_lea.vmem [#allocation0], 592
    %972 = vst.msk [vmem:[%s971] sm:$0xf] %vm970, %v969
    %s973 = scalar_lea.vmem [#allocation0], 596
    %974 = vst.msk [vmem:[%s973] sm:$0xf0] %vm970, %v969
    %s975 = scalar_lea.vmem %s0, 613
    %v976 = vld [vmem:[%s975] ss:$8 sm:$0xf]
    %s977 = scalar_lea.vmem %s0, 583
    %v978 = vld [vmem:[%s977] ss:$8 sm:$0xf0]
    %vm979 = vcmask 1047556
    %v980 = vsel %vm979, %v978, %v976
    %981 = vrot.lane.b32.xlu0 %v980, 64
    %v982 = vpop.permute.xlu0 %981
    %vm983 = vcmask 1048064
    %s984 = scalar_lea.vmem [#allocation0], 624
    %985 = vst.msk [vmem:[%s984] sm:$0xf] %vm983, %v982
    %s986 = scalar_lea.vmem [#allocation0], 628
    %987 = vst.msk [vmem:[%s986] sm:$0xf0] %vm983, %v982
    %s988 = scalar_lea.vmem %s0, 645
    %v989 = vld [vmem:[%s988] ss:$8 sm:$0xf]
    %s990 = scalar_lea.vmem %s0, 615
    %v991 = vld [vmem:[%s990] ss:$8 sm:$0xf0]
    %vm992 = vcmask 1047556
    %v993 = vsel %vm992, %v991, %v989
    %994 = vrot.lane.b32.xlu0 %v993, 64
    %v995 = vpop.permute.xlu0 %994
    %vm996 = vcmask 1048064
    %s997 = scalar_lea.vmem [#allocation0], 656
    %998 = vst.msk [vmem:[%s997] sm:$0xf] %vm996, %v995
    %s999 = scalar_lea.vmem [#allocation0], 660
    %1000 = vst.msk [vmem:[%s999] sm:$0xf0] %vm996, %v995
    %s1001 = scalar_lea.vmem %s0, 677
    %v1002 = vld [vmem:[%s1001] ss:$8 sm:$0xf]
    %s1003 = scalar_lea.vmem %s0, 647
    %v1004 = vld [vmem:[%s1003] ss:$8 sm:$0xf0]
    %vm1005 = vcmask 1047556
    %v1006 = vsel %vm1005, %v1004, %v1002
    %1007 = vrot.lane.b32.xlu0 %v1006, 64
    %v1008 = vpop.permute.xlu0 %1007
    %vm1009 = vcmask 1048064
    %s1010 = scalar_lea.vmem [#allocation0], 688
    %1011 = vst.msk [vmem:[%s1010] sm:$0xf] %vm1009, %v1008
    %s1012 = scalar_lea.vmem [#allocation0], 692
    %1013 = vst.msk [vmem:[%s1012] sm:$0xf0] %vm1009, %v1008
    %s1014 = scalar_lea.vmem %s0, 709
    %v1015 = vld [vmem:[%s1014] ss:$8 sm:$0xf]
    %s1016 = scalar_lea.vmem %s0, 679
    %v1017 = vld [vmem:[%s1016] ss:$8 sm:$0xf0]
    %vm1018 = vcmask 1047556
    %v1019 = vsel %vm1018, %v1017, %v1015
    %1020 = vrot.lane.b32.xlu0 %v1019, 64
    %v1021 = vpop.permute.xlu0 %1020
    %vm1022 = vcmask 1048064
    %s1023 = scalar_lea.vmem [#allocation0], 720
    %1024 = vst.msk [vmem:[%s1023] sm:$0xf] %vm1022, %v1021
    %s1025 = scalar_lea.vmem [#allocation0], 724
    %1026 = vst.msk [vmem:[%s1025] sm:$0xf0] %vm1022, %v1021
    %s1027 = scalar_lea.vmem %s0, 741
    %v1028 = vld [vmem:[%s1027] ss:$8 sm:$0xf]
    %s1029 = scalar_lea.vmem %s0, 711
    %v1030 = vld [vmem:[%s1029] ss:$8 sm:$0xf0]
    %vm1031 = vcmask 1047556
    %v1032 = vsel %vm1031, %v1030, %v1028
    %1033 = vrot.lane.b32.xlu0 %v1032, 64
    %v1034 = vpop.permute.xlu0 %1033
    %vm1035 = vcmask 1048064
    %s1036 = scalar_lea.vmem [#allocation0], 752
    %1037 = vst.msk [vmem:[%s1036] sm:$0xf] %vm1035, %v1034
    %s1038 = scalar_lea.vmem [#allocation0], 756
    %1039 = vst.msk [vmem:[%s1038] sm:$0xf0] %vm1035, %v1034
    %s1040 = scalar_lea.vmem %s0, 773
    %v1041 = vld [vmem:[%s1040] ss:$8 sm:$0xf]
    %s1042 = scalar_lea.vmem %s0, 743
    %v1043 = vld [vmem:[%s1042] ss:$8 sm:$0xf0]
    %vm1044 = vcmask 1047556
    %v1045 = vsel %vm1044, %v1043, %v1041
    %1046 = vrot.lane.b32.xlu0 %v1045, 64
    %v1047 = vpop.permute.xlu0 %1046
    %vm1048 = vcmask 1048064
    %s1049 = scalar_lea.vmem [#allocation0], 784
    %1050 = vst.msk [vmem:[%s1049] sm:$0xf] %vm1048, %v1047
    %s1051 = scalar_lea.vmem [#allocation0], 788
    %1052 = vst.msk [vmem:[%s1051] sm:$0xf0] %vm1048, %v1047
    %s1053 = scalar_lea.vmem %s0, 805
    %v1054 = vld [vmem:[%s1053] ss:$8 sm:$0xf]
    %s1055 = scalar_lea.vmem %s0, 775
    %v1056 = vld [vmem:[%s1055] ss:$8 sm:$0xf0]
    %vm1057 = vcmask 1047556
    %v1058 = vsel %vm1057, %v1056, %v1054
    %1059 = vrot.lane.b32.xlu0 %v1058, 64
    %v1060 = vpop.permute.xlu0 %1059
    %vm1061 = vcmask 1048064
    %s1062 = scalar_lea.vmem [#allocation0], 816
    %1063 = vst.msk [vmem:[%s1062] sm:$0xf] %vm1061, %v1060
    %s1064 = scalar_lea.vmem [#allocation0], 820
    %1065 = vst.msk [vmem:[%s1064] sm:$0xf0] %vm1061, %v1060
    %s1066 = scalar_lea.vmem %s0, 837
    %v1067 = vld [vmem:[%s1066] ss:$8 sm:$0xf]
    %s1068 = scalar_lea.vmem %s0, 807
    %v1069 = vld [vmem:[%s1068] ss:$8 sm:$0xf0]
    %vm1070 = vcmask 1047556
    %v1071 = vsel %vm1070, %v1069, %v1067
    %1072 = vrot.lane.b32.xlu0 %v1071, 64
    %v1073 = vpop.permute.xlu0 %1072
    %vm1074 = vcmask 1048064
    %s1075 = scalar_lea.vmem [#allocation0], 848
    %1076 = vst.msk [vmem:[%s1075] sm:$0xf] %vm1074, %v1073
    %s1077 = scalar_lea.vmem [#allocation0], 852
    %1078 = vst.msk [vmem:[%s1077] sm:$0xf0] %vm1074, %v1073
    %s1080 = sshll.u32 1, 4
    %s1081 = ssub.s32 %s1080, 1
    %v1083 = vld [vmem:[#allocation0] sm:%s1081]
    %s1084 = sshll.u32 1, 4
    %s1085 = ssub.s32 %s1084, 1
    %1086 = vst [vmem:[%s1] sm:%s1085] %v1083
    %s1087 = scalar_lea.vmem [#allocation0], 8
    %v1088 = vld [vmem:[%s1087] sm:%s1081]
    %s1089 = sshll.u32 1, 4
    %s1090 = ssub.s32 %s1089, 1
    %s1091 = scalar_lea.vmem %s1, 4
    %1092 = vst [vmem:[%s1091] sm:%s1090] %v1088
    %s1093 = scalar_lea.vmem [#allocation0], 16
    %v1094 = vld [vmem:[%s1093] sm:%s1081]
    %s1095 = sshll.u32 1, 4
    %s1096 = ssub.s32 %s1095, 1
    %s1097 = smul.addr 4, 2
    %s1098 = scalar_lea.vmem %s1, %s1097
    %1099 = vst [vmem:[%s1098] sm:%s1096] %v1094
    %s1100 = scalar_lea.vmem [#allocation0], 24
    %v1101 = vld [vmem:[%s1100] sm:%s1081]
    %s1102 = sshll.u32 1, 4
    %s1103 = ssub.s32 %s1102, 1
    %s1104 = smul.addr 4, 3
    %s1105 = scalar_lea.vmem %s1, %s1104
    %1106 = vst [vmem:[%s1105] sm:%s1103] %v1101
    %s1107 = scalar_lea.vmem [#allocation0], 32
    %v1108 = vld [vmem:[%s1107] sm:%s1081]
    %s1109 = sshll.u32 1, 4
    %s1110 = ssub.s32 %s1109, 1
    %s1111 = smul.addr 4, 4
    %s1112 = scalar_lea.vmem %s1, %s1111
    %1113 = vst [vmem:[%s1112] sm:%s1110] %v1108
    %s1114 = scalar_lea.vmem [#allocation0], 40
    %v1115 = vld [vmem:[%s1114] sm:%s1081]
    %s1116 = sshll.u32 1, 4
    %s1117 = ssub.s32 %s1116, 1
    %s1118 = smul.addr 4, 5
    %s1119 = scalar_lea.vmem %s1, %s1118
    %1120 = vst [vmem:[%s1119] sm:%s1117] %v1115
    %s1121 = scalar_lea.vmem [#allocation0], 48
    %v1122 = vld [vmem:[%s1121] sm:%s1081]
    %s1123 = sshll.u32 1, 4
    %s1124 = ssub.s32 %s1123, 1
    %s1125 = smul.addr 4, 6
    %s1126 = scalar_lea.vmem %s1, %s1125
    %1127 = vst [vmem:[%s1126] sm:%s1124] %v1122
    %s1128 = scalar_lea.vmem [#allocation0], 56
    %v1129 = vld [vmem:[%s1128] sm:%s1081]
    %s1130 = sshll.u32 1, 4
    %s1131 = ssub.s32 %s1130, 1
    %s1132 = smul.addr 4, 7
    %s1133 = scalar_lea.vmem %s1, %s1132
    %1134 = vst [vmem:[%s1133] sm:%s1131] %v1129
    %s1135 = scalar_lea.vmem [#allocation0], 64
    %v1136 = vld [vmem:[%s1135] sm:%s1081]
    %s1137 = sshll.u32 1, 4
    %s1138 = ssub.s32 %s1137, 1
    %s1139 = smul.addr 4, 8
    %s1140 = scalar_lea.vmem %s1, %s1139
    %1141 = vst [vmem:[%s1140] sm:%s1138] %v1136
    %s1142 = scalar_lea.vmem [#allocation0], 72
    %v1143 = vld [vmem:[%s1142] sm:%s1081]
    %s1144 = sshll.u32 1, 4
    %s1145 = ssub.s32 %s1144, 1
    %s1146 = smul.addr 4, 9
    %s1147 = scalar_lea.vmem %s1, %s1146
    %1148 = vst [vmem:[%s1147] sm:%s1145] %v1143
    %s1149 = scalar_lea.vmem [#allocation0], 80
    %v1150 = vld [vmem:[%s1149] sm:%s1081]
    %s1151 = sshll.u32 1, 4
    %s1152 = ssub.s32 %s1151, 1
    %s1153 = smul.addr 4, 10
    %s1154 = scalar_lea.vmem %s1, %s1153
    %1155 = vst [vmem:[%s1154] sm:%s1152] %v1150
    %s1156 = scalar_lea.vmem [#allocation0], 88
    %v1157 = vld [vmem:[%s1156] sm:%s1081]
    %s1158 = sshll.u32 1, 4
    %s1159 = ssub.s32 %s1158, 1
    %s1160 = smul.addr 4, 11
    %s1161 = scalar_lea.vmem %s1, %s1160
    %1162 = vst [vmem:[%s1161] sm:%s1159] %v1157
    %s1163 = scalar_lea.vmem [#allocation0], 96
    %v1164 = vld [vmem:[%s1163] sm:%s1081]
    %s1165 = sshll.u32 1, 4
    %s1166 = ssub.s32 %s1165, 1
    %s1167 = smul.addr 4, 12
    %s1168 = scalar_lea.vmem %s1, %s1167
    %1169 = vst [vmem:[%s1168] sm:%s1166] %v1164
    %s1170 = scalar_lea.vmem [#allocation0], 104
    %v1171 = vld [vmem:[%s1170] sm:%s1081]
    %s1172 = sshll.u32 1, 4
    %s1173 = ssub.s32 %s1172, 1
    %s1174 = smul.addr 4, 13
    %s1175 = scalar_lea.vmem %s1, %s1174
    %1176 = vst [vmem:[%s1175] sm:%s1173] %v1171
    %s1177 = scalar_lea.vmem [#allocation0], 112
    %v1178 = vld [vmem:[%s1177] sm:%s1081]
    %s1179 = sshll.u32 1, 4
    %s1180 = ssub.s32 %s1179, 1
    %s1181 = smul.addr 4, 14
    %s1182 = scalar_lea.vmem %s1, %s1181
    %1183 = vst [vmem:[%s1182] sm:%s1180] %v1178
    %s1184 = scalar_lea.vmem [#allocation0], 120
    %v1185 = vld [vmem:[%s1184] sm:%s1081]
    %s1186 = sshll.u32 1, 4
    %s1187 = ssub.s32 %s1186, 1
    %s1188 = smul.addr 4, 15
    %s1189 = scalar_lea.vmem %s1, %s1188
    %1190 = vst [vmem:[%s1189] sm:%s1187] %v1185
    %s1191 = scalar_lea.vmem [#allocation0], 128
    %v1192 = vld [vmem:[%s1191] sm:%s1081]
    %s1193 = sshll.u32 1, 4
    %s1194 = ssub.s32 %s1193, 1
    %s1195 = smul.addr 4, 16
    %s1196 = scalar_lea.vmem %s1, %s1195
    %1197 = vst [vmem:[%s1196] sm:%s1194] %v1192
    %s1198 = scalar_lea.vmem [#allocation0], 136
    %v1199 = vld [vmem:[%s1198] sm:%s1081]
    %s1200 = sshll.u32 1, 4
    %s1201 = ssub.s32 %s1200, 1
    %s1202 = smul.addr 4, 17
    %s1203 = scalar_lea.vmem %s1, %s1202
    %1204 = vst [vmem:[%s1203] sm:%s1201] %v1199
    %s1205 = scalar_lea.vmem [#allocation0], 144
    %v1206 = vld [vmem:[%s1205] sm:%s1081]
    %s1207 = sshll.u32 1, 4
    %s1208 = ssub.s32 %s1207, 1
    %s1209 = smul.addr 4, 18
    %s1210 = scalar_lea.vmem %s1, %s1209
    %1211 = vst [vmem:[%s1210] sm:%s1208] %v1206
    %s1212 = scalar_lea.vmem [#allocation0], 152
    %v1213 = vld [vmem:[%s1212] sm:%s1081]
    %s1214 = sshll.u32 1, 4
    %s1215 = ssub.s32 %s1214, 1
    %s1216 = smul.addr 4, 19
    %s1217 = scalar_lea.vmem %s1, %s1216
    %1218 = vst [vmem:[%s1217] sm:%s1215] %v1213
    %s1219 = scalar_lea.vmem [#allocation0], 160
    %v1220 = vld [vmem:[%s1219] sm:%s1081]
    %s1221 = sshll.u32 1, 4
    %s1222 = ssub.s32 %s1221, 1
    %s1223 = smul.addr 4, 20
    %s1224 = scalar_lea.vmem %s1, %s1223
    %1225 = vst [vmem:[%s1224] sm:%s1222] %v1220
    %s1226 = scalar_lea.vmem [#allocation0], 168
    %v1227 = vld [vmem:[%s1226] sm:%s1081]
    %s1228 = sshll.u32 1, 4
    %s1229 = ssub.s32 %s1228, 1
    %s1230 = smul.addr 4, 21
    %s1231 = scalar_lea.vmem %s1, %s1230
    %1232 = vst [vmem:[%s1231] sm:%s1229] %v1227
    %s1233 = scalar_lea.vmem [#allocation0], 176
    %v1234 = vld [vmem:[%s1233] sm:%s1081]
    %s1235 = sshll.u32 1, 4
    %s1236 = ssub.s32 %s1235, 1
    %s1237 = smul.addr 4, 22
    %s1238 = scalar_lea.vmem %s1, %s1237
    %1239 = vst [vmem:[%s1238] sm:%s1236] %v1234
    %s1240 = scalar_lea.vmem [#allocation0], 184
    %v1241 = vld [vmem:[%s1240] sm:%s1081]
    %s1242 = sshll.u32 1, 4
    %s1243 = ssub.s32 %s1242, 1
    %s1244 = smul.addr 4, 23
    %s1245 = scalar_lea.vmem %s1, %s1244
    %1246 = vst [vmem:[%s1245] sm:%s1243] %v1241
    %s1247 = scalar_lea.vmem [#allocation0], 192
    %v1248 = vld [vmem:[%s1247] sm:%s1081]
    %s1249 = sshll.u32 1, 4
    %s1250 = ssub.s32 %s1249, 1
    %s1251 = smul.addr 4, 24
    %s1252 = scalar_lea.vmem %s1, %s1251
    %1253 = vst [vmem:[%s1252] sm:%s1250] %v1248
    %s1254 = scalar_lea.vmem [#allocation0], 200
    %v1255 = vld [vmem:[%s1254] sm:%s1081]
    %s1256 = sshll.u32 1, 4
    %s1257 = ssub.s32 %s1256, 1
    %s1258 = smul.addr 4, 25
    %s1259 = scalar_lea.vmem %s1, %s1258
    %1260 = vst [vmem:[%s1259] sm:%s1257] %v1255
    %s1261 = scalar_lea.vmem [#allocation0], 208
    %v1262 = vld [vmem:[%s1261] sm:%s1081]
    %s1263 = sshll.u32 1, 4
    %s1264 = ssub.s32 %s1263, 1
    %s1265 = smul.addr 4, 26
    %s1266 = scalar_lea.vmem %s1, %s1265
    %1267 = vst [vmem:[%s1266] sm:%s1264] %v1262
    %s1268 = scalar_lea.vmem [#allocation0], 216
    %v1269 = vld [vmem:[%s1268] sm:%s1081]
    %s1270 = sshll.u32 1, 4
    %s1271 = ssub.s32 %s1270, 1
    %s1272 = smul.addr 4, 27
    %s1273 = scalar_lea.vmem %s1, %s1272
    %1274 = vst [vmem:[%s1273] sm:%s1271] %v1269
    %s1275 = scalar_lea.vmem [#allocation0], 224
    %v1276 = vld [vmem:[%s1275] sm:%s1081]
    %s1277 = sshll.u32 1, 4
    %s1278 = ssub.s32 %s1277, 1
    %s1279 = smul.addr 4, 28
    %s1280 = scalar_lea.vmem %s1, %s1279
    %1281 = vst [vmem:[%s1280] sm:%s1278] %v1276
    %s1282 = scalar_lea.vmem [#allocation0], 232
    %v1283 = vld [vmem:[%s1282] sm:%s1081]
    %s1284 = sshll.u32 1, 4
    %s1285 = ssub.s32 %s1284, 1
    %s1286 = smul.addr 4, 29
    %s1287 = scalar_lea.vmem %s1, %s1286
    %1288 = vst [vmem:[%s1287] sm:%s1285] %v1283
    %s1289 = scalar_lea.vmem [#allocation0], 240
    %v1290 = vld [vmem:[%s1289] sm:%s1081]
    %s1291 = sshll.u32 1, 4
    %s1292 = ssub.s32 %s1291, 1
    %s1293 = smul.addr 4, 30
    %s1294 = scalar_lea.vmem %s1, %s1293
    %1295 = vst [vmem:[%s1294] sm:%s1292] %v1290
    %s1296 = scalar_lea.vmem [#allocation0], 248
    %v1297 = vld [vmem:[%s1296] sm:%s1081]
    %s1298 = sshll.u32 1, 4
    %s1299 = ssub.s32 %s1298, 1
    %s1300 = smul.addr 4, 31
    %s1301 = scalar_lea.vmem %s1, %s1300
    %1302 = vst [vmem:[%s1301] sm:%s1299] %v1297
    %s1303 = scalar_lea.vmem [#allocation0], 256
    %v1304 = vld [vmem:[%s1303] sm:%s1081]
    %s1305 = sshll.u32 1, 4
    %s1306 = ssub.s32 %s1305, 1
    %s1307 = smul.addr 4, 32
    %s1308 = scalar_lea.vmem %s1, %s1307
    %1309 = vst [vmem:[%s1308] sm:%s1306] %v1304
    %s1310 = scalar_lea.vmem [#allocation0], 264
    %v1311 = vld [vmem:[%s1310] sm:%s1081]
    %s1312 = sshll.u32 1, 4
    %s1313 = ssub.s32 %s1312, 1
    %s1314 = smul.addr 4, 33
    %s1315 = scalar_lea.vmem %s1, %s1314
    %1316 = vst [vmem:[%s1315] sm:%s1313] %v1311
    %s1317 = scalar_lea.vmem [#allocation0], 272
    %v1318 = vld [vmem:[%s1317] sm:%s1081]
    %s1319 = sshll.u32 1, 4
    %s1320 = ssub.s32 %s1319, 1
    %s1321 = smul.addr 4, 34
    %s1322 = scalar_lea.vmem %s1, %s1321
    %1323 = vst [vmem:[%s1322] sm:%s1320] %v1318
    %s1324 = scalar_lea.vmem [#allocation0], 280
    %v1325 = vld [vmem:[%s1324] sm:%s1081]
    %s1326 = sshll.u32 1, 4
    %s1327 = ssub.s32 %s1326, 1
    %s1328 = smul.addr 4, 35
    %s1329 = scalar_lea.vmem %s1, %s1328
    %1330 = vst [vmem:[%s1329] sm:%s1327] %v1325
    %s1331 = scalar_lea.vmem [#allocation0], 288
    %v1332 = vld [vmem:[%s1331] sm:%s1081]
    %s1333 = sshll.u32 1, 4
    %s1334 = ssub.s32 %s1333, 1
    %s1335 = smul.addr 4, 36
    %s1336 = scalar_lea.vmem %s1, %s1335
    %1337 = vst [vmem:[%s1336] sm:%s1334] %v1332
    %s1338 = scalar_lea.vmem [#allocation0], 296
    %v1339 = vld [vmem:[%s1338] sm:%s1081]
    %s1340 = sshll.u32 1, 4
    %s1341 = ssub.s32 %s1340, 1
    %s1342 = smul.addr 4, 37
    %s1343 = scalar_lea.vmem %s1, %s1342
    %1344 = vst [vmem:[%s1343] sm:%s1341] %v1339
    %s1345 = scalar_lea.vmem [#allocation0], 304
    %v1346 = vld [vmem:[%s1345] sm:%s1081]
    %s1347 = sshll.u32 1, 4
    %s1348 = ssub.s32 %s1347, 1
    %s1349 = smul.addr 4, 38
    %s1350 = scalar_lea.vmem %s1, %s1349
    %1351 = vst [vmem:[%s1350] sm:%s1348] %v1346
    %s1352 = scalar_lea.vmem [#allocation0], 312
    %v1353 = vld [vmem:[%s1352] sm:%s1081]
    %s1354 = sshll.u32 1, 4
    %s1355 = ssub.s32 %s1354, 1
    %s1356 = smul.addr 4, 39
    %s1357 = scalar_lea.vmem %s1, %s1356
    %1358 = vst [vmem:[%s1357] sm:%s1355] %v1353
    %s1359 = scalar_lea.vmem [#allocation0], 320
    %v1360 = vld [vmem:[%s1359] sm:%s1081]
    %s1361 = sshll.u32 1, 4
    %s1362 = ssub.s32 %s1361, 1
    %s1363 = smul.addr 4, 40
    %s1364 = scalar_lea.vmem %s1, %s1363
    %1365 = vst [vmem:[%s1364] sm:%s1362] %v1360
    %s1366 = scalar_lea.vmem [#allocation0], 328
    %v1367 = vld [vmem:[%s1366] sm:%s1081]
    %s1368 = sshll.u32 1, 4
    %s1369 = ssub.s32 %s1368, 1
    %s1370 = smul.addr 4, 41
    %s1371 = scalar_lea.vmem %s1, %s1370
    %1372 = vst [vmem:[%s1371] sm:%s1369] %v1367
    %s1373 = scalar_lea.vmem [#allocation0], 336
    %v1374 = vld [vmem:[%s1373] sm:%s1081]
    %s1375 = sshll.u32 1, 4
    %s1376 = ssub.s32 %s1375, 1
    %s1377 = smul.addr 4, 42
    %s1378 = scalar_lea.vmem %s1, %s1377
    %1379 = vst [vmem:[%s1378] sm:%s1376] %v1374
    %s1380 = scalar_lea.vmem [#allocation0], 344
    %v1381 = vld [vmem:[%s1380] sm:%s1081]
    %s1382 = sshll.u32 1, 4
    %s1383 = ssub.s32 %s1382, 1
    %s1384 = smul.addr 4, 43
    %s1385 = scalar_lea.vmem %s1, %s1384
    %1386 = vst [vmem:[%s1385] sm:%s1383] %v1381
    %s1387 = scalar_lea.vmem [#allocation0], 352
    %v1388 = vld [vmem:[%s1387] sm:%s1081]
    %s1389 = sshll.u32 1, 4
    %s1390 = ssub.s32 %s1389, 1
    %s1391 = smul.addr 4, 44
    %s1392 = scalar_lea.vmem %s1, %s1391
    %1393 = vst [vmem:[%s1392] sm:%s1390] %v1388
    %s1394 = scalar_lea.vmem [#allocation0], 360
    %v1395 = vld [vmem:[%s1394] sm:%s1081]
    %s1396 = sshll.u32 1, 4
    %s1397 = ssub.s32 %s1396, 1
    %s1398 = smul.addr 4, 45
    %s1399 = scalar_lea.vmem %s1, %s1398
    %1400 = vst [vmem:[%s1399] sm:%s1397] %v1395
    %s1401 = scalar_lea.vmem [#allocation0], 368
    %v1402 = vld [vmem:[%s1401] sm:%s1081]
    %s1403 = sshll.u32 1, 4
    %s1404 = ssub.s32 %s1403, 1
    %s1405 = smul.addr 4, 46
    %s1406 = scalar_lea.vmem %s1, %s1405
    %1407 = vst [vmem:[%s1406] sm:%s1404] %v1402
    %s1408 = scalar_lea.vmem [#allocation0], 376
    %v1409 = vld [vmem:[%s1408] sm:%s1081]
    %s1410 = sshll.u32 1, 4
    %s1411 = ssub.s32 %s1410, 1
    %s1412 = smul.addr 4, 47
    %s1413 = scalar_lea.vmem %s1, %s1412
    %1414 = vst [vmem:[%s1413] sm:%s1411] %v1409
    %s1415 = scalar_lea.vmem [#allocation0], 384
    %v1416 = vld [vmem:[%s1415] sm:%s1081]
    %s1417 = sshll.u32 1, 4
    %s1418 = ssub.s32 %s1417, 1
    %s1419 = smul.addr 4, 48
    %s1420 = scalar_lea.vmem %s1, %s1419
    %1421 = vst [vmem:[%s1420] sm:%s1418] %v1416
    %s1422 = scalar_lea.vmem [#allocation0], 392
    %v1423 = vld [vmem:[%s1422] sm:%s1081]
    %s1424 = sshll.u32 1, 4
    %s1425 = ssub.s32 %s1424, 1
    %s1426 = smul.addr 4, 49
    %s1427 = scalar_lea.vmem %s1, %s1426
    %1428 = vst [vmem:[%s1427] sm:%s1425] %v1423
    %s1429 = scalar_lea.vmem [#allocation0], 400
    %v1430 = vld [vmem:[%s1429] sm:%s1081]
    %s1431 = sshll.u32 1, 4
    %s1432 = ssub.s32 %s1431, 1
    %s1433 = smul.addr 4, 50
    %s1434 = scalar_lea.vmem %s1, %s1433
    %1435 = vst [vmem:[%s1434] sm:%s1432] %v1430
    %s1436 = scalar_lea.vmem [#allocation0], 408
    %v1437 = vld [vmem:[%s1436] sm:%s1081]
    %s1438 = sshll.u32 1, 4
    %s1439 = ssub.s32 %s1438, 1
    %s1440 = smul.addr 4, 51
    %s1441 = scalar_lea.vmem %s1, %s1440
    %1442 = vst [vmem:[%s1441] sm:%s1439] %v1437
    %s1443 = scalar_lea.vmem [#allocation0], 416
    %v1444 = vld [vmem:[%s1443] sm:%s1081]
    %s1445 = sshll.u32 1, 4
    %s1446 = ssub.s32 %s1445, 1
    %s1447 = smul.addr 4, 52
    %s1448 = scalar_lea.vmem %s1, %s1447
    %1449 = vst [vmem:[%s1448] sm:%s1446] %v1444
    %s1450 = scalar_lea.vmem [#allocation0], 424
    %v1451 = vld [vmem:[%s1450] sm:%s1081]
    %s1452 = sshll.u32 1, 4
    %s1453 = ssub.s32 %s1452, 1
    %s1454 = smul.addr 4, 53
    %s1455 = scalar_lea.vmem %s1, %s1454
    %1456 = vst [vmem:[%s1455] sm:%s1453] %v1451
    %s1457 = scalar_lea.vmem [#allocation0], 432
    %v1458 = vld [vmem:[%s1457] sm:%s1081]
    %s1459 = sshll.u32 1, 4
    %s1460 = ssub.s32 %s1459, 1
    %s1461 = smul.addr 4, 54
    %s1462 = scalar_lea.vmem %s1, %s1461
    %1463 = vst [vmem:[%s1462] sm:%s1460] %v1458
    %s1464 = scalar_lea.vmem [#allocation0], 440
    %v1465 = vld [vmem:[%s1464] sm:%s1081]
    %s1466 = sshll.u32 1, 4
    %s1467 = ssub.s32 %s1466, 1
    %s1468 = smul.addr 4, 55
    %s1469 = scalar_lea.vmem %s1, %s1468
    %1470 = vst [vmem:[%s1469] sm:%s1467] %v1465
    %s1471 = scalar_lea.vmem [#allocation0], 448
    %v1472 = vld [vmem:[%s1471] sm:%s1081]
    %s1473 = sshll.u32 1, 4
    %s1474 = ssub.s32 %s1473, 1
    %s1475 = smul.addr 4, 56
    %s1476 = scalar_lea.vmem %s1, %s1475
    %1477 = vst [vmem:[%s1476] sm:%s1474] %v1472
    %s1478 = scalar_lea.vmem [#allocation0], 456
    %v1479 = vld [vmem:[%s1478] sm:%s1081]
    %s1480 = sshll.u32 1, 4
    %s1481 = ssub.s32 %s1480, 1
    %s1482 = smul.addr 4, 57
    %s1483 = scalar_lea.vmem %s1, %s1482
    %1484 = vst [vmem:[%s1483] sm:%s1481] %v1479
    %s1485 = scalar_lea.vmem [#allocation0], 464
    %v1486 = vld [vmem:[%s1485] sm:%s1081]
    %s1487 = sshll.u32 1, 4
    %s1488 = ssub.s32 %s1487, 1
    %s1489 = smul.addr 4, 58
    %s1490 = scalar_lea.vmem %s1, %s1489
    %1491 = vst [vmem:[%s1490] sm:%s1488] %v1486
    %s1492 = scalar_lea.vmem [#allocation0], 472
    %v1493 = vld [vmem:[%s1492] sm:%s1081]
    %s1494 = sshll.u32 1, 4
    %s1495 = ssub.s32 %s1494, 1
    %s1496 = smul.addr 4, 59
    %s1497 = scalar_lea.vmem %s1, %s1496
    %1498 = vst [vmem:[%s1497] sm:%s1495] %v1493
    %s1499 = scalar_lea.vmem [#allocation0], 480
    %v1500 = vld [vmem:[%s1499] sm:%s1081]
    %s1501 = sshll.u32 1, 4
    %s1502 = ssub.s32 %s1501, 1
    %s1503 = smul.addr 4, 60
    %s1504 = scalar_lea.vmem %s1, %s1503
    %1505 = vst [vmem:[%s1504] sm:%s1502] %v1500
    %s1506 = scalar_lea.vmem [#allocation0], 488
    %v1507 = vld [vmem:[%s1506] sm:%s1081]
    %s1508 = sshll.u32 1, 4
    %s1509 = ssub.s32 %s1508, 1
    %s1510 = smul.addr 4, 61
    %s1511 = scalar_lea.vmem %s1, %s1510
    %1512 = vst [vmem:[%s1511] sm:%s1509] %v1507
    %s1513 = scalar_lea.vmem [#allocation0], 496
    %v1514 = vld [vmem:[%s1513] sm:%s1081]
    %s1515 = sshll.u32 1, 4
    %s1516 = ssub.s32 %s1515, 1
    %s1517 = smul.addr 4, 62
    %s1518 = scalar_lea.vmem %s1, %s1517
    %1519 = vst [vmem:[%s1518] sm:%s1516] %v1514
    %s1520 = scalar_lea.vmem [#allocation0], 504
    %v1521 = vld [vmem:[%s1520] sm:%s1081]
    %s1522 = sshll.u32 1, 4
    %s1523 = ssub.s32 %s1522, 1
    %s1524 = smul.addr 4, 63
    %s1525 = scalar_lea.vmem %s1, %s1524
    %1526 = vst [vmem:[%s1525] sm:%s1523] %v1521
    %s1527 = scalar_lea.vmem [#allocation0], 512
    %v1528 = vld [vmem:[%s1527] sm:%s1081]
    %s1529 = sshll.u32 1, 4
    %s1530 = ssub.s32 %s1529, 1
    %s1531 = smul.addr 4, 64
    %s1532 = scalar_lea.vmem %s1, %s1531
    %1533 = vst [vmem:[%s1532] sm:%s1530] %v1528
    %s1534 = scalar_lea.vmem [#allocation0], 520
    %v1535 = vld [vmem:[%s1534] sm:%s1081]
    %s1536 = sshll.u32 1, 4
    %s1537 = ssub.s32 %s1536, 1
    %s1538 = smul.addr 4, 65
    %s1539 = scalar_lea.vmem %s1, %s1538
    %1540 = vst [vmem:[%s1539] sm:%s1537] %v1535
    %s1541 = scalar_lea.vmem [#allocation0], 528
    %v1542 = vld [vmem:[%s1541] sm:%s1081]
    %s1543 = sshll.u32 1, 4
    %s1544 = ssub.s32 %s1543, 1
    %s1545 = smul.addr 4, 66
    %s1546 = scalar_lea.vmem %s1, %s1545
    %1547 = vst [vmem:[%s1546] sm:%s1544] %v1542
    %s1548 = scalar_lea.vmem [#allocation0], 536
    %v1549 = vld [vmem:[%s1548] sm:%s1081]
    %s1550 = sshll.u32 1, 4
    %s1551 = ssub.s32 %s1550, 1
    %s1552 = smul.addr 4, 67
    %s1553 = scalar_lea.vmem %s1, %s1552
    %1554 = vst [vmem:[%s1553] sm:%s1551] %v1549
    %s1555 = scalar_lea.vmem [#allocation0], 544
    %v1556 = vld [vmem:[%s1555] sm:%s1081]
    %s1557 = sshll.u32 1, 4
    %s1558 = ssub.s32 %s1557, 1
    %s1559 = smul.addr 4, 68
    %s1560 = scalar_lea.vmem %s1, %s1559
    %1561 = vst [vmem:[%s1560] sm:%s1558] %v1556
    %s1562 = scalar_lea.vmem [#allocation0], 552
    %v1563 = vld [vmem:[%s1562] sm:%s1081]
    %s1564 = sshll.u32 1, 4
    %s1565 = ssub.s32 %s1564, 1
    %s1566 = smul.addr 4, 69
    %s1567 = scalar_lea.vmem %s1, %s1566
    %1568 = vst [vmem:[%s1567] sm:%s1565] %v1563
    %s1569 = scalar_lea.vmem [#allocation0], 560
    %v1570 = vld [vmem:[%s1569] sm:%s1081]
    %s1571 = sshll.u32 1, 4
    %s1572 = ssub.s32 %s1571, 1
    %s1573 = smul.addr 4, 70
    %s1574 = scalar_lea.vmem %s1, %s1573
    %1575 = vst [vmem:[%s1574] sm:%s1572] %v1570
    %s1576 = scalar_lea.vmem [#allocation0], 568
    %v1577 = vld [vmem:[%s1576] sm:%s1081]
    %s1578 = sshll.u32 1, 4
    %s1579 = ssub.s32 %s1578, 1
    %s1580 = smul.addr 4, 71
    %s1581 = scalar_lea.vmem %s1, %s1580
    %1582 = vst [vmem:[%s1581] sm:%s1579] %v1577
    %s1583 = scalar_lea.vmem [#allocation0], 576
    %v1584 = vld [vmem:[%s1583] sm:%s1081]
    %s1585 = sshll.u32 1, 4
    %s1586 = ssub.s32 %s1585, 1
    %s1587 = smul.addr 4, 72
    %s1588 = scalar_lea.vmem %s1, %s1587
    %1589 = vst [vmem:[%s1588] sm:%s1586] %v1584
    %s1590 = scalar_lea.vmem [#allocation0], 584
    %v1591 = vld [vmem:[%s1590] sm:%s1081]
    %s1592 = sshll.u32 1, 4
    %s1593 = ssub.s32 %s1592, 1
    %s1594 = smul.addr 4, 73
    %s1595 = scalar_lea.vmem %s1, %s1594
    %1596 = vst [vmem:[%s1595] sm:%s1593] %v1591
    %s1597 = scalar_lea.vmem [#allocation0], 592
    %v1598 = vld [vmem:[%s1597] sm:%s1081]
    %s1599 = sshll.u32 1, 4
    %s1600 = ssub.s32 %s1599, 1
    %s1601 = smul.addr 4, 74
    %s1602 = scalar_lea.vmem %s1, %s1601
    %1603 = vst [vmem:[%s1602] sm:%s1600] %v1598
    %s1604 = scalar_lea.vmem [#allocation0], 600
    %v1605 = vld [vmem:[%s1604] sm:%s1081]
    %s1606 = sshll.u32 1, 4
    %s1607 = ssub.s32 %s1606, 1
    %s1608 = smul.addr 4, 75
    %s1609 = scalar_lea.vmem %s1, %s1608
    %1610 = vst [vmem:[%s1609] sm:%s1607] %v1605
    %s1611 = scalar_lea.vmem [#allocation0], 608
    %v1612 = vld [vmem:[%s1611] sm:%s1081]
    %s1613 = sshll.u32 1, 4
    %s1614 = ssub.s32 %s1613, 1
    %s1615 = smul.addr 4, 76
    %s1616 = scalar_lea.vmem %s1, %s1615
    %1617 = vst [vmem:[%s1616] sm:%s1614] %v1612
    %s1618 = scalar_lea.vmem [#allocation0], 616
    %v1619 = vld [vmem:[%s1618] sm:%s1081]
    %s1620 = sshll.u32 1, 4
    %s1621 = ssub.s32 %s1620, 1
    %s1622 = smul.addr 4, 77
    %s1623 = scalar_lea.vmem %s1, %s1622
    %1624 = vst [vmem:[%s1623] sm:%s1621] %v1619
    %s1625 = scalar_lea.vmem [#allocation0], 624
    %v1626 = vld [vmem:[%s1625] sm:%s1081]
    %s1627 = sshll.u32 1, 4
    %s1628 = ssub.s32 %s1627, 1
    %s1629 = smul.addr 4, 78
    %s1630 = scalar_lea.vmem %s1, %s1629
    %1631 = vst [vmem:[%s1630] sm:%s1628] %v1626
    %s1632 = scalar_lea.vmem [#allocation0], 632
    %v1633 = vld [vmem:[%s1632] sm:%s1081]
    %s1634 = sshll.u32 1, 4
    %s1635 = ssub.s32 %s1634, 1
    %s1636 = smul.addr 4, 79
    %s1637 = scalar_lea.vmem %s1, %s1636
    %1638 = vst [vmem:[%s1637] sm:%s1635] %v1633
    %s1639 = scalar_lea.vmem [#allocation0], 640
    %v1640 = vld [vmem:[%s1639] sm:%s1081]
    %s1641 = sshll.u32 1, 4
    %s1642 = ssub.s32 %s1641, 1
    %s1643 = smul.addr 4, 80
    %s1644 = scalar_lea.vmem %s1, %s1643
    %1645 = vst [vmem:[%s1644] sm:%s1642] %v1640
    %s1646 = scalar_lea.vmem [#allocation0], 648
    %v1647 = vld [vmem:[%s1646] sm:%s1081]
    %s1648 = sshll.u32 1, 4
    %s1649 = ssub.s32 %s1648, 1
    %s1650 = smul.addr 4, 81
    %s1651 = scalar_lea.vmem %s1, %s1650
    %1652 = vst [vmem:[%s1651] sm:%s1649] %v1647
    %s1653 = scalar_lea.vmem [#allocation0], 656
    %v1654 = vld [vmem:[%s1653] sm:%s1081]
    %s1655 = sshll.u32 1, 4
    %s1656 = ssub.s32 %s1655, 1
    %s1657 = smul.addr 4, 82
    %s1658 = scalar_lea.vmem %s1, %s1657
    %1659 = vst [vmem:[%s1658] sm:%s1656] %v1654
    %s1660 = scalar_lea.vmem [#allocation0], 664
    %v1661 = vld [vmem:[%s1660] sm:%s1081]
    %s1662 = sshll.u32 1, 4
    %s1663 = ssub.s32 %s1662, 1
    %s1664 = smul.addr 4, 83
    %s1665 = scalar_lea.vmem %s1, %s1664
    %1666 = vst [vmem:[%s1665] sm:%s1663] %v1661
    %s1667 = scalar_lea.vmem [#allocation0], 672
    %v1668 = vld [vmem:[%s1667] sm:%s1081]
    %s1669 = sshll.u32 1, 4
    %s1670 = ssub.s32 %s1669, 1
    %s1671 = smul.addr 4, 84
    %s1672 = scalar_lea.vmem %s1, %s1671
    %1673 = vst [vmem:[%s1672] sm:%s1670] %v1668
    %s1674 = scalar_lea.vmem [#allocation0], 680
    %v1675 = vld [vmem:[%s1674] sm:%s1081]
    %s1676 = sshll.u32 1, 4
    %s1677 = ssub.s32 %s1676, 1
    %s1678 = smul.addr 4, 85
    %s1679 = scalar_lea.vmem %s1, %s1678
    %1680 = vst [vmem:[%s1679] sm:%s1677] %v1675
    %s1681 = scalar_lea.vmem [#allocation0], 688
    %v1682 = vld [vmem:[%s1681] sm:%s1081]
    %s1683 = sshll.u32 1, 4
    %s1684 = ssub.s32 %s1683, 1
    %s1685 = smul.addr 4, 86
    %s1686 = scalar_lea.vmem %s1, %s1685
    %1687 = vst [vmem:[%s1686] sm:%s1684] %v1682
    %s1688 = scalar_lea.vmem [#allocation0], 696
    %v1689 = vld [vmem:[%s1688] sm:%s1081]
    %s1690 = sshll.u32 1, 4
    %s1691 = ssub.s32 %s1690, 1
    %s1692 = smul.addr 4, 87
    %s1693 = scalar_lea.vmem %s1, %s1692
    %1694 = vst [vmem:[%s1693] sm:%s1691] %v1689
    %s1695 = scalar_lea.vmem [#allocation0], 704
    %v1696 = vld [vmem:[%s1695] sm:%s1081]
    %s1697 = sshll.u32 1, 4
    %s1698 = ssub.s32 %s1697, 1
    %s1699 = smul.addr 4, 88
    %s1700 = scalar_lea.vmem %s1, %s1699
    %1701 = vst [vmem:[%s1700] sm:%s1698] %v1696
    %s1702 = scalar_lea.vmem [#allocation0], 712
    %v1703 = vld [vmem:[%s1702] sm:%s1081]
    %s1704 = sshll.u32 1, 4
    %s1705 = ssub.s32 %s1704, 1
    %s1706 = smul.addr 4, 89
    %s1707 = scalar_lea.vmem %s1, %s1706
    %1708 = vst [vmem:[%s1707] sm:%s1705] %v1703
    %s1709 = scalar_lea.vmem [#allocation0], 720
    %v1710 = vld [vmem:[%s1709] sm:%s1081]
    %s1711 = sshll.u32 1, 4
    %s1712 = ssub.s32 %s1711, 1
    %s1713 = smul.addr 4, 90
    %s1714 = scalar_lea.vmem %s1, %s1713
    %1715 = vst [vmem:[%s1714] sm:%s1712] %v1710
    %s1716 = scalar_lea.vmem [#allocation0], 728
    %v1717 = vld [vmem:[%s1716] sm:%s1081]
    %s1718 = sshll.u32 1, 4
    %s1719 = ssub.s32 %s1718, 1
    %s1720 = smul.addr 4, 91
    %s1721 = scalar_lea.vmem %s1, %s1720
    %1722 = vst [vmem:[%s1721] sm:%s1719] %v1717
    %s1723 = scalar_lea.vmem [#allocation0], 736
    %v1724 = vld [vmem:[%s1723] sm:%s1081]
    %s1725 = sshll.u32 1, 4
    %s1726 = ssub.s32 %s1725, 1
    %s1727 = smul.addr 4, 92
    %s1728 = scalar_lea.vmem %s1, %s1727
    %1729 = vst [vmem:[%s1728] sm:%s1726] %v1724
    %s1730 = scalar_lea.vmem [#allocation0], 744
    %v1731 = vld [vmem:[%s1730] sm:%s1081]
    %s1732 = sshll.u32 1, 4
    %s1733 = ssub.s32 %s1732, 1
    %s1734 = smul.addr 4, 93
    %s1735 = scalar_lea.vmem %s1, %s1734
    %1736 = vst [vmem:[%s1735] sm:%s1733] %v1731
    %s1737 = scalar_lea.vmem [#allocation0], 752
    %v1738 = vld [vmem:[%s1737] sm:%s1081]
    %s1739 = sshll.u32 1, 4
    %s1740 = ssub.s32 %s1739, 1
    %s1741 = smul.addr 4, 94
    %s1742 = scalar_lea.vmem %s1, %s1741
    %1743 = vst [vmem:[%s1742] sm:%s1740] %v1738
    %s1744 = scalar_lea.vmem [#allocation0], 760
    %v1745 = vld [vmem:[%s1744] sm:%s1081]
    %s1746 = sshll.u32 1, 4
    %s1747 = ssub.s32 %s1746, 1
    %s1748 = smul.addr 4, 95
    %s1749 = scalar_lea.vmem %s1, %s1748
    %1750 = vst [vmem:[%s1749] sm:%s1747] %v1745
    %s1751 = scalar_lea.vmem [#allocation0], 768
    %v1752 = vld [vmem:[%s1751] sm:%s1081]
    %s1753 = sshll.u32 1, 4
    %s1754 = ssub.s32 %s1753, 1
    %s1755 = smul.addr 4, 96
    %s1756 = scalar_lea.vmem %s1, %s1755
    %1757 = vst [vmem:[%s1756] sm:%s1754] %v1752
    %s1758 = scalar_lea.vmem [#allocation0], 776
    %v1759 = vld [vmem:[%s1758] sm:%s1081]
    %s1760 = sshll.u32 1, 4
    %s1761 = ssub.s32 %s1760, 1
    %s1762 = smul.addr 4, 97
    %s1763 = scalar_lea.vmem %s1, %s1762
    %1764 = vst [vmem:[%s1763] sm:%s1761] %v1759
    %s1765 = scalar_lea.vmem [#allocation0], 784
    %v1766 = vld [vmem:[%s1765] sm:%s1081]
    %s1767 = sshll.u32 1, 4
    %s1768 = ssub.s32 %s1767, 1
    %s1769 = smul.addr 4, 98
    %s1770 = scalar_lea.vmem %s1, %s1769
    %1771 = vst [vmem:[%s1770] sm:%s1768] %v1766
    %s1772 = scalar_lea.vmem [#allocation0], 792
    %v1773 = vld [vmem:[%s1772] sm:%s1081]
    %s1774 = sshll.u32 1, 4
    %s1775 = ssub.s32 %s1774, 1
    %s1776 = smul.addr 4, 99
    %s1777 = scalar_lea.vmem %s1, %s1776
    %1778 = vst [vmem:[%s1777] sm:%s1775] %v1773
    %s1779 = scalar_lea.vmem [#allocation0], 800
    %v1780 = vld [vmem:[%s1779] sm:%s1081]
    %s1781 = sshll.u32 1, 4
    %s1782 = ssub.s32 %s1781, 1
    %s1783 = smul.addr 4, 100
    %s1784 = scalar_lea.vmem %s1, %s1783
    %1785 = vst [vmem:[%s1784] sm:%s1782] %v1780
    %s1786 = scalar_lea.vmem [#allocation0], 808
    %v1787 = vld [vmem:[%s1786] sm:%s1081]
    %s1788 = sshll.u32 1, 4
    %s1789 = ssub.s32 %s1788, 1
    %s1790 = smul.addr 4, 101
    %s1791 = scalar_lea.vmem %s1, %s1790
    %1792 = vst [vmem:[%s1791] sm:%s1789] %v1787
    %s1793 = scalar_lea.vmem [#allocation0], 816
    %v1794 = vld [vmem:[%s1793] sm:%s1081]
    %s1795 = sshll.u32 1, 4
    %s1796 = ssub.s32 %s1795, 1
    %s1797 = smul.addr 4, 102
    %s1798 = scalar_lea.vmem %s1, %s1797
    %1799 = vst [vmem:[%s1798] sm:%s1796] %v1794
    %s1800 = scalar_lea.vmem [#allocation0], 824
    %v1801 = vld [vmem:[%s1800] sm:%s1081]
    %s1802 = sshll.u32 1, 4
    %s1803 = ssub.s32 %s1802, 1
    %s1804 = smul.addr 4, 103
    %s1805 = scalar_lea.vmem %s1, %s1804
    %1806 = vst [vmem:[%s1805] sm:%s1803] %v1801
    %s1807 = scalar_lea.vmem [#allocation0], 832
    %v1808 = vld [vmem:[%s1807] sm:%s1081]
    %s1809 = sshll.u32 1, 4
    %s1810 = ssub.s32 %s1809, 1
    %s1811 = smul.addr 4, 104
    %s1812 = scalar_lea.vmem %s1, %s1811
    %1813 = vst [vmem:[%s1812] sm:%s1810] %v1808
    %s1814 = scalar_lea.vmem [#allocation0], 840
    %v1815 = vld [vmem:[%s1814] sm:%s1081]
    %s1816 = sshll.u32 1, 4
    %s1817 = ssub.s32 %s1816, 1
    %s1818 = smul.addr 4, 105
    %s1819 = scalar_lea.vmem %s1, %s1818
    %1820 = vst [vmem:[%s1819] sm:%s1817] %v1815
    %s1821 = scalar_lea.vmem [#allocation0], 848
    %v1822 = vld [vmem:[%s1821] sm:%s1081]
    %s1823 = sshll.u32 1, 4
    %s1824 = ssub.s32 %s1823, 1
    %s1825 = smul.addr 4, 106
    %s1826 = scalar_lea.vmem %s1, %s1825
    %1827 = vst [vmem:[%s1826] sm:%s1824] %v1822
    %s1828 = scalar_lea.vmem [#allocation0], 856
    %v1829 = vld [vmem:[%s1828] sm:%s1081]
    %s1830 = sshll.u32 1, 4
    %s1831 = ssub.s32 %s1830, 1
    %s1832 = smul.addr 4, 107
    %s1833 = scalar_lea.vmem %s1, %s1832
    %1834 = vst [vmem:[%s1833] sm:%s1831] %v1829

// kernel: byol_forward.1
$region0: #{byol_forward.1}
  #allocation0 [shape = 'u32[]', space=smem, size = 0x4, offset = 0x4, fixed_abs, tag = 'smem constant byte address 0x4 - core index']
  #allocation1 [shape = 'u32[144,128]{1,0:T(1,128)}', space=vmem, size = 0x12000, scoped, tag = 'internal scratch']
  %s0 = inlined_call_operand.vmem [shape: f32[27,4,512], index: 0, kind: input, shape index: {}]
  %s1 = inlined_call_operand.vmem [shape: f32[27,1,512], index: 1, kind: input, shape index: {}]
  %s2 = inlined_call_operand.vmem [shape: f32[1,512], index: 2, kind: input, shape index: {}]
  %s3 = inlined_call_operand.vmem [shape: bf16[512,64], index: 3, kind: input, shape index: {}]
  %s4 = inlined_call_operand.vmem [shape: f32[1,64], index: 4, kind: input, shape index: {}]
  %s5 = inlined_call_operand.vmem [shape: f32[1,64], index: 5, kind: input, shape index: {}]
  %s6 = inlined_call_operand.vmem [shape: f32[1,64], index: 6, kind: input, shape index: {}]
  %s7 = inlined_call_operand.vmem [shape: bf16[64,32], index: 7, kind: input, shape index: {}]
  %s8 = inlined_call_operand.vmem [shape: f32[1,32], index: 8, kind: input, shape index: {}]
  %s9 = inlined_call_operand.vmem [shape: bf16[32,64], index: 9, kind: input, shape index: {}]
  %s10 = inlined_call_operand.vmem [shape: f32[1,64], index: 10, kind: input, shape index: {}]
  %s11 = inlined_call_operand.vmem [shape: f32[1,64], index: 11, kind: input, shape index: {}]
  %s12 = inlined_call_operand.vmem [shape: f32[1,64], index: 12, kind: input, shape index: {}]
  %s13 = inlined_call_operand.vmem [shape: bf16[64,32], index: 13, kind: input, shape index: {}]
  %s14 = inlined_call_operand.vmem [shape: f32[1,32], index: 14, kind: input, shape index: {}]
  %s15 = inlined_call_operand.hbm [shape: f32[1,1], index: 15, kind: output, shape index: {}]
  %s16 = sld [smem:[#allocation0]]
  $region70: #{byol_forward.1} parent=0
    _
  %s18 = ssub.s32 1, %s16
  %s19 = scalar_select 0, %s18, %s16
  $region1: #{byol_forward.1} parent=0
    #allocation2 [shape = 'u8[512]{0}', space=vmem, size = 0x400, scoped, tag = 'output window, operand 0, single buffered']
    #allocation3 [shape = 's32[1]{0}', space=sflag, size = 0x4, scoped, tag = 'scoped memory for byol_forward.1']
    %20 = vsyncpa [#allocation3], 0
    // Predicated region
    $region2: #{byol_forward.1} parent=1 // pred_check
      _
    $region3: #{byol_forward.1} parent=1 // pred_check_branch
      %22 = sbr.rel (0) target = $region5
    $region4: #{byol_forward.1} parent=1 // pred_region
      _
    $region5: #{byol_forward.1} parent=1 // pred_fallthru
      _
    // Predicated region
    $region6: #{byol_forward.1} parent=1 // pred_check
      _
    $region7: #{byol_forward.1} parent=1 // pred_check_branch
      %24 = sbr.rel (0) target = $region9
    $region8: #{byol_forward.1} parent=1 // pred_region
      _
    $region9: #{byol_forward.1} parent=1 // pred_fallthru
      _
    // Predicated region
    $region10: #{byol_forward.1} parent=1 // pred_check
      _
    $region11: #{byol_forward.1} parent=1 // pred_check_branch
      %26 = sbr.rel (0) target = $region13
    $region12: #{byol_forward.1} parent=1 // pred_region
      _
    $region13: #{byol_forward.1} parent=1 // pred_fallthru
      _
    // Predicated region
    $region14: #{byol_forward.1} parent=1 // pred_check
      _
    $region15: #{byol_forward.1} parent=1 // pred_check_branch
      %28 = sbr.rel (0) target = $region17
    $region16: #{byol_forward.1} parent=1 // pred_region
      _
    $region17: #{byol_forward.1} parent=1 // pred_fallthru
      _
    // Predicated region
    $region18: #{byol_forward.1} parent=1 // pred_check
      _
    $region19: #{byol_forward.1} parent=1 // pred_check_branch
      %30 = sbr.rel (0) target = $region21
    $region20: #{byol_forward.1} parent=1 // pred_region
      _
    $region21: #{byol_forward.1} parent=1 // pred_fallthru
      _
    // Predicated region
    $region22: #{byol_forward.1} parent=1 // pred_check
      _
    $region23: #{byol_forward.1} parent=1 // pred_check_branch
      %32 = sbr.rel (0) target = $region25
    $region24: #{byol_forward.1} parent=1 // pred_region
      _
    $region25: #{byol_forward.1} parent=1 // pred_fallthru
      _
    // Predicated region
    $region26: #{byol_forward.1} parent=1 // pred_check
      _
    $region27: #{byol_forward.1} parent=1 // pred_check_branch
      %34 = sbr.rel (0) target = $region29
    $region28: #{byol_forward.1} parent=1 // pred_region
      _
    $region29: #{byol_forward.1} parent=1 // pred_fallthru
      _
    // Predicated region
    $region30: #{byol_forward.1} parent=1 // pred_check
      _
    $region31: #{byol_forward.1} parent=1 // pred_check_branch
      %36 = sbr.rel (0) target = $region33
    $region32: #{byol_forward.1} parent=1 // pred_region
      _
    $region33: #{byol_forward.1} parent=1 // pred_fallthru
      _
    // Predicated region
    $region34: #{byol_forward.1} parent=1 // pred_check
      _
    $region35: #{byol_forward.1} parent=1 // pred_check_branch
      %38 = sbr.rel (0) target = $region37
    $region36: #{byol_forward.1} parent=1 // pred_region
      _
    $region37: #{byol_forward.1} parent=1 // pred_fallthru
      _
    // Predicated region
    $region38: #{byol_forward.1} parent=1 // pred_check
      _
    $region39: #{byol_forward.1} parent=1 // pred_check_branch
      %40 = sbr.rel (0) target = $region41
    $region40: #{byol_forward.1} parent=1 // pred_region
      _
    $region41: #{byol_forward.1} parent=1 // pred_fallthru
      _
    // Predicated region
    $region42: #{byol_forward.1} parent=1 // pred_check
      _
    $region43: #{byol_forward.1} parent=1 // pred_check_branch
      %42 = sbr.rel (0) target = $region45
    $region44: #{byol_forward.1} parent=1 // pred_region
      _
    $region45: #{byol_forward.1} parent=1 // pred_fallthru
      _
    // Predicated region
    $region46: #{byol_forward.1} parent=1 // pred_check
      _
    $region47: #{byol_forward.1} parent=1 // pred_check_branch
      %44 = sbr.rel (0) target = $region49
    $region48: #{byol_forward.1} parent=1 // pred_region
      _
    $region49: #{byol_forward.1} parent=1 // pred_fallthru
      _
    // Predicated region
    $region50: #{byol_forward.1} parent=1 // pred_check
      _
    $region51: #{byol_forward.1} parent=1 // pred_check_branch
      %46 = sbr.rel (0) target = $region53
    $region52: #{byol_forward.1} parent=1 // pred_region
      _
    $region53: #{byol_forward.1} parent=1 // pred_fallthru
      _
    // Predicated region
    $region54: #{byol_forward.1} parent=1 // pred_check
      _
    $region55: #{byol_forward.1} parent=1 // pred_check_branch
      %48 = sbr.rel (0) target = $region57
    $region56: #{byol_forward.1} parent=1 // pred_region
      _
    $region57: #{byol_forward.1} parent=1 // pred_fallthru
      _
    // Predicated region
    $region58: #{byol_forward.1} parent=1 // pred_check
      _
    $region59: #{byol_forward.1} parent=1 // pred_check_branch
      %50 = sbr.rel (0) target = $region61
    $region60: #{byol_forward.1} parent=1 // pred_region
      _
    $region61: #{byol_forward.1} parent=1 // pred_fallthru
      _
    %v52 = vld [vmem:[%s0] sm:$0xff]
    %v53 = vld [vmem:[%s0 + $0x8] sm:$0xff]
    %v54 = vld [vmem:[%s1] sm:$0xf]
    %v56 = vlaneseq
    %v57 = vshrl.u32 %v56, 7
    %v58 = vsub.s32 0, %v57
    %v59 = vrot.slane %v54, %v58
    %v60 = vlaneseq
    %v61 = vshrl.u32 %v60, 7
    %v62 = vsub.s32 1, %v61
    %v63 = vrot.slane %v54, %v62
    %v64 = vlaneseq
    %v65 = vshrl.u32 %v64, 7
    %v66 = vsub.s32 2, %v65
    %v67 = vrot.slane %v54, %v66
    %v68 = vlaneseq
    %v69 = vshrl.u32 %v68, 7
    %v70 = vsub.s32 3, %v69
    %v71 = vrot.slane %v54, %v70
    %v72 = vcombine.low %v59, %v63
    %v73 = vcombine.low %v67, %v71
    %v76 = vmul.f32 %v52, %v72
    %v77 = vmul.f32 %v53, %v73
    %v78 = vadd.f32 %v76, 0.0
    %v79 = vadd.f32 %v77, 0.0
    %s80 = scalar_lea.vmem %s0, 16
    %v81 = vld [vmem:[%s80] sm:$0xff]
    %v82 = vld [vmem:[%s80 + $0x8] sm:$0xff]
    %s83 = scalar_lea.vmem %s1, 4
    %v84 = vld [vmem:[%s83] sm:$0xf]
    %v86 = vlaneseq
    %v87 = vshrl.u32 %v86, 7
    %v88 = vsub.s32 0, %v87
    %v89 = vrot.slane %v84, %v88
    %v90 = vlaneseq
    %v91 = vshrl.u32 %v90, 7
    %v92 = vsub.s32 1, %v91
    %v93 = vrot.slane %v84, %v92
    %v94 = vlaneseq
    %v95 = vshrl.u32 %v94, 7
    %v96 = vsub.s32 2, %v95
    %v97 = vrot.slane %v84, %v96
    %v98 = vlaneseq
    %v99 = vshrl.u32 %v98, 7
    %v100 = vsub.s32 3, %v99
    %v101 = vrot.slane %v84, %v100
    %v102 = vcombine.low %v89, %v93
    %v103 = vcombine.low %v97, %v101
    %v106 = vmul.f32 %v81, %v102
    %v107 = vmul.f32 %v82, %v103
    %v108 = vadd.f32 %v78, %v106
    %v109 = vadd.f32 %v79, %v107
    %s110 = scalar_lea.vmem %s0, 32
    %v111 = vld [vmem:[%s110] sm:$0xff]
    %v112 = vld [vmem:[%s110 + $0x8] sm:$0xff]
    %s113 = scalar_lea.vmem %s1, 8
    %v114 = vld [vmem:[%s113] sm:$0xf]
    %v116 = vlaneseq
    %v117 = vshrl.u32 %v116, 7
    %v118 = vsub.s32 0, %v117
    %v119 = vrot.slane %v114, %v118
    %v120 = vlaneseq
    %v121 = vshrl.u32 %v120, 7
    %v122 = vsub.s32 1, %v121
    %v123 = vrot.slane %v114, %v122
    %v124 = vlaneseq
    %v125 = vshrl.u32 %v124, 7
    %v126 = vsub.s32 2, %v125
    %v127 = vrot.slane %v114, %v126
    %v128 = vlaneseq
    %v129 = vshrl.u32 %v128, 7
    %v130 = vsub.s32 3, %v129
    %v131 = vrot.slane %v114, %v130
    %v132 = vcombine.low %v119, %v123
    %v133 = vcombine.low %v127, %v131
    %v136 = vmul.f32 %v111, %v132
    %v137 = vmul.f32 %v112, %v133
    %v138 = vadd.f32 %v108, %v136
    %v139 = vadd.f32 %v109, %v137
    %s140 = scalar_lea.vmem %s0, 48
    %v141 = vld [vmem:[%s140] sm:$0xff]
    %v142 = vld [vmem:[%s140 + $0x8] sm:$0xff]
    %s143 = scalar_lea.vmem %s1, 12
    %v144 = vld [vmem:[%s143] sm:$0xf]
    %v146 = vlaneseq
    %v147 = vshrl.u32 %v146, 7
    %v148 = vsub.s32 0, %v147
    %v149 = vrot.slane %v144, %v148
    %v150 = vlaneseq
    %v151 = vshrl.u32 %v150, 7
    %v152 = vsub.s32 1, %v151
    %v153 = vrot.slane %v144, %v152
    %v154 = vlaneseq
    %v155 = vshrl.u32 %v154, 7
    %v156 = vsub.s32 2, %v155
    %v157 = vrot.slane %v144, %v156
    %v158 = vlaneseq
    %v159 = vshrl.u32 %v158, 7
    %v160 = vsub.s32 3, %v159
    %v161 = vrot.slane %v144, %v160
    %v162 = vcombine.low %v149, %v153
    %v163 = vcombine.low %v157, %v161
    %v166 = vmul.f32 %v141, %v162
    %v167 = vmul.f32 %v142, %v163
    %v168 = vadd.f32 %v138, %v166
    %v169 = vadd.f32 %v139, %v167
    %s170 = scalar_lea.vmem %s0, 64
    %v171 = vld [vmem:[%s170] sm:$0xff]
    %v172 = vld [vmem:[%s170 + $0x8] sm:$0xff]
    %s173 = scalar_lea.vmem %s1, 16
    %v174 = vld [vmem:[%s173] sm:$0xf]
    %v176 = vlaneseq
    %v177 = vshrl.u32 %v176, 7
    %v178 = vsub.s32 0, %v177
    %v179 = vrot.slane %v174, %v178
    %v180 = vlaneseq
    %v181 = vshrl.u32 %v180, 7
    %v182 = vsub.s32 1, %v181
    %v183 = vrot.slane %v174, %v182
    %v184 = vlaneseq
    %v185 = vshrl.u32 %v184, 7
    %v186 = vsub.s32 2, %v185
    %v187 = vrot.slane %v174, %v186
    %v188 = vlaneseq
    %v189 = vshrl.u32 %v188, 7
    %v190 = vsub.s32 3, %v189
    %v191 = vrot.slane %v174, %v190
    %v192 = vcombine.low %v179, %v183
    %v193 = vcombine.low %v187, %v191
    %v196 = vmul.f32 %v171, %v192
    %v197 = vmul.f32 %v172, %v193
    %v198 = vadd.f32 %v168, %v196
    %v199 = vadd.f32 %v169, %v197
    %s200 = scalar_lea.vmem %s0, 80
    %v201 = vld [vmem:[%s200] sm:$0xff]
    %v202 = vld [vmem:[%s200 + $0x8] sm:$0xff]
    %s203 = scalar_lea.vmem %s1, 20
    %v204 = vld [vmem:[%s203] sm:$0xf]
    %v206 = vlaneseq
    %v207 = vshrl.u32 %v206, 7
    %v208 = vsub.s32 0, %v207
    %v209 = vrot.slane %v204, %v208
    %v210 = vlaneseq
    %v211 = vshrl.u32 %v210, 7
    %v212 = vsub.s32 1, %v211
    %v213 = vrot.slane %v204, %v212
    %v214 = vlaneseq
    %v215 = vshrl.u32 %v214, 7
    %v216 = vsub.s32 2, %v215
    %v217 = vrot.slane %v204, %v216
    %v218 = vlaneseq
    %v219 = vshrl.u32 %v218, 7
    %v220 = vsub.s32 3, %v219
    %v221 = vrot.slane %v204, %v220
    %v222 = vcombine.low %v209, %v213
    %v223 = vcombine.low %v217, %v221
    %v226 = vmul.f32 %v201, %v222
    %v227 = vmul.f32 %v202, %v223
    %v228 = vadd.f32 %v198, %v226
    %v229 = vadd.f32 %v199, %v227
    %s230 = scalar_lea.vmem %s0, 96
    %v231 = vld [vmem:[%s230] sm:$0xff]
    %v232 = vld [vmem:[%s230 + $0x8] sm:$0xff]
    %s233 = scalar_lea.vmem %s1, 24
    %v234 = vld [vmem:[%s233] sm:$0xf]
    %v236 = vlaneseq
    %v237 = vshrl.u32 %v236, 7
    %v238 = vsub.s32 0, %v237
    %v239 = vrot.slane %v234, %v238
    %v240 = vlaneseq
    %v241 = vshrl.u32 %v240, 7
    %v242 = vsub.s32 1, %v241
    %v243 = vrot.slane %v234, %v242
    %v244 = vlaneseq
    %v245 = vshrl.u32 %v244, 7
    %v246 = vsub.s32 2, %v245
    %v247 = vrot.slane %v234, %v246
    %v248 = vlaneseq
    %v249 = vshrl.u32 %v248, 7
    %v250 = vsub.s32 3, %v249
    %v251 = vrot.slane %v234, %v250
    %v252 = vcombine.low %v239, %v243
    %v253 = vcombine.low %v247, %v251
    %v256 = vmul.f32 %v231, %v252
    %v257 = vmul.f32 %v232, %v253
    %v258 = vadd.f32 %v228, %v256
    %v259 = vadd.f32 %v229, %v257
    %s260 = scalar_lea.vmem %s0, 112
    %v261 = vld [vmem:[%s260] sm:$0xff]
    %v262 = vld [vmem:[%s260 + $0x8] sm:$0xff]
    %s263 = scalar_lea.vmem %s1, 28
    %v264 = vld [vmem:[%s263] sm:$0xf]
    %v266 = vlaneseq
    %v267 = vshrl.u32 %v266, 7
    %v268 = vsub.s32 0, %v267
    %v269 = vrot.slane %v264, %v268
    %v270 = vlaneseq
    %v271 = vshrl.u32 %v270, 7
    %v272 = vsub.s32 1, %v271
    %v273 = vrot.slane %v264, %v272
    %v274 = vlaneseq
    %v275 = vshrl.u32 %v274, 7
    %v276 = vsub.s32 2, %v275
    %v277 = vrot.slane %v264, %v276
    %v278 = vlaneseq
    %v279 = vshrl.u32 %v278, 7
    %v280 = vsub.s32 3, %v279
    %v281 = vrot.slane %v264, %v280
    %v282 = vcombine.low %v269, %v273
    %v283 = vcombine.low %v277, %v281
    %v286 = vmul.f32 %v261, %v282
    %v287 = vmul.f32 %v262, %v283
    %v288 = vadd.f32 %v258, %v286
    %v289 = vadd.f32 %v259, %v287
    %s290 = scalar_lea.vmem %s0, 128
    %v291 = vld [vmem:[%s290] sm:$0xff]
    %v292 = vld [vmem:[%s290 + $0x8] sm:$0xff]
    %s293 = scalar_lea.vmem %s1, 32
    %v294 = vld [vmem:[%s293] sm:$0xf]
    %v296 = vlaneseq
    %v297 = vshrl.u32 %v296, 7
    %v298 = vsub.s32 0, %v297
    %v299 = vrot.slane %v294, %v298
    %v300 = vlaneseq
    %v301 = vshrl.u32 %v300, 7
    %v302 = vsub.s32 1, %v301
    %v303 = vrot.slane %v294, %v302
    %v304 = vlaneseq
    %v305 = vshrl.u32 %v304, 7
    %v306 = vsub.s32 2, %v305
    %v307 = vrot.slane %v294, %v306
    %v308 = vlaneseq
    %v309 = vshrl.u32 %v308, 7
    %v310 = vsub.s32 3, %v309
    %v311 = vrot.slane %v294, %v310
    %v312 = vcombine.low %v299, %v303
    %v313 = vcombine.low %v307, %v311
    %v316 = vmul.f32 %v291, %v312
    %v317 = vmul.f32 %v292, %v313
    %v318 = vadd.f32 %v288, %v316
    %v319 = vadd.f32 %v289, %v317
    %s320 = scalar_lea.vmem %s0, 144
    %v321 = vld [vmem:[%s320] sm:$0xff]
    %v322 = vld [vmem:[%s320 + $0x8] sm:$0xff]
    %s323 = scalar_lea.vmem %s1, 36
    %v324 = vld [vmem:[%s323] sm:$0xf]
    %v326 = vlaneseq
    %v327 = vshrl.u32 %v326, 7
    %v328 = vsub.s32 0, %v327
    %v329 = vrot.slane %v324, %v328
    %v330 = vlaneseq
    %v331 = vshrl.u32 %v330, 7
    %v332 = vsub.s32 1, %v331
    %v333 = vrot.slane %v324, %v332
    %v334 = vlaneseq
    %v335 = vshrl.u32 %v334, 7
    %v336 = vsub.s32 2, %v335
    %v337 = vrot.slane %v324, %v336
    %v338 = vlaneseq
    %v339 = vshrl.u32 %v338, 7
    %v340 = vsub.s32 3, %v339
    %v341 = vrot.slane %v324, %v340
    %v342 = vcombine.low %v329, %v333
    %v343 = vcombine.low %v337, %v341
    %v346 = vmul.f32 %v321, %v342
    %v347 = vmul.f32 %v322, %v343
    %v348 = vadd.f32 %v318, %v346
    %v349 = vadd.f32 %v319, %v347
    %s350 = scalar_lea.vmem %s0, 160
    %v351 = vld [vmem:[%s350] sm:$0xff]
    %v352 = vld [vmem:[%s350 + $0x8] sm:$0xff]
    %s353 = scalar_lea.vmem %s1, 40
    %v354 = vld [vmem:[%s353] sm:$0xf]
    %v356 = vlaneseq
    %v357 = vshrl.u32 %v356, 7
    %v358 = vsub.s32 0, %v357
    %v359 = vrot.slane %v354, %v358
    %v360 = vlaneseq
    %v361 = vshrl.u32 %v360, 7
    %v362 = vsub.s32 1, %v361
    %v363 = vrot.slane %v354, %v362
    %v364 = vlaneseq
    %v365 = vshrl.u32 %v364, 7
    %v366 = vsub.s32 2, %v365
    %v367 = vrot.slane %v354, %v366
    %v368 = vlaneseq
    %v369 = vshrl.u32 %v368, 7
    %v370 = vsub.s32 3, %v369
    %v371 = vrot.slane %v354, %v370
    %v372 = vcombine.low %v359, %v363
    %v373 = vcombine.low %v367, %v371
    %v376 = vmul.f32 %v351, %v372
    %v377 = vmul.f32 %v352, %v373
    %v378 = vadd.f32 %v348, %v376
    %v379 = vadd.f32 %v349, %v377
    %s380 = scalar_lea.vmem %s0, 176
    %v381 = vld [vmem:[%s380] sm:$0xff]
    %v382 = vld [vmem:[%s380 + $0x8] sm:$0xff]
    %s383 = scalar_lea.vmem %s1, 44
    %v384 = vld [vmem:[%s383] sm:$0xf]
    %v386 = vlaneseq
    %v387 = vshrl.u32 %v386, 7
    %v388 = vsub.s32 0, %v387
    %v389 = vrot.slane %v384, %v388
    %v390 = vlaneseq
    %v391 = vshrl.u32 %v390, 7
    %v392 = vsub.s32 1, %v391
    %v393 = vrot.slane %v384, %v392
    %v394 = vlaneseq
    %v395 = vshrl.u32 %v394, 7
    %v396 = vsub.s32 2, %v395
    %v397 = vrot.slane %v384, %v396
    %v398 = vlaneseq
    %v399 = vshrl.u32 %v398, 7
    %v400 = vsub.s32 3, %v399
    %v401 = vrot.slane %v384, %v400
    %v402 = vcombine.low %v389, %v393
    %v403 = vcombine.low %v397, %v401
    %v406 = vmul.f32 %v381, %v402
    %v407 = vmul.f32 %v382, %v403
    %v408 = vadd.f32 %v378, %v406
    %v409 = vadd.f32 %v379, %v407
    %s410 = scalar_lea.vmem %s0, 192
    %v411 = vld [vmem:[%s410] sm:$0xff]
    %v412 = vld [vmem:[%s410 + $0x8] sm:$0xff]
    %s413 = scalar_lea.vmem %s1, 48
    %v414 = vld [vmem:[%s413] sm:$0xf]
    %v416 = vlaneseq
    %v417 = vshrl.u32 %v416, 7
    %v418 = vsub.s32 0, %v417
    %v419 = vrot.slane %v414, %v418
    %v420 = vlaneseq
    %v421 = vshrl.u32 %v420, 7
    %v422 = vsub.s32 1, %v421
    %v423 = vrot.slane %v414, %v422
    %v424 = vlaneseq
    %v425 = vshrl.u32 %v424, 7
    %v426 = vsub.s32 2, %v425
    %v427 = vrot.slane %v414, %v426
    %v428 = vlaneseq
    %v429 = vshrl.u32 %v428, 7
    %v430 = vsub.s32 3, %v429
    %v431 = vrot.slane %v414, %v430
    %v432 = vcombine.low %v419, %v423
    %v433 = vcombine.low %v427, %v431
    %v436 = vmul.f32 %v411, %v432
    %v437 = vmul.f32 %v412, %v433
    %v438 = vadd.f32 %v408, %v436
    %v439 = vadd.f32 %v409, %v437
    %s440 = scalar_lea.vmem %s0, 208
    %v441 = vld [vmem:[%s440] sm:$0xff]
    %v442 = vld [vmem:[%s440 + $0x8] sm:$0xff]
    %s443 = scalar_lea.vmem %s1, 52
    %v444 = vld [vmem:[%s443] sm:$0xf]
    %v446 = vlaneseq
    %v447 = vshrl.u32 %v446, 7
    %v448 = vsub.s32 0, %v447
    %v449 = vrot.slane %v444, %v448
    %v450 = vlaneseq
    %v451 = vshrl.u32 %v450, 7
    %v452 = vsub.s32 1, %v451
    %v453 = vrot.slane %v444, %v452
    %v454 = vlaneseq
    %v455 = vshrl.u32 %v454, 7
    %v456 = vsub.s32 2, %v455
    %v457 = vrot.slane %v444, %v456
    %v458 = vlaneseq
    %v459 = vshrl.u32 %v458, 7
    %v460 = vsub.s32 3, %v459
    %v461 = vrot.slane %v444, %v460
    %v462 = vcombine.low %v449, %v453
    %v463 = vcombine.low %v457, %v461
    %v466 = vmul.f32 %v441, %v462
    %v467 = vmul.f32 %v442, %v463
    %v468 = vadd.f32 %v438, %v466
    %v469 = vadd.f32 %v439, %v467
    %s470 = scalar_lea.vmem %s0, 224
    %v471 = vld [vmem:[%s470] sm:$0xff]
    %v472 = vld [vmem:[%s470 + $0x8] sm:$0xff]
    %s473 = scalar_lea.vmem %s1, 56
    %v474 = vld [vmem:[%s473] sm:$0xf]
    %v476 = vlaneseq
    %v477 = vshrl.u32 %v476, 7
    %v478 = vsub.s32 0, %v477
    %v479 = vrot.slane %v474, %v478
    %v480 = vlaneseq
    %v481 = vshrl.u32 %v480, 7
    %v482 = vsub.s32 1, %v481
    %v483 = vrot.slane %v474, %v482
    %v484 = vlaneseq
    %v485 = vshrl.u32 %v484, 7
    %v486 = vsub.s32 2, %v485
    %v487 = vrot.slane %v474, %v486
    %v488 = vlaneseq
    %v489 = vshrl.u32 %v488, 7
    %v490 = vsub.s32 3, %v489
    %v491 = vrot.slane %v474, %v490
    %v492 = vcombine.low %v479, %v483
    %v493 = vcombine.low %v487, %v491
    %v496 = vmul.f32 %v471, %v492
    %v497 = vmul.f32 %v472, %v493
    %v498 = vadd.f32 %v468, %v496
    %v499 = vadd.f32 %v469, %v497
    %s500 = scalar_lea.vmem %s0, 240
    %v501 = vld [vmem:[%s500] sm:$0xff]
    %v502 = vld [vmem:[%s500 + $0x8] sm:$0xff]
    %s503 = scalar_lea.vmem %s1, 60
    %v504 = vld [vmem:[%s503] sm:$0xf]
    %v506 = vlaneseq
    %v507 = vshrl.u32 %v506, 7
    %v508 = vsub.s32 0, %v507
    %v509 = vrot.slane %v504, %v508
    %v510 = vlaneseq
    %v511 = vshrl.u32 %v510, 7
    %v512 = vsub.s32 1, %v511
    %v513 = vrot.slane %v504, %v512
    %v514 = vlaneseq
    %v515 = vshrl.u32 %v514, 7
    %v516 = vsub.s32 2, %v515
    %v517 = vrot.slane %v504, %v516
    %v518 = vlaneseq
    %v519 = vshrl.u32 %v518, 7
    %v520 = vsub.s32 3, %v519
    %v521 = vrot.slane %v504, %v520
    %v522 = vcombine.low %v509, %v513
    %v523 = vcombine.low %v517, %v521
    %v526 = vmul.f32 %v501, %v522
    %v527 = vmul.f32 %v502, %v523
    %v528 = vadd.f32 %v498, %v526
    %v529 = vadd.f32 %v499, %v527
    %s530 = scalar_lea.vmem %s0, 256
    %v531 = vld [vmem:[%s530] sm:$0xff]
    %v532 = vld [vmem:[%s530 + $0x8] sm:$0xff]
    %s533 = scalar_lea.vmem %s1, 64
    %v534 = vld [vmem:[%s533] sm:$0xf]
    %v536 = vlaneseq
    %v537 = vshrl.u32 %v536, 7
    %v538 = vsub.s32 0, %v537
    %v539 = vrot.slane %v534, %v538
    %v540 = vlaneseq
    %v541 = vshrl.u32 %v540, 7
    %v542 = vsub.s32 1, %v541
    %v543 = vrot.slane %v534, %v542
    %v544 = vlaneseq
    %v545 = vshrl.u32 %v544, 7
    %v546 = vsub.s32 2, %v545
    %v547 = vrot.slane %v534, %v546
    %v548 = vlaneseq
    %v549 = vshrl.u32 %v548, 7
    %v550 = vsub.s32 3, %v549
    %v551 = vrot.slane %v534, %v550
    %v552 = vcombine.low %v539, %v543
    %v553 = vcombine.low %v547, %v551
    %v556 = vmul.f32 %v531, %v552
    %v557 = vmul.f32 %v532, %v553
    %v558 = vadd.f32 %v528, %v556
    %v559 = vadd.f32 %v529, %v557
    %s560 = scalar_lea.vmem %s0, 272
    %v561 = vld [vmem:[%s560] sm:$0xff]
    %v562 = vld [vmem:[%s560 + $0x8] sm:$0xff]
    %s563 = scalar_lea.vmem %s1, 68
    %v564 = vld [vmem:[%s563] sm:$0xf]
    %v566 = vlaneseq
    %v567 = vshrl.u32 %v566, 7
    %v568 = vsub.s32 0, %v567
    %v569 = vrot.slane %v564, %v568
    %v570 = vlaneseq
    %v571 = vshrl.u32 %v570, 7
    %v572 = vsub.s32 1, %v571
    %v573 = vrot.slane %v564, %v572
    %v574 = vlaneseq
    %v575 = vshrl.u32 %v574, 7
    %v576 = vsub.s32 2, %v575
    %v577 = vrot.slane %v564, %v576
    %v578 = vlaneseq
    %v579 = vshrl.u32 %v578, 7
    %v580 = vsub.s32 3, %v579
    %v581 = vrot.slane %v564, %v580
    %v582 = vcombine.low %v569, %v573
    %v583 = vcombine.low %v577, %v581
    %v586 = vmul.f32 %v561, %v582
    %v587 = vmul.f32 %v562, %v583
    %v588 = vadd.f32 %v558, %v586
    %v589 = vadd.f32 %v559, %v587
    %s590 = scalar_lea.vmem %s0, 288
    %v591 = vld [vmem:[%s590] sm:$0xff]
    %v592 = vld [vmem:[%s590 + $0x8] sm:$0xff]
    %s593 = scalar_lea.vmem %s1, 72
    %v594 = vld [vmem:[%s593] sm:$0xf]
    %v596 = vlaneseq
    %v597 = vshrl.u32 %v596, 7
    %v598 = vsub.s32 0, %v597
    %v599 = vrot.slane %v594, %v598
    %v600 = vlaneseq
    %v601 = vshrl.u32 %v600, 7
    %v602 = vsub.s32 1, %v601
    %v603 = vrot.slane %v594, %v602
    %v604 = vlaneseq
    %v605 = vshrl.u32 %v604, 7
    %v606 = vsub.s32 2, %v605
    %v607 = vrot.slane %v594, %v606
    %v608 = vlaneseq
    %v609 = vshrl.u32 %v608, 7
    %v610 = vsub.s32 3, %v609
    %v611 = vrot.slane %v594, %v610
    %v612 = vcombine.low %v599, %v603
    %v613 = vcombine.low %v607, %v611
    %v616 = vmul.f32 %v591, %v612
    %v617 = vmul.f32 %v592, %v613
    %v618 = vadd.f32 %v588, %v616
    %v619 = vadd.f32 %v589, %v617
    %s620 = scalar_lea.vmem %s0, 304
    %v621 = vld [vmem:[%s620] sm:$0xff]
    %v622 = vld [vmem:[%s620 + $0x8] sm:$0xff]
    %s623 = scalar_lea.vmem %s1, 76
    %v624 = vld [vmem:[%s623] sm:$0xf]
    %v626 = vlaneseq
    %v627 = vshrl.u32 %v626, 7
    %v628 = vsub.s32 0, %v627
    %v629 = vrot.slane %v624, %v628
    %v630 = vlaneseq
    %v631 = vshrl.u32 %v630, 7
    %v632 = vsub.s32 1, %v631
    %v633 = vrot.slane %v624, %v632
    %v634 = vlaneseq
    %v635 = vshrl.u32 %v634, 7
    %v636 = vsub.s32 2, %v635
    %v637 = vrot.slane %v624, %v636
    %v638 = vlaneseq
    %v639 = vshrl.u32 %v638, 7
    %v640 = vsub.s32 3, %v639
    %v641 = vrot.slane %v624, %v640
    %v642 = vcombine.low %v629, %v633
    %v643 = vcombine.low %v637, %v641
    %v646 = vmul.f32 %v621, %v642
    %v647 = vmul.f32 %v622, %v643
    %v648 = vadd.f32 %v618, %v646
    %v649 = vadd.f32 %v619, %v647
    %s650 = scalar_lea.vmem %s0, 320
    %v651 = vld [vmem:[%s650] sm:$0xff]
    %v652 = vld [vmem:[%s650 + $0x8] sm:$0xff]
    %s653 = scalar_lea.vmem %s1, 80
    %v654 = vld [vmem:[%s653] sm:$0xf]
    %v656 = vlaneseq
    %v657 = vshrl.u32 %v656, 7
    %v658 = vsub.s32 0, %v657
    %v659 = vrot.slane %v654, %v658
    %v660 = vlaneseq
    %v661 = vshrl.u32 %v660, 7
    %v662 = vsub.s32 1, %v661
    %v663 = vrot.slane %v654, %v662
    %v664 = vlaneseq
    %v665 = vshrl.u32 %v664, 7
    %v666 = vsub.s32 2, %v665
    %v667 = vrot.slane %v654, %v666
    %v668 = vlaneseq
    %v669 = vshrl.u32 %v668, 7
    %v670 = vsub.s32 3, %v669
    %v671 = vrot.slane %v654, %v670
    %v672 = vcombine.low %v659, %v663
    %v673 = vcombine.low %v667, %v671
    %v676 = vmul.f32 %v651, %v672
    %v677 = vmul.f32 %v652, %v673
    %v678 = vadd.f32 %v648, %v676
    %v679 = vadd.f32 %v649, %v677
    %s680 = scalar_lea.vmem %s0, 336
    %v681 = vld [vmem:[%s680] sm:$0xff]
    %v682 = vld [vmem:[%s680 + $0x8] sm:$0xff]
    %s683 = scalar_lea.vmem %s1, 84
    %v684 = vld [vmem:[%s683] sm:$0xf]
    %v686 = vlaneseq
    %v687 = vshrl.u32 %v686, 7
    %v688 = vsub.s32 0, %v687
    %v689 = vrot.slane %v684, %v688
    %v690 = vlaneseq
    %v691 = vshrl.u32 %v690, 7
    %v692 = vsub.s32 1, %v691
    %v693 = vrot.slane %v684, %v692
    %v694 = vlaneseq
    %v695 = vshrl.u32 %v694, 7
    %v696 = vsub.s32 2, %v695
    %v697 = vrot.slane %v684, %v696
    %v698 = vlaneseq
    %v699 = vshrl.u32 %v698, 7
    %v700 = vsub.s32 3, %v699
    %v701 = vrot.slane %v684, %v700
    %v702 = vcombine.low %v689, %v693
    %v703 = vcombine.low %v697, %v701
    %v706 = vmul.f32 %v681, %v702
    %v707 = vmul.f32 %v682, %v703
    %v708 = vadd.f32 %v678, %v706
    %v709 = vadd.f32 %v679, %v707
    %s710 = scalar_lea.vmem %s0, 352
    %v711 = vld [vmem:[%s710] sm:$0xff]
    %v712 = vld [vmem:[%s710 + $0x8] sm:$0xff]
    %s713 = scalar_lea.vmem %s1, 88
    %v714 = vld [vmem:[%s713] sm:$0xf]
    %v716 = vlaneseq
    %v717 = vshrl.u32 %v716, 7
    %v718 = vsub.s32 0, %v717
    %v719 = vrot.slane %v714, %v718
    %v720 = vlaneseq
    %v721 = vshrl.u32 %v720, 7
    %v722 = vsub.s32 1, %v721
    %v723 = vrot.slane %v714, %v722
    %v724 = vlaneseq
    %v725 = vshrl.u32 %v724, 7
    %v726 = vsub.s32 2, %v725
    %v727 = vrot.slane %v714, %v726
    %v728 = vlaneseq
    %v729 = vshrl.u32 %v728, 7
    %v730 = vsub.s32 3, %v729
    %v731 = vrot.slane %v714, %v730
    %v732 = vcombine.low %v719, %v723
    %v733 = vcombine.low %v727, %v731
    %v736 = vmul.f32 %v711, %v732
    %v737 = vmul.f32 %v712, %v733
    %v738 = vadd.f32 %v708, %v736
    %v739 = vadd.f32 %v709, %v737
    %s740 = scalar_lea.vmem %s0, 368
    %v741 = vld [vmem:[%s740] sm:$0xff]
    %v742 = vld [vmem:[%s740 + $0x8] sm:$0xff]
    %s743 = scalar_lea.vmem %s1, 92
    %v744 = vld [vmem:[%s743] sm:$0xf]
    %v746 = vlaneseq
    %v747 = vshrl.u32 %v746, 7
    %v748 = vsub.s32 0, %v747
    %v749 = vrot.slane %v744, %v748
    %v750 = vlaneseq
    %v751 = vshrl.u32 %v750, 7
    %v752 = vsub.s32 1, %v751
    %v753 = vrot.slane %v744, %v752
    %v754 = vlaneseq
    %v755 = vshrl.u32 %v754, 7
    %v756 = vsub.s32 2, %v755
    %v757 = vrot.slane %v744, %v756
    %v758 = vlaneseq
    %v759 = vshrl.u32 %v758, 7
    %v760 = vsub.s32 3, %v759
    %v761 = vrot.slane %v744, %v760
    %v762 = vcombine.low %v749, %v753
    %v763 = vcombine.low %v757, %v761
    %v766 = vmul.f32 %v741, %v762
    %v767 = vmul.f32 %v742, %v763
    %v768 = vadd.f32 %v738, %v766
    %v769 = vadd.f32 %v739, %v767
    %s770 = scalar_lea.vmem %s0, 384
    %v771 = vld [vmem:[%s770] sm:$0xff]
    %v772 = vld [vmem:[%s770 + $0x8] sm:$0xff]
    %s773 = scalar_lea.vmem %s1, 96
    %v774 = vld [vmem:[%s773] sm:$0xf]
    %v776 = vlaneseq
    %v777 = vshrl.u32 %v776, 7
    %v778 = vsub.s32 0, %v777
    %v779 = vrot.slane %v774, %v778
    %v780 = vlaneseq
    %v781 = vshrl.u32 %v780, 7
    %v782 = vsub.s32 1, %v781
    %v783 = vrot.slane %v774, %v782
    %v784 = vlaneseq
    %v785 = vshrl.u32 %v784, 7
    %v786 = vsub.s32 2, %v785
    %v787 = vrot.slane %v774, %v786
    %v788 = vlaneseq
    %v789 = vshrl.u32 %v788, 7
    %v790 = vsub.s32 3, %v789
    %v791 = vrot.slane %v774, %v790
    %v792 = vcombine.low %v779, %v783
    %v793 = vcombine.low %v787, %v791
    %v796 = vmul.f32 %v771, %v792
    %v797 = vmul.f32 %v772, %v793
    %v798 = vadd.f32 %v768, %v796
    %v799 = vadd.f32 %v769, %v797
    %s800 = scalar_lea.vmem %s0, 400
    %v801 = vld [vmem:[%s800] sm:$0xff]
    %v802 = vld [vmem:[%s800 + $0x8] sm:$0xff]
    %s803 = scalar_lea.vmem %s1, 100
    %v804 = vld [vmem:[%s803] sm:$0xf]
    %v806 = vlaneseq
    %v807 = vshrl.u32 %v806, 7
    %v808 = vsub.s32 0, %v807
    %v809 = vrot.slane %v804, %v808
    %v810 = vlaneseq
    %v811 = vshrl.u32 %v810, 7
    %v812 = vsub.s32 1, %v811
    %v813 = vrot.slane %v804, %v812
    %v814 = vlaneseq
    %v815 = vshrl.u32 %v814, 7
    %v816 = vsub.s32 2, %v815
    %v817 = vrot.slane %v804, %v816
    %v818 = vlaneseq
    %v819 = vshrl.u32 %v818, 7
    %v820 = vsub.s32 3, %v819
    %v821 = vrot.slane %v804, %v820
    %v822 = vcombine.low %v809, %v813
    %v823 = vcombine.low %v817, %v821
    %v826 = vmul.f32 %v801, %v822
    %v827 = vmul.f32 %v802, %v823
    %v828 = vadd.f32 %v798, %v826
    %v829 = vadd.f32 %v799, %v827
    %s830 = scalar_lea.vmem %s0, 416
    %v831 = vld [vmem:[%s830] sm:$0xff]
    %v832 = vld [vmem:[%s830 + $0x8] sm:$0xff]
    %s833 = scalar_lea.vmem %s1, 104
    %v834 = vld [vmem:[%s833] sm:$0xf]
    %v836 = vlaneseq
    %v837 = vshrl.u32 %v836, 7
    %v838 = vsub.s32 0, %v837
    %v839 = vrot.slane %v834, %v838
    %v840 = vlaneseq
    %v841 = vshrl.u32 %v840, 7
    %v842 = vsub.s32 1, %v841
    %v843 = vrot.slane %v834, %v842
    %v844 = vlaneseq
    %v845 = vshrl.u32 %v844, 7
    %v846 = vsub.s32 2, %v845
    %v847 = vrot.slane %v834, %v846
    %v848 = vlaneseq
    %v849 = vshrl.u32 %v848, 7
    %v850 = vsub.s32 3, %v849
    %v851 = vrot.slane %v834, %v850
    %v852 = vcombine.low %v839, %v843
    %v853 = vcombine.low %v847, %v851
    %v856 = vmul.f32 %v831, %v852
    %v857 = vmul.f32 %v832, %v853
    %v858 = vadd.f32 %v828, %v856
    %v859 = vadd.f32 %v829, %v857
    %v860 = vld [vmem:[%s2] sm:$0xf]
    %v862 = vlaneseq
    %v863 = vshrl.u32 %v862, 7
    %v864 = vsub.s32 0, %v863
    %v865 = vrot.slane %v860, %v864
    %v866 = vlaneseq
    %v867 = vshrl.u32 %v866, 7
    %v868 = vsub.s32 1, %v867
    %v869 = vrot.slane %v860, %v868
    %v870 = vlaneseq
    %v871 = vshrl.u32 %v870, 7
    %v872 = vsub.s32 2, %v871
    %v873 = vrot.slane %v860, %v872
    %v874 = vlaneseq
    %v875 = vshrl.u32 %v874, 7
    %v876 = vsub.s32 3, %v875
    %v877 = vrot.slane %v860, %v876
    %v878 = vcombine.low %v865, %v869
    %v879 = vcombine.low %v873, %v877
    %v882 = vadd.f32 %v858, %v878
    %v883 = vadd.f32 %v859, %v879
    %v884 = vmax.f32 %v882, 0.0
    %v885 = vmax.f32 %v883, 0.0
    %v886 = vlaneseq
    %v887 = vshrl.u32 %v886, 7
    %vm888 = vcmp.ge.s32.totalorder %v887, 2
    %v891 = vcombine.high %v884, %v884
    %v892 = vcombine.high %v885, %v885
    %v895 = vpack.c.bf16 %v884, %v884
    %v896 = vpack.c.bf16 %v891, %v891
    %v897 = vpack.c.bf16 %v885, %v885
    %v898 = vpack.c.bf16 %v892, %v892
    %v899 = vld [vmem:[%s3] sm:$0xf]
    %v900 = vld [vmem:[%s3 + $0x4] sm:$0xf]
    %v901 = vld [vmem:[%s3 + $0x8] sm:$0xf]
    %v902 = vld [vmem:[%s3 + $0xc] sm:$0xf]
    %v903 = vld [vmem:[%s3 + $0x10] sm:$0xf]
    %v904 = vld [vmem:[%s3 + $0x14] sm:$0xf]
    %v905 = vld [vmem:[%s3 + $0x18] sm:$0xf]
    %v906 = vld [vmem:[%s3 + $0x1c] sm:$0xf]
    %v907 = vld [vmem:[%s3 + $0x20] sm:$0xf]
    %v908 = vld [vmem:[%s3 + $0x24] sm:$0xf]
    %v909 = vld [vmem:[%s3 + $0x28] sm:$0xf]
    %v910 = vld [vmem:[%s3 + $0x2c] sm:$0xf]
    %v911 = vld [vmem:[%s3 + $0x30] sm:$0xf]
    %v912 = vld [vmem:[%s3 + $0x34] sm:$0xf]
    %v913 = vld [vmem:[%s3 + $0x38] sm:$0xf]
    %v914 = vld [vmem:[%s3 + $0x3c] sm:$0xf]
    %v915 = vld [vmem:[%s3 + $0x40] sm:$0xf]
    %v916 = vld [vmem:[%s3 + $0x44] sm:$0xf]
    %v917 = vld [vmem:[%s3 + $0x48] sm:$0xf]
    %v918 = vld [vmem:[%s3 + $0x4c] sm:$0xf]
    %v919 = vld [vmem:[%s3 + $0x50] sm:$0xf]
    %v920 = vld [vmem:[%s3 + $0x54] sm:$0xf]
    %v921 = vld [vmem:[%s3 + $0x58] sm:$0xf]
    %v922 = vld [vmem:[%s3 + $0x5c] sm:$0xf]
    %v923 = vld [vmem:[%s3 + $0x60] sm:$0xf]
    %v924 = vld [vmem:[%s3 + $0x64] sm:$0xf]
    %v925 = vld [vmem:[%s3 + $0x68] sm:$0xf]
    %v926 = vld [vmem:[%s3 + $0x6c] sm:$0xf]
    %v927 = vld [vmem:[%s3 + $0x70] sm:$0xf]
    %v928 = vld [vmem:[%s3 + $0x74] sm:$0xf]
    %v929 = vld [vmem:[%s3 + $0x78] sm:$0xf]
    %v930 = vld [vmem:[%s3 + $0x7c] sm:$0xf]
    %v931 = vld [vmem:[%s3 + $0x80] sm:$0xf]
    %v932 = vld [vmem:[%s3 + $0x84] sm:$0xf]
    %v933 = vld [vmem:[%s3 + $0x88] sm:$0xf]
    %v934 = vld [vmem:[%s3 + $0x8c] sm:$0xf]
    %v935 = vld [vmem:[%s3 + $0x90] sm:$0xf]
    %v936 = vld [vmem:[%s3 + $0x94] sm:$0xf]
    %v937 = vld [vmem:[%s3 + $0x98] sm:$0xf]
    %v938 = vld [vmem:[%s3 + $0x9c] sm:$0xf]
    %v939 = vld [vmem:[%s3 + $0xa0] sm:$0xf]
    %v940 = vld [vmem:[%s3 + $0xa4] sm:$0xf]
    %v941 = vld [vmem:[%s3 + $0xa8] sm:$0xf]
    %v942 = vld [vmem:[%s3 + $0xac] sm:$0xf]
    %v943 = vld [vmem:[%s3 + $0xb0] sm:$0xf]
    %v944 = vld [vmem:[%s3 + $0xb4] sm:$0xf]
    %v945 = vld [vmem:[%s3 + $0xb8] sm:$0xf]
    %v946 = vld [vmem:[%s3 + $0xbc] sm:$0xf]
    %v947 = vld [vmem:[%s3 + $0xc0] sm:$0xf]
    %v948 = vld [vmem:[%s3 + $0xc4] sm:$0xf]
    %v949 = vld [vmem:[%s3 + $0xc8] sm:$0xf]
    %v950 = vld [vmem:[%s3 + $0xcc] sm:$0xf]
    %v951 = vld [vmem:[%s3 + $0xd0] sm:$0xf]
    %v952 = vld [vmem:[%s3 + $0xd4] sm:$0xf]
    %v953 = vld [vmem:[%s3 + $0xd8] sm:$0xf]
    %v954 = vld [vmem:[%s3 + $0xdc] sm:$0xf]
    %v955 = vld [vmem:[%s3 + $0xe0] sm:$0xf]
    %v956 = vld [vmem:[%s3 + $0xe4] sm:$0xf]
    %v957 = vld [vmem:[%s3 + $0xe8] sm:$0xf]
    %v958 = vld [vmem:[%s3 + $0xec] sm:$0xf]
    %v959 = vld [vmem:[%s3 + $0xf0] sm:$0xf]
    %v960 = vld [vmem:[%s3 + $0xf4] sm:$0xf]
    %v961 = vld [vmem:[%s3 + $0xf8] sm:$0xf]
    %v962 = vld [vmem:[%s3 + $0xfc] sm:$0xf]
    %v963 = vld [vmem:[%s4] sm:$0x1]
    %v965 = vlaneseq
    %v966 = vshrl.u32 %v965, 7
    %v967 = vsub.s32 0, %v966
    %v968 = vrot.slane %v963, %v967
    %v1034 = vunpack.c.l.b16 %v899
    %v1035 = vunpack.c.l.b16 %v900
    %v1036 = vunpack.c.l.b16 %v901
    %v1037 = vunpack.c.l.b16 %v902
    %v1038 = vunpack.c.l.b16 %v903
    %v1039 = vunpack.c.l.b16 %v904
    %v1040 = vunpack.c.l.b16 %v905
    %v1041 = vunpack.c.l.b16 %v906
    %v1042 = vunpack.c.l.b16 %v907
    %v1043 = vunpack.c.l.b16 %v908
    %v1044 = vunpack.c.l.b16 %v909
    %v1045 = vunpack.c.l.b16 %v910
    %v1046 = vunpack.c.l.b16 %v911
    %v1047 = vunpack.c.l.b16 %v912
    %v1048 = vunpack.c.l.b16 %v913
    %v1049 = vunpack.c.l.b16 %v914
    %v1050 = vunpack.c.l.b16 %v915
    %v1051 = vunpack.c.l.b16 %v916
    %v1052 = vunpack.c.l.b16 %v917
    %v1053 = vunpack.c.l.b16 %v918
    %v1054 = vunpack.c.l.b16 %v919
    %v1055 = vunpack.c.l.b16 %v920
    %v1056 = vunpack.c.l.b16 %v921
    %v1057 = vunpack.c.l.b16 %v922
    %v1058 = vunpack.c.l.b16 %v923
    %v1059 = vunpack.c.l.b16 %v924
    %v1060 = vunpack.c.l.b16 %v925
    %v1061 = vunpack.c.l.b16 %v926
    %v1062 = vunpack.c.l.b16 %v927
    %v1063 = vunpack.c.l.b16 %v928
    %v1064 = vunpack.c.l.b16 %v929
    %v1065 = vunpack.c.l.b16 %v930
    %v1066 = vunpack.c.l.b16 %v931
    %v1067 = vunpack.c.l.b16 %v932
    %v1068 = vunpack.c.l.b16 %v933
    %v1069 = vunpack.c.l.b16 %v934
    %v1070 = vunpack.c.l.b16 %v935
    %v1071 = vunpack.c.l.b16 %v936
    %v1072 = vunpack.c.l.b16 %v937
    %v1073 = vunpack.c.l.b16 %v938
    %v1074 = vunpack.c.l.b16 %v939
    %v1075 = vunpack.c.l.b16 %v940
    %v1076 = vunpack.c.l.b16 %v941
    %v1077 = vunpack.c.l.b16 %v942
    %v1078 = vunpack.c.l.b16 %v943
    %v1079 = vunpack.c.l.b16 %v944
    %v1080 = vunpack.c.l.b16 %v945
    %v1081 = vunpack.c.l.b16 %v946
    %v1082 = vunpack.c.l.b16 %v947
    %v1083 = vunpack.c.l.b16 %v948
    %v1084 = vunpack.c.l.b16 %v949
    %v1085 = vunpack.c.l.b16 %v950
    %v1086 = vunpack.c.l.b16 %v951
    %v1087 = vunpack.c.l.b16 %v952
    %v1088 = vunpack.c.l.b16 %v953
    %v1089 = vunpack.c.l.b16 %v954
    %v1090 = vunpack.c.l.b16 %v955
    %v1091 = vunpack.c.l.b16 %v956
    %v1092 = vunpack.c.l.b16 %v957
    %v1093 = vunpack.c.l.b16 %v958
    %v1094 = vunpack.c.l.b16 %v959
    %v1095 = vunpack.c.l.b16 %v960
    %v1096 = vunpack.c.l.b16 %v961
    %v1097 = vunpack.c.l.b16 %v962
    %v1098 = vpack.c.b16 %v1035, %v1034
    %v1099 = vpack.c.b16 %v1037, %v1036
    %v1100 = vpack.c.b16 %v1039, %v1038
    %v1101 = vpack.c.b16 %v1041, %v1040
    %v1102 = vpack.c.b16 %v1043, %v1042
    %v1103 = vpack.c.b16 %v1045, %v1044
    %v1104 = vpack.c.b16 %v1047, %v1046
    %v1105 = vpack.c.b16 %v1049, %v1048
    %v1106 = vpack.c.b16 %v1051, %v1050
    %v1107 = vpack.c.b16 %v1053, %v1052
    %v1108 = vpack.c.b16 %v1055, %v1054
    %v1109 = vpack.c.b16 %v1057, %v1056
    %v1110 = vpack.c.b16 %v1059, %v1058
    %v1111 = vpack.c.b16 %v1061, %v1060
    %v1112 = vpack.c.b16 %v1063, %v1062
    %v1113 = vpack.c.b16 %v1065, %v1064
    %v1114 = vpack.c.b16 %v1067, %v1066
    %v1115 = vpack.c.b16 %v1069, %v1068
    %v1116 = vpack.c.b16 %v1071, %v1070
    %v1117 = vpack.c.b16 %v1073, %v1072
    %v1118 = vpack.c.b16 %v1075, %v1074
    %v1119 = vpack.c.b16 %v1077, %v1076
    %v1120 = vpack.c.b16 %v1079, %v1078
    %v1121 = vpack.c.b16 %v1081, %v1080
    %v1122 = vpack.c.b16 %v1083, %v1082
    %v1123 = vpack.c.b16 %v1085, %v1084
    %v1124 = vpack.c.b16 %v1087, %v1086
    %v1125 = vpack.c.b16 %v1089, %v1088
    %v1126 = vpack.c.b16 %v1091, %v1090
    %v1127 = vpack.c.b16 %v1093, %v1092
    %v1128 = vpack.c.b16 %v1095, %v1094
    %v1129 = vpack.c.b16 %v1097, %v1096
    %1162 = vmatprep.subr.bf16.mxu0 0
    %1163 = vmatpush1.bf16.msra.mxu0 %v1105
    %1164 = vmatprep.subr.bf16.mxu0 0
    %1165 = vmatpush1.bf16.msra.mxu0 %v1104
    %1166 = vmatprep.subr.bf16.mxu0 0
    %1167 = vmatpush1.bf16.msra.mxu0 %v1103
    %1168 = vmatprep.subr.bf16.mxu0 0
    %1169 = vmatpush1.bf16.msra.mxu0 %v1102
    %1170 = vmatprep.subr.bf16.mxu0 0
    %1171 = vmatpush1.bf16.msra.mxu0 %v1101
    %1172 = vmatprep.subr.bf16.mxu0 0
    %1173 = vmatpush1.bf16.msra.mxu0 %v1100
    %1174 = vmatprep.subr.bf16.mxu0 0
    %1175 = vmatpush1.bf16.msra.mxu0 %v1099
    %1176 = vmatprep.subr.bf16.mxu0 0
    %1177 = vmatpush1.bf16.msra.mxu0 %v1098
    %1178 = vmatprep.subr.bf16.mxu0 0
    %1179 = vmatpush2.bf16.msra.mxu0 %v1113
    %1180 = vmatprep.subr.bf16.mxu0 0
    %1181 = vmatpush2.bf16.msra.mxu0 %v1112
    %1182 = vmatprep.subr.bf16.mxu0 0
    %1183 = vmatpush2.bf16.msra.mxu0 %v1111
    %1184 = vmatprep.subr.bf16.mxu0 0
    %1185 = vmatpush2.bf16.msra.mxu0 %v1110
    %1186 = vmatprep.subr.bf16.mxu0 0
    %1187 = vmatpush2.bf16.msra.mxu0 %v1109
    %1188 = vmatprep.subr.bf16.mxu0 0
    %1189 = vmatpush2.bf16.msra.mxu0 %v1108
    %1190 = vmatprep.subr.bf16.mxu0 0
    %1191 = vmatpush2.bf16.msra.mxu0 %v1107
    %1192 = vmatprep.subr.bf16.mxu0 0
    %1193 = vmatpush2.bf16.msra.mxu0 %v1106
    %1194 = vmatprep.mubr.bf16.mxu0 %v896
    %1195 = vmatmul.mubr.bf16.gmra.mxu0 %v895
    %v1196 = vpop.f32.mrf.mxu0
    %v1197 = vadd.f32 %v968, %v1196
    %v1198 = vpop.f32.mrf.mxu0
    %v1199 = vpop.f32.mrf.mxu0
    %v1200 = vpop.f32.mrf.mxu0
    %1201 = vdwg.mxu0
    %1202 = vmatprep.subr.bf16.mxu0 0
    %1203 = vmatpush1.bf16.msra.mxu0 %v1121
    %1204 = vmatprep.subr.bf16.mxu0 0
    %1205 = vmatpush1.bf16.msra.mxu0 %v1120
    %1206 = vmatprep.subr.bf16.mxu0 0
    %1207 = vmatpush1.bf16.msra.mxu0 %v1119
    %1208 = vmatprep.subr.bf16.mxu0 0
    %1209 = vmatpush1.bf16.msra.mxu0 %v1118
    %1210 = vmatprep.subr.bf16.mxu0 0
    %1211 = vmatpush1.bf16.msra.mxu0 %v1117
    %1212 = vmatprep.subr.bf16.mxu0 0
    %1213 = vmatpush1.bf16.msra.mxu0 %v1116
    %1214 = vmatprep.subr.bf16.mxu0 0
    %1215 = vmatpush1.bf16.msra.mxu0 %v1115
    %1216 = vmatprep.subr.bf16.mxu0 0
    %1217 = vmatpush1.bf16.msra.mxu0 %v1114
    %1218 = vmatprep.subr.bf16.mxu0 0
    %1219 = vmatpush2.bf16.msra.mxu0 %v1129
    %1220 = vmatprep.subr.bf16.mxu0 0
    %1221 = vmatpush2.bf16.msra.mxu0 %v1128
    %1222 = vmatprep.subr.bf16.mxu0 0
    %1223 = vmatpush2.bf16.msra.mxu0 %v1127
    %1224 = vmatprep.subr.bf16.mxu0 0
    %1225 = vmatpush2.bf16.msra.mxu0 %v1126
    %1226 = vmatprep.subr.bf16.mxu0 0
    %1227 = vmatpush2.bf16.msra.mxu0 %v1125
    %1228 = vmatprep.subr.bf16.mxu0 0
    %1229 = vmatpush2.bf16.msra.mxu0 %v1124
    %1230 = vmatprep.subr.bf16.mxu0 0
    %1231 = vmatpush2.bf16.msra.mxu0 %v1123
    %1232 = vmatprep.subr.bf16.mxu0 0
    %1233 = vmatpush2.bf16.msra.mxu0 %v1122
    %1234 = vmatprep.mubr.bf16.mxu0 %v898
    %1235 = vmatmul.mubr.bf16.gmra.mxu0 %v897
    %v1236 = vpop.f32.mrf.mxu0
    %v1237 = vadd.f32 %v1197, %v1236
    %v1238 = vpop.f32.mrf.mxu0
    %v1239 = vpop.f32.mrf.mxu0
    %v1240 = vpop.f32.mrf.mxu0
    %1241 = vdwg.mxu0
    %v1242 = vld [vmem:[%s5] sm:$0x1]
    %v1243 = vld [vmem:[%s6] sm:$0x1]
    %v1244 = vsel %vm888, 1, 0
    %vm1245 = vcmp.eq.s32.totalorder %v1244, 1
    %v1246 = vsel %vm1245, 0.0, %v1237
    %vm1247 = vcmask 519168
    %v1248 = vsel %vm1247, %v1246, 0.0
    %v1249 = vrot.slane %v1248, 4
    %v1250 = vadd.f32 %v1248, %v1249
    %v1251 = vrot.slane %v1250, 2
    %v1252 = vadd.f32 %v1250, %v1251
    %v1253 = vrot.slane %v1252, 1
    %v1254 = vadd.f32 %v1252, %v1253
    %v1255 = vmul.f32 %v1254, 0.5
    %v1256 = vsel %vm1245, %v1237, 0.0
    %v1257 = vsel %vm1247, %v1256, 0.0
    %v1258 = vrot.slane %v1257, 4
    %v1259 = vadd.f32 %v1257, %v1258
    %v1260 = vrot.slane %v1259, 2
    %v1261 = vadd.f32 %v1259, %v1260
    %v1262 = vrot.slane %v1261, 1
    %v1263 = vadd.f32 %v1261, %v1262
    %v1264 = vmul.f32 %v1263, 0.5
    %v1265 = vsel %vm1245, %v1264, %v1255
    %v1266 = vsub.f32 %v1237, %v1265
    %v1267 = vmul.f32 %v1266, %v1266
    %v1268 = vsel %vm1245, 0.0, %v1267
    %v1269 = vsel %vm1247, %v1268, 0.0
    %v1270 = vrot.slane %v1269, 4
    %v1271 = vadd.f32 %v1269, %v1270
    %v1272 = vrot.slane %v1271, 2
    %v1273 = vadd.f32 %v1271, %v1272
    %v1274 = vrot.slane %v1273, 1
    %v1275 = vadd.f32 %v1273, %v1274
    %v1276 = vmul.f32 %v1275, 0.5
    %v1277 = vsel %vm1245, %v1267, 0.0
    %v1278 = vsel %vm1247, %v1277, 0.0
    %v1279 = vrot.slane %v1278, 4
    %v1280 = vadd.f32 %v1278, %v1279
    %v1281 = vrot.slane %v1280, 2
    %v1282 = vadd.f32 %v1280, %v1281
    %v1283 = vrot.slane %v1282, 1
    %v1284 = vadd.f32 %v1282, %v1283
    %v1285 = vmul.f32 %v1284, 0.5
    %v1286 = vsel %vm1245, %v1285, %v1276
    %v1287 = vadd.f32 %v1286, 1e-05
    %v1288 = vrsqrt.pop %v1287
    %v1290 = vlaneseq
    %v1291 = vshrl.u32 %v1290, 7
    %v1292 = vsub.s32 0, %v1291
    %v1293 = vrot.slane %v1242, %v1292
    %v1295 = vmul.f32 %v1293, %v1288
    %v1296 = vmul.f32 %v1266, %v1295
    %v1298 = vlaneseq
    %v1299 = vshrl.u32 %v1298, 7
    %v1300 = vsub.s32 0, %v1299
    %v1301 = vrot.slane %v1243, %v1300
    %v1303 = vadd.f32 %v1296, %v1301
    %vm1304 = vcmp.ge.f32.partialorder %v1303, 0.0
    %v1305 = vmul.f32 %v1303, 0.01
    %v1306 = vsel %vm1304, %v1303, %v1305
    %v1307 = vpack.c.bf16 %v1306, %v1306
    %v1308 = vld [vmem:[%s7] sm:$0xf]
    %v1309 = vld [vmem:[%s7 + $0x4] sm:$0xf]
    %v1310 = vld [vmem:[%s7 + $0x8] sm:$0xf]
    %v1311 = vld [vmem:[%s7 + $0xc] sm:$0xf]
    %v1312 = vld [vmem:[%s7 + $0x10] sm:$0xf]
    %v1313 = vld [vmem:[%s7 + $0x14] sm:$0xf]
    %v1314 = vld [vmem:[%s7 + $0x18] sm:$0xf]
    %v1315 = vld [vmem:[%s7 + $0x1c] sm:$0xf]
    %v1316 = vld [vmem:[%s8] sm:$0x1]
    %v1318 = vlaneseq
    %v1319 = vshrl.u32 %v1318, 7
    %v1320 = vsub.s32 0, %v1319
    %v1321 = vrot.slane %v1316, %v1320
    %v1331 = vunpack.c.l.b16 %v1308
    %v1332 = vunpack.c.l.b16 %v1309
    %v1333 = vunpack.c.l.b16 %v1310
    %v1334 = vunpack.c.l.b16 %v1311
    %v1335 = vunpack.c.l.b16 %v1312
    %v1336 = vunpack.c.l.b16 %v1313
    %v1337 = vunpack.c.l.b16 %v1314
    %v1338 = vunpack.c.l.b16 %v1315
    %v1339 = vpack.c.b16 %v1332, %v1331
    %v1340 = vpack.c.b16 %v1334, %v1333
    %v1341 = vpack.c.b16 %v1336, %v1335
    %v1342 = vpack.c.b16 %v1338, %v1337
    %vm1347 = vcmask 523264
    %v1349 = vsel %vm1347, %v1307, 0
    %1351 = vmatprep.subr.bf16.mxu0 0
    %1352 = vmatpush1.bf16.msra.mxu0 0
    %1353 = vmatprep.subr.bf16.mxu0 0
    %1354 = vmatpush1.bf16.msra.mxu0 0
    %1355 = vmatprep.subr.bf16.mxu0 0
    %1356 = vmatpush1.bf16.msra.mxu0 0
    %1357 = vmatprep.subr.bf16.mxu0 0
    %1358 = vmatpush1.bf16.msra.mxu0 0
    %1359 = vmatprep.subr.bf16.mxu0 0
    %1360 = vmatpush1.bf16.msra.mxu0 %v1342
    %1361 = vmatprep.subr.bf16.mxu0 0
    %1362 = vmatpush1.bf16.msra.mxu0 %v1341
    %1363 = vmatprep.subr.bf16.mxu0 0
    %1364 = vmatpush1.bf16.msra.mxu0 %v1340
    %1365 = vmatprep.subr.bf16.mxu0 0
    %1366 = vmatpush1.bf16.msra.mxu0 %v1339
    %1367 = vmatprep.subr.bf16.mxu0 0
    %1368 = vmatpush2.bf16.msra.mxu0 0
    %1369 = vmatprep.subr.bf16.mxu0 0
    %1370 = vmatpush2.bf16.msra.mxu0 0
    %1371 = vmatprep.subr.bf16.mxu0 0
    %1372 = vmatpush2.bf16.msra.mxu0 0
    %1373 = vmatprep.subr.bf16.mxu0 0
    %1374 = vmatpush2.bf16.msra.mxu0 0
    %1375 = vmatprep.subr.bf16.mxu0 0
    %1376 = vmatpush2.bf16.msra.mxu0 0
    %1377 = vmatprep.subr.bf16.mxu0 0
    %1378 = vmatpush2.bf16.msra.mxu0 0
    %1379 = vmatprep.subr.bf16.mxu0 0
    %1380 = vmatpush2.bf16.msra.mxu0 0
    %1381 = vmatprep.subr.bf16.mxu0 0
    %1382 = vmatpush2.bf16.msra.mxu0 0
    %1383 = vmatprep.mubr.bf16.mxu0 0
    %1384 = vmatmul.mubr.bf16.gmra.mxu0 %v1349
    %v1385 = vpop.f32.mrf.mxu0
    %v1386 = vadd.f32 %v1321, %v1385
    %v1387 = vpop.f32.mrf.mxu0
    %v1388 = vpop.f32.mrf.mxu0
    %v1389 = vpop.f32.mrf.mxu0
    %1390 = vdwg.mxu0
    %v1391 = vpack.c.bf16 %v1386, %v1386
    %v1392 = vld [vmem:[%s9] sm:$0xf]
    %v1393 = vld [vmem:[%s9 + $0x4] sm:$0xf]
    %v1394 = vld [vmem:[%s9 + $0x8] sm:$0xf]
    %v1395 = vld [vmem:[%s9 + $0xc] sm:$0xf]
    %v1396 = vld [vmem:[%s10] sm:$0x1]
    %v1398 = vlaneseq
    %v1399 = vshrl.u32 %v1398, 7
    %v1400 = vsub.s32 0, %v1399
    %v1401 = vrot.slane %v1396, %v1400
    %v1407 = vunpack.c.l.b16 %v1392
    %v1408 = vunpack.c.l.b16 %v1393
    %v1409 = vunpack.c.l.b16 %v1394
    %v1410 = vunpack.c.l.b16 %v1395
    %v1411 = vpack.c.b16 %v1408, %v1407
    %v1412 = vpack.c.b16 %v1410, %v1409
    %vm1415 = vcmask 261120
    %v1417 = vsel %vm1415, %v1391, 0
    %1419 = vmatprep.subr.bf16.mxu0 0
    %1420 = vmatpush1.bf16.msra.mxu0 0
    %1421 = vmatprep.subr.bf16.mxu0 0
    %1422 = vmatpush1.bf16.msra.mxu0 0
    %1423 = vmatprep.subr.bf16.mxu0 0
    %1424 = vmatpush1.bf16.msra.mxu0 0
    %1425 = vmatprep.subr.bf16.mxu0 0
    %1426 = vmatpush1.bf16.msra.mxu0 0
    %1427 = vmatprep.subr.bf16.mxu0 0
    %1428 = vmatpush1.bf16.msra.mxu0 0
    %1429 = vmatprep.subr.bf16.mxu0 0
    %1430 = vmatpush1.bf16.msra.mxu0 0
    %1431 = vmatprep.subr.bf16.mxu0 0
    %1432 = vmatpush1.bf16.msra.mxu0 %v1412
    %1433 = vmatprep.subr.bf16.mxu0 0
    %1434 = vmatpush1.bf16.msra.mxu0 %v1411
    %1435 = vmatprep.subr.bf16.mxu0 0
    %1436 = vmatpush2.bf16.msra.mxu0 0
    %1437 = vmatprep.subr.bf16.mxu0 0
    %1438 = vmatpush2.bf16.msra.mxu0 0
    %1439 = vmatprep.subr.bf16.mxu0 0
    %1440 = vmatpush2.bf16.msra.mxu0 0
    %1441 = vmatprep.subr.bf16.mxu0 0
    %1442 = vmatpush2.bf16.msra.mxu0 0
    %1443 = vmatprep.subr.bf16.mxu0 0
    %1444 = vmatpush2.bf16.msra.mxu0 0
    %1445 = vmatprep.subr.bf16.mxu0 0
    %1446 = vmatpush2.bf16.msra.mxu0 0
    %1447 = vmatprep.subr.bf16.mxu0 0
    %1448 = vmatpush2.bf16.msra.mxu0 0
    %1449 = vmatprep.subr.bf16.mxu0 0
    %1450 = vmatpush2.bf16.msra.mxu0 0
    %1451 = vmatprep.mubr.bf16.mxu0 0
    %1452 = vmatmul.mubr.bf16.gmra.mxu0 %v1417
    %v1453 = vpop.f32.mrf.mxu0
    %v1454 = vadd.f32 %v1401, %v1453
    %v1455 = vpop.f32.mrf.mxu0
    %v1456 = vpop.f32.mrf.mxu0
    %v1457 = vpop.f32.mrf.mxu0
    %1458 = vdwg.mxu0
    %v1459 = vld [vmem:[%s11] sm:$0x1]
    %v1460 = vld [vmem:[%s12] sm:$0x1]
    %v1461 = vsel %vm1245, 0.0, %v1454
    %v1462 = vsel %vm1247, %v1461, 0.0
    %v1463 = vrot.slane %v1462, 4
    %v1464 = vadd.f32 %v1462, %v1463
    %v1465 = vrot.slane %v1464, 2
    %v1466 = vadd.f32 %v1464, %v1465
    %v1467 = vrot.slane %v1466, 1
    %v1468 = vadd.f32 %v1466, %v1467
    %v1469 = vmul.f32 %v1468, 0.5
    %v1470 = vsel %vm1245, %v1454, 0.0
    %v1471 = vsel %vm1247, %v1470, 0.0
    %v1472 = vrot.slane %v1471, 4
    %v1473 = vadd.f32 %v1471, %v1472
    %v1474 = vrot.slane %v1473, 2
    %v1475 = vadd.f32 %v1473, %v1474
    %v1476 = vrot.slane %v1475, 1
    %v1477 = vadd.f32 %v1475, %v1476
    %v1478 = vmul.f32 %v1477, 0.5
    %v1479 = vsel %vm1245, %v1478, %v1469
    %v1480 = vsub.f32 %v1454, %v1479
    %v1481 = vmul.f32 %v1480, %v1480
    %v1482 = vsel %vm1245, 0.0, %v1481
    %v1483 = vsel %vm1247, %v1482, 0.0
    %v1484 = vrot.slane %v1483, 4
    %v1485 = vadd.f32 %v1483, %v1484
    %v1486 = vrot.slane %v1485, 2
    %v1487 = vadd.f32 %v1485, %v1486
    %v1488 = vrot.slane %v1487, 1
    %v1489 = vadd.f32 %v1487, %v1488
    %v1490 = vmul.f32 %v1489, 0.5
    %v1491 = vsel %vm1245, %v1481, 0.0
    %v1492 = vsel %vm1247, %v1491, 0.0
    %v1493 = vrot.slane %v1492, 4
    %v1494 = vadd.f32 %v1492, %v1493
    %v1495 = vrot.slane %v1494, 2
    %v1496 = vadd.f32 %v1494, %v1495
    %v1497 = vrot.slane %v1496, 1
    %v1498 = vadd.f32 %v1496, %v1497
    %v1499 = vmul.f32 %v1498, 0.5
    %v1500 = vsel %vm1245, %v1499, %v1490
    %v1501 = vadd.f32 %v1500, 1e-05
    %v1502 = vrsqrt.pop %v1501
    %v1504 = vlaneseq
    %v1505 = vshrl.u32 %v1504, 7
    %v1506 = vsub.s32 0, %v1505
    %v1507 = vrot.slane %v1459, %v1506
    %v1509 = vmul.f32 %v1507, %v1502
    %v1510 = vmul.f32 %v1480, %v1509
    %v1512 = vlaneseq
    %v1513 = vshrl.u32 %v1512, 7
    %v1514 = vsub.s32 0, %v1513
    %v1515 = vrot.slane %v1460, %v1514
    %v1517 = vadd.f32 %v1510, %v1515
    %vm1518 = vcmp.ge.f32.partialorder %v1517, 0.0
    %v1519 = vmul.f32 %v1517, 0.01
    %v1520 = vsel %vm1518, %v1517, %v1519
    %v1521 = vpack.c.bf16 %v1520, %v1520
    %v1522 = vld [vmem:[%s13] sm:$0xf]
    %v1523 = vld [vmem:[%s13 + $0x4] sm:$0xf]
    %v1524 = vld [vmem:[%s13 + $0x8] sm:$0xf]
    %v1525 = vld [vmem:[%s13 + $0xc] sm:$0xf]
    %v1526 = vld [vmem:[%s13 + $0x10] sm:$0xf]
    %v1527 = vld [vmem:[%s13 + $0x14] sm:$0xf]
    %v1528 = vld [vmem:[%s13 + $0x18] sm:$0xf]
    %v1529 = vld [vmem:[%s13 + $0x1c] sm:$0xf]
    %v1530 = vld [vmem:[%s14] sm:$0x1]
    %v1532 = vlaneseq
    %v1533 = vshrl.u32 %v1532, 7
    %v1534 = vsub.s32 0, %v1533
    %v1535 = vrot.slane %v1530, %v1534
    %v1545 = vunpack.c.l.b16 %v1522
    %v1546 = vunpack.c.l.b16 %v1523
    %v1547 = vunpack.c.l.b16 %v1524
    %v1548 = vunpack.c.l.b16 %v1525
    %v1549 = vunpack.c.l.b16 %v1526
    %v1550 = vunpack.c.l.b16 %v1527
    %v1551 = vunpack.c.l.b16 %v1528
    %v1552 = vunpack.c.l.b16 %v1529
    %v1553 = vpack.c.b16 %v1546, %v1545
    %v1554 = vpack.c.b16 %v1548, %v1547
    %v1555 = vpack.c.b16 %v1550, %v1549
    %v1556 = vpack.c.b16 %v1552, %v1551
    %v1562 = vsel %vm1347, %v1521, 0
    %1564 = vmatprep.subr.bf16.mxu0 0
    %1565 = vmatpush1.bf16.msra.mxu0 0
    %1566 = vmatprep.subr.bf16.mxu0 0
    %1567 = vmatpush1.bf16.msra.mxu0 0
    %1568 = vmatprep.subr.bf16.mxu0 0
    %1569 = vmatpush1.bf16.msra.mxu0 0
    %1570 = vmatprep.subr.bf16.mxu0 0
    %1571 = vmatpush1.bf16.msra.mxu0 0
    %1572 = vmatprep.subr.bf16.mxu0 0
    %1573 = vmatpush1.bf16.msra.mxu0 %v1556
    %1574 = vmatprep.subr.bf16.mxu0 0
    %1575 = vmatpush1.bf16.msra.mxu0 %v1555
    %1576 = vmatprep.subr.bf16.mxu0 0
    %1577 = vmatpush1.bf16.msra.mxu0 %v1554
    %1578 = vmatprep.subr.bf16.mxu0 0
    %1579 = vmatpush1.bf16.msra.mxu0 %v1553
    %1580 = vmatprep.subr.bf16.mxu0 0
    %1581 = vmatpush2.bf16.msra.mxu0 0
    %1582 = vmatprep.subr.bf16.mxu0 0
    %1583 = vmatpush2.bf16.msra.mxu0 0
    %1584 = vmatprep.subr.bf16.mxu0 0
    %1585 = vmatpush2.bf16.msra.mxu0 0
    %1586 = vmatprep.subr.bf16.mxu0 0
    %1587 = vmatpush2.bf16.msra.mxu0 0
    %1588 = vmatprep.subr.bf16.mxu0 0
    %1589 = vmatpush2.bf16.msra.mxu0 0
    %1590 = vmatprep.subr.bf16.mxu0 0
    %1591 = vmatpush2.bf16.msra.mxu0 0
    %1592 = vmatprep.subr.bf16.mxu0 0
    %1593 = vmatpush2.bf16.msra.mxu0 0
    %1594 = vmatprep.subr.bf16.mxu0 0
    %1595 = vmatpush2.bf16.msra.mxu0 0
    %1596 = vmatprep.mubr.bf16.mxu0 0
    %1597 = vmatmul.mubr.bf16.gmra.mxu0 %v1562
    %v1598 = vpop.f32.mrf.mxu0
    %v1599 = vadd.f32 %v1535, %v1598
    %v1600 = vpop.f32.mrf.mxu0
    %v1601 = vpop.f32.mrf.mxu0
    %v1602 = vpop.f32.mrf.mxu0
    %1603 = vdwg.mxu0
    %v1604 = vmul.f32 %v1599, %v1599
    %vm1605 = vcmask 254976
    %v1606 = vsel %vm1605, %v1604, 0.0
    %1607 = vadd.xlane.f32.xlu0 %v1606
    %v1608 = vpop.xlane.xlu0 %1607
    %v1609 = vmax.f32 %v1608, 1e-24
    %v1610 = vrsqrt.pop %v1609
    %v1611 = vmul.f32 %v1386, %v1386
    %vm1612 = vcmask 257026
    %v1613 = vsel %vm1612, %v1611, 0.0
    %1614 = vadd.xlane.f32.xlu0 %v1613
    %v1615 = vpop.xlane.xlu0 %1614
    %v1616 = vmax.f32 %v1615, 1e-24
    %v1617 = vrsqrt.pop %v1616
    %v1619 = vrot.slane %v1386, 2
    %v1621 = vmul.f32 %v1599, %v1619
    %v1622 = vsel %vm1605, %v1621, 0.0
    %1623 = vadd.xlane.f32.xlu0 %v1622
    %v1624 = vpop.xlane.xlu0 %1623
    %v1625 = vmul.f32 %v1624, %v1610
    %v1627 = vrot.slane %v1617, 2
    %v1629 = vmul.f32 %v1625, %v1627
    %v1630 = vmul.f32 %v1629, 2.0
    %v1631 = vsub.f32 2.0, %v1630
    %v1632 = vsel %vm1612, %v1604, 0.0
    %1633 = vadd.xlane.f32.xlu0 %v1632
    %v1634 = vpop.xlane.xlu0 %1633
    %v1635 = vmax.f32 %v1634, 1e-24
    %v1636 = vrsqrt.pop %v1635
    %v1637 = vsel %vm1605, %v1611, 0.0
    %1638 = vadd.xlane.f32.xlu0 %v1637
    %v1639 = vpop.xlane.xlu0 %1638
    %v1640 = vmax.f32 %v1639, 1e-24
    %v1641 = vrsqrt.pop %v1640
    %v1642 = vrot.slane %v1386, 6
    %v1644 = vmul.f32 %v1599, %v1642
    %v1645 = vsel %vm1612, %v1644, 0.0
    %1646 = vadd.xlane.f32.xlu0 %v1645
    %v1647 = vpop.xlane.xlu0 %1646
    %v1648 = vmul.f32 %v1647, %v1636
    %v1650 = vrot.slane %v1641, 6
    %v1652 = vmul.f32 %v1648, %v1650
    %v1653 = vmul.f32 %v1652, 2.0
    %v1654 = vsub.f32 2.0, %v1653
    %v1656 = vrot.slane %v1654, 2
    %v1658 = vadd.f32 %v1631, %v1656
    %vm1659 = vcmask 1024
    %v1660 = vsel %vm1659, %v1658, 0.0
    %1661 = vadd.xlane.f32.xlu0 %v1660
    %v1662 = vpop.xlane.xlu0 %1661
    %v1663 = vrot.slane %v1662, 4
    %v1664 = vadd.f32 %v1662, %v1663
    %v1665 = vrot.slane %v1664, 2
    %v1666 = vadd.f32 %v1664, %v1665
    %v1667 = vrot.slane %v1666, 1
    %v1668 = vadd.f32 %v1666, %v1667
    %s1669 = vtos %v1668
    %v1670 = vrcp.pop 2.0
    %s1671 = vtos %v1670
    %s1672 = smul.f32 %s1669, %s1671
    %v1673 = vstv %s1672
    %vm1674 = vcmask 0
    %1675 = vst.msk [vmem:[#allocation2] sm:$0x1] %vm1674, %v1673
    // Predicated region
    $region62: #{byol_forward.1} parent=1 // pred_check
      _
    $region63: #{byol_forward.1} parent=1 // pred_check_branch
      %1677 = sbr.rel (0) target = $region65
    $region64: #{byol_forward.1} parent=1 // pred_region
      %s1679 = ssub.s32 16, 16
      %1680 = vsyncadd [#allocation3], %s1679
      %s1682 = sshll.u32 [#allocation2], 4
      %s1683 = int_to_ptr.vmem [resolvable:$true] %s1682
      %1685 = dma.vmem_to_hbm [thread:$0]  %s1683, 16, %s15, [#allocation3]
    $region65: #{byol_forward.1} parent=1 // pred_fallthru
      _
    // Predicated region
    $region66: #{byol_forward.1} parent=1 // pred_check
      _
    $region67: #{byol_forward.1} parent=1 // pred_check_branch
      %1687 = sbr.rel (0) target = $region69
    $region68: #{byol_forward.1} parent=1 // pred_region
      %1688 = dma.done [#allocation3], 16
    $region69: #{byol_forward.1} parent=1 // pred_fallthru
      _
    %1689 = vsyncpa [#allocation3], 1

</llo_original>
